<compile_context>
chip_gen: v6e
topology: v6e:2x2x1
jax: 0.10.0
libtpu: 0.0.40
codegen_flags: <defaults>
</compile_context>

<pallas_src>
import jax
import jax.numpy as jnp
from jax.experimental import pallas as pl
from jax.experimental.pallas import tpu as pltpu  # noqa: F401  (TPU backend assumed)


# ----------------------------------------------------------------------------
# glue helpers
# ----------------------------------------------------------------------------
def _dft_mats(n):
    """Real/imag parts of the symmetric DFT matrix F[j,k] = exp(-2*pi*i*j*k/n)."""
    k = jnp.arange(n)
    m = (k[:, None] * k[None, :]) % n            # reduce argument for f32 accuracy
    ang = (-2.0 * jnp.pi / n) * m.astype(jnp.float32)
    return jnp.cos(ang), jnp.sin(ang)            # F = cos(ang) + i*sin(ang)


def zero_pad(img1, img2):
    """Faithful port of ZeroPad (nn.ZeroPad2d semantics, incl. its w/h quirk)."""
    _, _, w, h = img1.shape
    _, _, w1, h1 = img2.shape
    pad_lr = int((w - w1) / 2)   # left/right  -> last dim
    pad_tb = int((h - h1) / 2)   # top/bottom  -> second-to-last dim
    return jnp.pad(img2, ((0, 0), (0, 0), (pad_tb, pad_tb), (pad_lr, pad_lr)))


def _blockwise_transpose(x):
    """Per-block 2-D transpose along the (static) leading axis.

    Unrolled into plain 2-D transposes (XLU vxpose) + a leading-axis concat,
    which are the Mosaic-safest ops for this relayout.
    """
    return jnp.concatenate([x[k].T[None] for k in range(x.shape[0])], axis=0)


# ----------------------------------------------------------------------------
# single fused, grid-free kernel: FFT convolution spectra + L1-of-complex loss
# ----------------------------------------------------------------------------
def _fused_fft_loss_kernel(x_ref, fcat_ref, acat_ref, lrf_ref, out_ref):
    f32 = jnp.float32
    NB, N, _ = x_ref.shape               # NB = B*(C+1) stacked real blocks
    M = acat_ref.shape[1] // 2            # subsampled size
    BC = lrf_ref.shape[1]                 # B*C product blocks
    B = NB - BC
    C = BC // B

    def mm(a, b):                          # MXU matmul, f32 accumulate
        return jnp.dot(a, b, preferred_element_type=f32)

    fcat = fcat_ref[...]                   # (N, 2N)  = [F_r | F_i]
    acat = acat_ref[...]                   # (N, 2M)  = [A_r | A_i]

    # --- stage 1: right-multiply every block by F  (real -> complex)
    #     block k:  [X_k F_r | X_k F_i]
    x2d = x_ref[...].reshape(NB * N, N)                          # (NB*N, N)
    u1 = mm(x2d, fcat).reshape(NB, N, 2 * N)                     # (NB, N, 2N)

    # --- per-block transpose:  (X F)^T = F X^T  (re/im stacked on sublanes)
    u2 = _blockwise_transpose(u1)                                # (NB, 2N, N)

    # --- stage 2: right-multiply by F again  ->  F X^T F  (spectrum^T)
    u3 = mm(u2.reshape(NB * 2 * N, N), fcat).reshape(NB, 2 * N, 2 * N)
    re_l = u3[:, 0:N, :]                   # Re(F X^T) @ [F_r | F_i]
    im_l = u3[:, N:2 * N, :]               # Im(F X^T) @ [F_r | F_i]
    spec_r = re_l[:, :, 0:N] - im_l[:, :, N:2 * N]               # (NB, N, N)
    spec_i = re_l[:, :, N:2 * N] + im_l[:, :, 0:N]

    # --- product spectrum P^T = OTF^T * SRF^T
    #     (SR spectrum computed once per batch, replicated across C in VMEM)
    rep_r = jnp.concatenate(
        [spec_r[b:b + 1] for b in range(B) for _ in range(C)], axis=0)
    rep_i = jnp.concatenate(
        [spec_i[b:b + 1] for b in range(B) for _ in range(C)], axis=0)
    otf_r = spec_r[B:NB]
    otf_i = spec_i[B:NB]
    p_r = otf_r * rep_r - otf_i * rep_i                          # (BC, N, N) f32
    p_i = otf_r * rep_i + otf_i * rep_r

    # --- stage 3: right-multiply P^T by A  (re/im stacked along the block axis)
    pc = jnp.concatenate([p_r, p_i], axis=0)                     # (2*BC, N, N)
    v = mm(pc.reshape(2 * BC * N, N), acat).reshape(2 * BC, N, 2 * M)
    v_r = v[0:BC, :, 0:M] - v[BC:2 * BC, :, M:2 * M]             # Re(P^T A)
    v_i = v[0:BC, :, M:2 * M] + v[BC:2 * BC, :, 0:M]             # Im(P^T A)

    # --- per-block transpose:  (P^T A)^T = A^T P
    vcat = jnp.concatenate([v_r, v_i], axis=2)                   # (BC, N, 2M)
    w = _blockwise_transpose(vcat)                               # (BC, 2M, N)

    # --- stage 4: right-multiply by A  ->  A^T P A  (then scale by 1/N^2)
    z = mm(w.reshape(BC * 2 * M, N), acat).reshape(BC, 2 * M, 2 * M)
    inv_n2 = 1.0 / float(N * N)
    s_r = (z[:, 0:M, 0:M] - z[:, M:2 * M, M:2 * M]) * inv_n2     # (BC, M, M)
    s_i = (z[:, 0:M, M:2 * M] + z[:, M:2 * M, 0:M]) * inv_n2

    # --- L1-of-complex vs precomputed fft2(LR)
    d_r = lrf_ref[0] - s_r
    d_i = lrf_ref[1] - s_i
    total = jnp.sum(jnp.sqrt(d_r * d_r + d_i * d_i))

    # full (8,128) tile store (unmasked); wrapper reads element [0, 0]
    out_ref[...] = jnp.zeros(out_ref.shape, out_ref.dtype) + total


# ----------------------------------------------------------------------------
# wrapper: full get_loss forward
# ----------------------------------------------------------------------------
@jax.jit
def get_loss_pallas(LR, SR, HR, PSF):
    del HR  # TODO(synk): only the taken (`if 1:`) branch of get_loss is implemented
    B, C, _, _ = PSF.shape
    pad_psf = zero_pad(SR, PSF).astype(jnp.float32)        # (B, C, N, N)
    sr = SR[:, 0, :, :].astype(jnp.float32)                # (B, N, N)
    N = sr.shape[-1]
    assert N % 2 == 0 and pad_psf.shape[-2:] == (N, N)

    M = len(range(0, N - 1, 4))                            # subsample 0:N-1:4
    BC = B * C
    assert LR.shape == (B, C, M, M)

    # stacked real input blocks: [SR_0, SR_1, PSF_00..PSF_0(C-1), PSF_10.., ...]
    x_all = jnp.concatenate([sr, pad_psf.reshape(BC, N, N)], axis=0)   # (B+BC,N,N)

    # constants (built once in XLA, ~10 KB total, no kron / block-diagonal)
    fr, fi = _dft_mats(N)                       # F_N
    gmr, gmi = _dft_mats(M)                     # F_M
    idx = (4 * jnp.arange(M) - N // 2) % N      # output fftshift + 4x subsample
    cfr, cfi = fr[:, idx], -fi[:, idx]          # columns of conj(F_N)
    a_r = cfr @ gmr - cfi @ gmi                 # A = conj(F_N)[:, idx] @ F_M
    a_i = cfr @ gmi + cfi @ gmr
    fcat = jnp.concatenate([fr, fi], axis=1)                # (N, 2N)
    acat = jnp.concatenate([a_r, a_i], axis=1)              # (N, 2M)

    # fft2(LR) is ~2 KB of data -> XLA glue, natural (b,c)-major layout
    lrf = jnp.fft.fft2(LR.astype(jnp.float32)).reshape(BC, M, M)
    lrf_ri = jnp.stack([jnp.real(lrf), jnp.imag(lrf)], axis=0)  # (2, BC, M, M)

    # Grid-free single step: all operands live whole in VMEM (< 0.2 MiB).
    # NOTE(v7x): for large B, reintroduce grid=(B,) with
    # dimension_semantics=("parallel",) so both TensorCores are used.
    out = pl.pallas_call(
        _fused_fft_loss_kernel,
        out_shape=jax.ShapeDtypeStruct((8, 128), jnp.float32),
    )(x_all, fcat, acat, lrf_ri)

    # torch.nn.L1Loss on complex tensors = mean of |difference|
    return out[0, 0] / (BC * M * M)


# ----------------------------------------------------------------------------
# pure-JAX reference (jnp.fft) for correctness check
# ----------------------------------------------------------------------------
def reference_loss(LR, SR, PSF):
    pad_psf = zero_pad(SR, PSF)
    B, C = PSF.shape[0], PSF.shape[1]
    sr = SR[:, 0]
    outs = []
    for b in range(B):
        ch = []
        for c in range(C):
            srf = jnp.fft.fftshift(jnp.fft.fft2(jnp.fft.ifftshift(sr[b])))
            otf = jnp.fft.fftshift(jnp.fft.fft2(jnp.fft.ifftshift(pad_psf[b, c])))
            o = jnp.fft.fftshift(jnp.fft.ifft2(jnp.fft.ifftshift(srf * otf)))
            ch.append(jnp.real(o))
        outs.append(jnp.stack(ch))
    out = jnp.stack(outs)
    out = out[:, :, 0:out.shape[2] - 1:4, 0:out.shape[3] - 1:4]
    return jnp.mean(jnp.abs(jnp.fft.fft2(LR) - jnp.fft.fft2(out)))


if __name__ == "__main__":
    key = jax.random.PRNGKey(0)
    k1, k2, k3, k4 = jax.random.split(key, 4)

    B, C = 2, 4               # PSF batch / channels
    SRN = 32                  # SR spatial size
    PSFN = 16                 # PSF spatial size (zero-padded up to SRN)
    SUB = len(range(0, SRN - 1, 4))   # strided subsample 0:SRN-1:4 -> 8

    SR = jax.random.normal(k1, (B, 1, SRN, SRN), jnp.float32)
    PSF = jax.random.normal(k2, (B, C, PSFN, PSFN), jnp.float32)
    LR = jax.random.normal(k3, (B, C, SUB, SUB), jnp.float32)
    HR = jax.random.normal(k4, (B, 1, SRN, SRN), jnp.float32)  # unused branch

    loss = jax.block_until_ready(get_loss_pallas(LR, SR, HR, PSF))
    ref = jax.block_until_ready(reference_loss(LR, SR, PSF))

    rel = abs(float(loss) - float(ref)) / (abs(float(ref)) + 1e-8)
    assert rel < 2e-2, (float(loss), float(ref), rel)

    print("KERNEL_OK")
</pallas_src>

<mosaic_0001>
module attributes {stable_mosaic.version = 11 : i64} {
  func.func @_fused_fft_loss_kernel(%arg0: memref<10x32x32xf32, #tpu.memory_space<vmem>>, %arg1: memref<32x64xf32, #tpu.memory_space<vmem>>, %arg2: memref<32x16xf32, #tpu.memory_space<vmem>>, %arg3: memref<2x8x8x8xf32, #tpu.memory_space<vmem>>, %arg4: memref<8x128xf32, #tpu.memory_space<vmem>>) attributes {dimension_semantics = [], scalar_prefetch = 0 : i64, scratch_operands = 0 : i64, tpu.core_type = #tpu.core_type<tc>} {
    %c0 = arith.constant 0 : index
    %c0_0 = arith.constant 0 : index
    %0 = vector.load %arg1[%c0, %c0_0] : memref<32x64xf32, #tpu.memory_space<vmem>>, vector<32x64xf32>
    %c0_1 = arith.constant 0 : index
    %c0_2 = arith.constant 0 : index
    %1 = vector.load %arg2[%c0_1, %c0_2] : memref<32x16xf32, #tpu.memory_space<vmem>>, vector<32x16xf32>
    %c0_3 = arith.constant 0 : index
    %c0_4 = arith.constant 0 : index
    %c0_5 = arith.constant 0 : index
    %2 = vector.load %arg0[%c0_3, %c0_4, %c0_5] : memref<10x32x32xf32, #tpu.memory_space<vmem>>, vector<10x32x32xf32>
    %3 = vector.shape_cast %2 : vector<10x32x32xf32> to vector<320x32xf32>
    %cst = arith.constant dense<0.000000e+00> : vector<320x64xf32>
    %4 = tpu.matmul %3, %0, %cst {dimension_numbers = #tpu.dot_dimension_numbers<[1], [0], [0], [1], [0, 0, 1, 1], [], []>} : vector<320x32xf32>, vector<32x64xf32>, vector<320x64xf32> -> vector<320x64xf32>
    %5 = vector.shape_cast %4 : vector<320x64xf32> to vector<10x32x64xf32>
    %6 = vector.extract_strided_slice %5 {offsets = [0, 0, 0], sizes = [1, 32, 64], strides = [1, 1, 1]} : vector<10x32x64xf32> to vector<1x32x64xf32>
    %7 = vector.shape_cast %6 : vector<1x32x64xf32> to vector<32x64xf32>
    %8 = tpu.transpose %7, [1, 0] : vector<32x64xf32> -> vector<64x32xf32>
    %9 = vector.shape_cast %8 : vector<64x32xf32> to vector<1x64x32xf32>
    %10 = vector.extract_strided_slice %5 {offsets = [1, 0, 0], sizes = [1, 32, 64], strides = [1, 1, 1]} : vector<10x32x64xf32> to vector<1x32x64xf32>
    %11 = vector.shape_cast %10 : vector<1x32x64xf32> to vector<32x64xf32>
    %12 = tpu.transpose %11, [1, 0] : vector<32x64xf32> -> vector<64x32xf32>
    %13 = vector.shape_cast %12 : vector<64x32xf32> to vector<1x64x32xf32>
    %14 = vector.extract_strided_slice %5 {offsets = [2, 0, 0], sizes = [1, 32, 64], strides = [1, 1, 1]} : vector<10x32x64xf32> to vector<1x32x64xf32>
    %15 = vector.shape_cast %14 : vector<1x32x64xf32> to vector<32x64xf32>
    %16 = tpu.transpose %15, [1, 0] : vector<32x64xf32> -> vector<64x32xf32>
    %17 = vector.shape_cast %16 : vector<64x32xf32> to vector<1x64x32xf32>
    %18 = vector.extract_strided_slice %5 {offsets = [3, 0, 0], sizes = [1, 32, 64], strides = [1, 1, 1]} : vector<10x32x64xf32> to vector<1x32x64xf32>
    %19 = vector.shape_cast %18 : vector<1x32x64xf32> to vector<32x64xf32>
    %20 = tpu.transpose %19, [1, 0] : vector<32x64xf32> -> vector<64x32xf32>
    %21 = vector.shape_cast %20 : vector<64x32xf32> to vector<1x64x32xf32>
    %22 = vector.extract_strided_slice %5 {offsets = [4, 0, 0], sizes = [1, 32, 64], strides = [1, 1, 1]} : vector<10x32x64xf32> to vector<1x32x64xf32>
    %23 = vector.shape_cast %22 : vector<1x32x64xf32> to vector<32x64xf32>
    %24 = tpu.transpose %23, [1, 0] : vector<32x64xf32> -> vector<64x32xf32>
    %25 = vector.shape_cast %24 : vector<64x32xf32> to vector<1x64x32xf32>
    %26 = vector.extract_strided_slice %5 {offsets = [5, 0, 0], sizes = [1, 32, 64], strides = [1, 1, 1]} : vector<10x32x64xf32> to vector<1x32x64xf32>
    %27 = vector.shape_cast %26 : vector<1x32x64xf32> to vector<32x64xf32>
    %28 = tpu.transpose %27, [1, 0] : vector<32x64xf32> -> vector<64x32xf32>
    %29 = vector.shape_cast %28 : vector<64x32xf32> to vector<1x64x32xf32>
    %30 = vector.extract_strided_slice %5 {offsets = [6, 0, 0], sizes = [1, 32, 64], strides = [1, 1, 1]} : vector<10x32x64xf32> to vector<1x32x64xf32>
    %31 = vector.shape_cast %30 : vector<1x32x64xf32> to vector<32x64xf32>
    %32 = tpu.transpose %31, [1, 0] : vector<32x64xf32> -> vector<64x32xf32>
    %33 = vector.shape_cast %32 : vector<64x32xf32> to vector<1x64x32xf32>
    %34 = vector.extract_strided_slice %5 {offsets = [7, 0, 0], sizes = [1, 32, 64], strides = [1, 1, 1]} : vector<10x32x64xf32> to vector<1x32x64xf32>
    %35 = vector.shape_cast %34 : vector<1x32x64xf32> to vector<32x64xf32>
    %36 = tpu.transpose %35, [1, 0] : vector<32x64xf32> -> vector<64x32xf32>
    %37 = vector.shape_cast %36 : vector<64x32xf32> to vector<1x64x32xf32>
    %38 = vector.extract_strided_slice %5 {offsets = [8, 0, 0], sizes = [1, 32, 64], strides = [1, 1, 1]} : vector<10x32x64xf32> to vector<1x32x64xf32>
    %39 = vector.shape_cast %38 : vector<1x32x64xf32> to vector<32x64xf32>
    %40 = tpu.transpose %39, [1, 0] : vector<32x64xf32> -> vector<64x32xf32>
    %41 = vector.shape_cast %40 : vector<64x32xf32> to vector<1x64x32xf32>
    %42 = vector.extract_strided_slice %5 {offsets = [9, 0, 0], sizes = [1, 32, 64], strides = [1, 1, 1]} : vector<10x32x64xf32> to vector<1x32x64xf32>
    %43 = vector.shape_cast %42 : vector<1x32x64xf32> to vector<32x64xf32>
    %44 = tpu.transpose %43, [1, 0] : vector<32x64xf32> -> vector<64x32xf32>
    %45 = vector.shape_cast %44 : vector<64x32xf32> to vector<1x64x32xf32>
    %46 = tpu.concatenate %9, %13, %17, %21, %25, %29, %33, %37, %41, %45 in 0 : vector<1x64x32xf32>, vector<1x64x32xf32>, vector<1x64x32xf32>, vector<1x64x32xf32>, vector<1x64x32xf32>, vector<1x64x32xf32>, vector<1x64x32xf32>, vector<1x64x32xf32>, vector<1x64x32xf32>, vector<1x64x32xf32> -> vector<10x64x32xf32>
    %47 = vector.shape_cast %46 : vector<10x64x32xf32> to vector<640x32xf32>
    %cst_6 = arith.constant dense<0.000000e+00> : vector<640x64xf32>
    %48 = tpu.matmul %47, %0, %cst_6 {dimension_numbers = #tpu.dot_dimension_numbers<[1], [0], [0], [1], [0, 0, 1, 1], [], []>} : vector<640x32xf32>, vector<32x64xf32>, vector<640x64xf32> -> vector<640x64xf32>
    %49 = vector.shape_cast %48 : vector<640x64xf32> to vector<10x64x64xf32>
    %50 = vector.extract_strided_slice %49 {offsets = [0, 0, 0], sizes = [10, 32, 64], strides = [1, 1, 1]} : vector<10x64x64xf32> to vector<10x32x64xf32>
    %51 = vector.extract_strided_slice %49 {offsets = [0, 32, 0], sizes = [10, 32, 64], strides = [1, 1, 1]} : vector<10x64x64xf32> to vector<10x32x64xf32>
    %52 = vector.extract_strided_slice %50 {offsets = [0, 0, 0], sizes = [10, 32, 32], strides = [1, 1, 1]} : vector<10x32x64xf32> to vector<10x32x32xf32>
    %53 = vector.extract_strided_slice %51 {offsets = [0, 0, 32], sizes = [10, 32, 32], strides = [1, 1, 1]} : vector<10x32x64xf32> to vector<10x32x32xf32>
    %54 = arith.subf %52, %53 : vector<10x32x32xf32>
    %55 = vector.extract_strided_slice %50 {offsets = [0, 0, 32], sizes = [10, 32, 32], strides = [1, 1, 1]} : vector<10x32x64xf32> to vector<10x32x32xf32>
    %56 = vector.extract_strided_slice %51 {offsets = [0, 0, 0], sizes = [10, 32, 32], strides = [1, 1, 1]} : vector<10x32x64xf32> to vector<10x32x32xf32>
    %57 = arith.addf %55, %56 : vector<10x32x32xf32>
    %58 = vector.extract_strided_slice %54 {offsets = [0, 0, 0], sizes = [1, 32, 32], strides = [1, 1, 1]} : vector<10x32x32xf32> to vector<1x32x32xf32>
    %59 = vector.extract_strided_slice %54 {offsets = [0, 0, 0], sizes = [1, 32, 32], strides = [1, 1, 1]} : vector<10x32x32xf32> to vector<1x32x32xf32>
    %60 = vector.extract_strided_slice %54 {offsets = [0, 0, 0], sizes = [1, 32, 32], strides = [1, 1, 1]} : vector<10x32x32xf32> to vector<1x32x32xf32>
    %61 = vector.extract_strided_slice %54 {offsets = [0, 0, 0], sizes = [1, 32, 32], strides = [1, 1, 1]} : vector<10x32x32xf32> to vector<1x32x32xf32>
    %62 = vector.extract_strided_slice %54 {offsets = [1, 0, 0], sizes = [1, 32, 32], strides = [1, 1, 1]} : vector<10x32x32xf32> to vector<1x32x32xf32>
    %63 = vector.extract_strided_slice %54 {offsets = [1, 0, 0], sizes = [1, 32, 32], strides = [1, 1, 1]} : vector<10x32x32xf32> to vector<1x32x32xf32>
    %64 = vector.extract_strided_slice %54 {offsets = [1, 0, 0], sizes = [1, 32, 32], strides = [1, 1, 1]} : vector<10x32x32xf32> to vector<1x32x32xf32>
    %65 = vector.extract_strided_slice %54 {offsets = [1, 0, 0], sizes = [1, 32, 32], strides = [1, 1, 1]} : vector<10x32x32xf32> to vector<1x32x32xf32>
    %66 = tpu.concatenate %58, %59, %60, %61, %62, %63, %64, %65 in 0 : vector<1x32x32xf32>, vector<1x32x32xf32>, vector<1x32x32xf32>, vector<1x32x32xf32>, vector<1x32x32xf32>, vector<1x32x32xf32>, vector<1x32x32xf32>, vector<1x32x32xf32> -> vector<8x32x32xf32>
    %67 = vector.extract_strided_slice %57 {offsets = [0, 0, 0], sizes = [1, 32, 32], strides = [1, 1, 1]} : vector<10x32x32xf32> to vector<1x32x32xf32>
    %68 = vector.extract_strided_slice %57 {offsets = [0, 0, 0], sizes = [1, 32, 32], strides = [1, 1, 1]} : vector<10x32x32xf32> to vector<1x32x32xf32>
    %69 = vector.extract_strided_slice %57 {offsets = [0, 0, 0], sizes = [1, 32, 32], strides = [1, 1, 1]} : vector<10x32x32xf32> to vector<1x32x32xf32>
    %70 = vector.extract_strided_slice %57 {offsets = [0, 0, 0], sizes = [1, 32, 32], strides = [1, 1, 1]} : vector<10x32x32xf32> to vector<1x32x32xf32>
    %71 = vector.extract_strided_slice %57 {offsets = [1, 0, 0], sizes = [1, 32, 32], strides = [1, 1, 1]} : vector<10x32x32xf32> to vector<1x32x32xf32>
    %72 = vector.extract_strided_slice %57 {offsets = [1, 0, 0], sizes = [1, 32, 32], strides = [1, 1, 1]} : vector<10x32x32xf32> to vector<1x32x32xf32>
    %73 = vector.extract_strided_slice %57 {offsets = [1, 0, 0], sizes = [1, 32, 32], strides = [1, 1, 1]} : vector<10x32x32xf32> to vector<1x32x32xf32>
    %74 = vector.extract_strided_slice %57 {offsets = [1, 0, 0], sizes = [1, 32, 32], strides = [1, 1, 1]} : vector<10x32x32xf32> to vector<1x32x32xf32>
    %75 = tpu.concatenate %67, %68, %69, %70, %71, %72, %73, %74 in 0 : vector<1x32x32xf32>, vector<1x32x32xf32>, vector<1x32x32xf32>, vector<1x32x32xf32>, vector<1x32x32xf32>, vector<1x32x32xf32>, vector<1x32x32xf32>, vector<1x32x32xf32> -> vector<8x32x32xf32>
    %76 = vector.extract_strided_slice %54 {offsets = [2, 0, 0], sizes = [8, 32, 32], strides = [1, 1, 1]} : vector<10x32x32xf32> to vector<8x32x32xf32>
    %77 = vector.extract_strided_slice %57 {offsets = [2, 0, 0], sizes = [8, 32, 32], strides = [1, 1, 1]} : vector<10x32x32xf32> to vector<8x32x32xf32>
    %78 = arith.mulf %76, %66 : vector<8x32x32xf32>
    %79 = arith.mulf %77, %75 : vector<8x32x32xf32>
    %80 = arith.subf %78, %79 : vector<8x32x32xf32>
    %81 = arith.mulf %76, %75 : vector<8x32x32xf32>
    %82 = arith.mulf %77, %66 : vector<8x32x32xf32>
    %83 = arith.addf %81, %82 : vector<8x32x32xf32>
    %84 = tpu.concatenate %80, %83 in 0 : vector<8x32x32xf32>, vector<8x32x32xf32> -> vector<16x32x32xf32>
    %85 = vector.shape_cast %84 : vector<16x32x32xf32> to vector<512x32xf32>
    %cst_7 = arith.constant dense<0.000000e+00> : vector<512x16xf32>
    %86 = tpu.matmul %85, %1, %cst_7 {dimension_numbers = #tpu.dot_dimension_numbers<[1], [0], [0], [1], [0, 0, 1, 1], [], []>} : vector<512x32xf32>, vector<32x16xf32>, vector<512x16xf32> -> vector<512x16xf32>
    %87 = vector.shape_cast %86 : vector<512x16xf32> to vector<16x32x16xf32>
    %88 = vector.extract_strided_slice %87 {offsets = [0, 0, 0], sizes = [8, 32, 8], strides = [1, 1, 1]} : vector<16x32x16xf32> to vector<8x32x8xf32>
    %89 = vector.extract_strided_slice %87 {offsets = [8, 0, 8], sizes = [8, 32, 8], strides = [1, 1, 1]} : vector<16x32x16xf32> to vector<8x32x8xf32>
    %90 = arith.subf %88, %89 : vector<8x32x8xf32>
    %91 = vector.extract_strided_slice %87 {offsets = [0, 0, 8], sizes = [8, 32, 8], strides = [1, 1, 1]} : vector<16x32x16xf32> to vector<8x32x8xf32>
    %92 = vector.extract_strided_slice %87 {offsets = [8, 0, 0], sizes = [8, 32, 8], strides = [1, 1, 1]} : vector<16x32x16xf32> to vector<8x32x8xf32>
    %93 = arith.addf %91, %92 : vector<8x32x8xf32>
    %94 = tpu.concatenate %90, %93 in 2 : vector<8x32x8xf32>, vector<8x32x8xf32> -> vector<8x32x16xf32>
    %95 = vector.extract_strided_slice %94 {offsets = [0, 0, 0], sizes = [1, 32, 16], strides = [1, 1, 1]} : vector<8x32x16xf32> to vector<1x32x16xf32>
    %96 = vector.shape_cast %95 : vector<1x32x16xf32> to vector<32x16xf32>
    %97 = tpu.transpose %96, [1, 0] : vector<32x16xf32> -> vector<16x32xf32>
    %98 = vector.shape_cast %97 : vector<16x32xf32> to vector<1x16x32xf32>
    %99 = vector.extract_strided_slice %94 {offsets = [1, 0, 0], sizes = [1, 32, 16], strides = [1, 1, 1]} : vector<8x32x16xf32> to vector<1x32x16xf32>
    %100 = vector.shape_cast %99 : vector<1x32x16xf32> to vector<32x16xf32>
    %101 = tpu.transpose %100, [1, 0] : vector<32x16xf32> -> vector<16x32xf32>
    %102 = vector.shape_cast %101 : vector<16x32xf32> to vector<1x16x32xf32>
    %103 = vector.extract_strided_slice %94 {offsets = [2, 0, 0], sizes = [1, 32, 16], strides = [1, 1, 1]} : vector<8x32x16xf32> to vector<1x32x16xf32>
    %104 = vector.shape_cast %103 : vector<1x32x16xf32> to vector<32x16xf32>
    %105 = tpu.transpose %104, [1, 0] : vector<32x16xf32> -> vector<16x32xf32>
    %106 = vector.shape_cast %105 : vector<16x32xf32> to vector<1x16x32xf32>
    %107 = vector.extract_strided_slice %94 {offsets = [3, 0, 0], sizes = [1, 32, 16], strides = [1, 1, 1]} : vector<8x32x16xf32> to vector<1x32x16xf32>
    %108 = vector.shape_cast %107 : vector<1x32x16xf32> to vector<32x16xf32>
    %109 = tpu.transpose %108, [1, 0] : vector<32x16xf32> -> vector<16x32xf32>
    %110 = vector.shape_cast %109 : vector<16x32xf32> to vector<1x16x32xf32>
    %111 = vector.extract_strided_slice %94 {offsets = [4, 0, 0], sizes = [1, 32, 16], strides = [1, 1, 1]} : vector<8x32x16xf32> to vector<1x32x16xf32>
    %112 = vector.shape_cast %111 : vector<1x32x16xf32> to vector<32x16xf32>
    %113 = tpu.transpose %112, [1, 0] : vector<32x16xf32> -> vector<16x32xf32>
    %114 = vector.shape_cast %113 : vector<16x32xf32> to vector<1x16x32xf32>
    %115 = vector.extract_strided_slice %94 {offsets = [5, 0, 0], sizes = [1, 32, 16], strides = [1, 1, 1]} : vector<8x32x16xf32> to vector<1x32x16xf32>
    %116 = vector.shape_cast %115 : vector<1x32x16xf32> to vector<32x16xf32>
    %117 = tpu.transpose %116, [1, 0] : vector<32x16xf32> -> vector<16x32xf32>
    %118 = vector.shape_cast %117 : vector<16x32xf32> to vector<1x16x32xf32>
    %119 = vector.extract_strided_slice %94 {offsets = [6, 0, 0], sizes = [1, 32, 16], strides = [1, 1, 1]} : vector<8x32x16xf32> to vector<1x32x16xf32>
    %120 = vector.shape_cast %119 : vector<1x32x16xf32> to vector<32x16xf32>
    %121 = tpu.transpose %120, [1, 0] : vector<32x16xf32> -> vector<16x32xf32>
    %122 = vector.shape_cast %121 : vector<16x32xf32> to vector<1x16x32xf32>
    %123 = vector.extract_strided_slice %94 {offsets = [7, 0, 0], sizes = [1, 32, 16], strides = [1, 1, 1]} : vector<8x32x16xf32> to vector<1x32x16xf32>
    %124 = vector.shape_cast %123 : vector<1x32x16xf32> to vector<32x16xf32>
    %125 = tpu.transpose %124, [1, 0] : vector<32x16xf32> -> vector<16x32xf32>
    %126 = vector.shape_cast %125 : vector<16x32xf32> to vector<1x16x32xf32>
    %127 = tpu.concatenate %98, %102, %106, %110, %114, %118, %122, %126 in 0 : vector<1x16x32xf32>, vector<1x16x32xf32>, vector<1x16x32xf32>, vector<1x16x32xf32>, vector<1x16x32xf32>, vector<1x16x32xf32>, vector<1x16x32xf32>, vector<1x16x32xf32> -> vector<8x16x32xf32>
    %128 = vector.shape_cast %127 : vector<8x16x32xf32> to vector<128x32xf32>
    %cst_8 = arith.constant dense<0.000000e+00> : vector<128x16xf32>
    %129 = tpu.matmul %128, %1, %cst_8 {dimension_numbers = #tpu.dot_dimension_numbers<[1], [0], [0], [1], [0, 0, 1, 1], [], []>} : vector<128x32xf32>, vector<32x16xf32>, vector<128x16xf32> -> vector<128x16xf32>
    %130 = vector.shape_cast %129 : vector<128x16xf32> to vector<8x16x16xf32>
    %131 = vector.extract_strided_slice %130 {offsets = [0, 0, 0], sizes = [8, 8, 8], strides = [1, 1, 1]} : vector<8x16x16xf32> to vector<8x8x8xf32>
    %132 = vector.extract_strided_slice %130 {offsets = [0, 8, 8], sizes = [8, 8, 8], strides = [1, 1, 1]} : vector<8x16x16xf32> to vector<8x8x8xf32>
    %133 = arith.subf %131, %132 : vector<8x8x8xf32>
    %cst_9 = arith.constant 9.765625E-4 : f32
    %134 = vector.broadcast %cst_9 : f32 to vector<8x8x8xf32>
    %135 = arith.mulf %133, %134 : vector<8x8x8xf32>
    %136 = vector.extract_strided_slice %130 {offsets = [0, 0, 8], sizes = [8, 8, 8], strides = [1, 1, 1]} : vector<8x16x16xf32> to vector<8x8x8xf32>
    %137 = vector.extract_strided_slice %130 {offsets = [0, 8, 0], sizes = [8, 8, 8], strides = [1, 1, 1]} : vector<8x16x16xf32> to vector<8x8x8xf32>
    %138 = arith.addf %136, %137 : vector<8x8x8xf32>
    %cst_10 = arith.constant 9.765625E-4 : f32
    %139 = vector.broadcast %cst_10 : f32 to vector<8x8x8xf32>
    %140 = arith.mulf %138, %139 : vector<8x8x8xf32>
    %c0_11 = arith.constant 0 : index
    %c0_12 = arith.constant 0 : index
    %c0_13 = arith.constant 0 : index
    %c0_14 = arith.constant 0 : index
    %141 = vector.load %arg3[%c0_11, %c0_12, %c0_13, %c0_14] : memref<2x8x8x8xf32, #tpu.memory_space<vmem>>, vector<1x8x8x8xf32>
    %142 = vector.shape_cast %141 : vector<1x8x8x8xf32> to vector<8x8x8xf32>
    %143 = arith.subf %142, %135 : vector<8x8x8xf32>
    %c1 = arith.constant 1 : index
    %c0_15 = arith.constant 0 : index
    %c0_16 = arith.constant 0 : index
    %c0_17 = arith.constant 0 : index
    %144 = vector.load %arg3[%c1, %c0_15, %c0_16, %c0_17] : memref<2x8x8x8xf32, #tpu.memory_space<vmem>>, vector<1x8x8x8xf32>
    %145 = vector.shape_cast %144 : vector<1x8x8x8xf32> to vector<8x8x8xf32>
    %146 = arith.subf %145, %140 : vector<8x8x8xf32>
    %147 = arith.mulf %143, %143 : vector<8x8x8xf32>
    %148 = arith.mulf %146, %146 : vector<8x8x8xf32>
    %149 = arith.addf %147, %148 : vector<8x8x8xf32>
    %150 = math.sqrt %149 : vector<8x8x8xf32>
    %151 = vector.shape_cast %150 : vector<8x8x8xf32> to vector<1x8x8x8xf32>
    %cst_18 = arith.constant dense<0.000000e+00> : vector<1xf32>
    %152 = vector.multi_reduction <add>, %151, %cst_18 [1, 2, 3] : vector<1x8x8x8xf32> to vector<1xf32>
    %153 = vector.shape_cast %152 : vector<1xf32> to vector<1x1x1x1xf32>
    %154 = vector.extract %153[0, 0, 0, 0] : f32 from vector<1x1x1x1xf32>
    %cst_19 = arith.constant 0.000000e+00 : f32
    %155 = vector.broadcast %cst_19 : f32 to vector<8x128xf32>
    %156 = vector.broadcast %154 : f32 to vector<8x128xf32>
    %157 = arith.addf %155, %156 : vector<8x128xf32>
    %c0_20 = arith.constant 0 : index
    %c0_21 = arith.constant 0 : index
    %158 = vector.load %arg4[%c0_20, %c0_21] : memref<8x128xf32, #tpu.memory_space<vmem>>, vector<8x128xf32>
    tpu.vector_store %arg4[%c0_20, %c0_21], %157 {strides = array<i32>} : memref<8x128xf32, #tpu.memory_space<vmem>>, vector<8x128xf32>,
    return
  }
}

</mosaic_0001>

<llo_original>
// kernel: get_loss_pallas.1
$region0: #{get_loss_pallas.1}
  #allocation0 [shape = 'u32[]', space=smem, size = 0x4, offset = 0x4, fixed_abs, tag = 'smem constant byte address 0x4 - core index']
  #allocation1 [shape = 'u32[144,128]{1,0:T(1,128)}', space=vmem, size = 0x12000, scoped, tag = 'internal scratch']
  %s0 = inlined_call_operand.vmem [shape: f32[10,32,32], index: 0, kind: input, shape index: {}]
  %s1 = inlined_call_operand.vmem [shape: f32[32,64], index: 1, kind: input, shape index: {}]
  %s2 = inlined_call_operand.vmem [shape: f32[32,16], index: 2, kind: input, shape index: {}]
  %s3 = inlined_call_operand.vmem [shape: f32[2,8,8,8], index: 3, kind: input, shape index: {}]
  %s4 = inlined_call_operand.vmem [shape: f32[8,128], index: 4, kind: output, shape index: {}]
  %s5 = sld [smem:[#allocation0]]
  $region26: #{get_loss_pallas.1} parent=0
    _
  %s7 = ssub.s32 1, %s5
  %s8 = scalar_select 0, %s7, %s5
  // Predicated region
  $region2: #{get_loss_pallas.1} parent=0 // pred_check
    _
  $region3: #{get_loss_pallas.1} parent=0 // pred_check_branch
    %10 = sbr.rel (0) target = $region5
  $region4: #{get_loss_pallas.1} parent=0 // pred_region
    _
  $region5: #{get_loss_pallas.1} parent=0 // pred_fallthru
    _
  // Predicated region
  $region6: #{get_loss_pallas.1} parent=0 // pred_check
    _
  $region7: #{get_loss_pallas.1} parent=0 // pred_check_branch
    %12 = sbr.rel (0) target = $region9
  $region8: #{get_loss_pallas.1} parent=0 // pred_region
    _
  $region9: #{get_loss_pallas.1} parent=0 // pred_fallthru
    _
  // Predicated region
  $region10: #{get_loss_pallas.1} parent=0 // pred_check
    _
  $region11: #{get_loss_pallas.1} parent=0 // pred_check_branch
    %14 = sbr.rel (0) target = $region13
  $region12: #{get_loss_pallas.1} parent=0 // pred_region
    _
  $region13: #{get_loss_pallas.1} parent=0 // pred_fallthru
    _
  // Predicated region
  $region14: #{get_loss_pallas.1} parent=0 // pred_check
    _
  $region15: #{get_loss_pallas.1} parent=0 // pred_check_branch
    %16 = sbr.rel (0) target = $region17
  $region16: #{get_loss_pallas.1} parent=0 // pred_region
    _
  $region17: #{get_loss_pallas.1} parent=0 // pred_fallthru
    _
  %v17 = vld [vmem:[%s1] sm:$0xff]
  %v18 = vld [vmem:[%s1 + $0x8] sm:$0xff]
  %v19 = vld [vmem:[%s1 + $0x10] sm:$0xff]
  %v20 = vld [vmem:[%s1 + $0x18] sm:$0xff]
  %v21 = vld [vmem:[%s2] sm:$0xff]
  %v22 = vld [vmem:[%s2 + $0x8] sm:$0xff]
  %v23 = vld [vmem:[%s2 + $0x10] sm:$0xff]
  %v24 = vld [vmem:[%s2 + $0x18] sm:$0xff]
  %v25 = vld [vmem:[%s0] sm:$0xff]
  %v26 = vld [vmem:[%s0 + $0x8] sm:$0xff]
  %v27 = vld [vmem:[%s0 + $0x10] sm:$0xff]
  %v28 = vld [vmem:[%s0 + $0x18] sm:$0xff]
  %v29 = vld [vmem:[%s0 + $0x20] sm:$0xff]
  %v30 = vld [vmem:[%s0 + $0x28] sm:$0xff]
  %v31 = vld [vmem:[%s0 + $0x30] sm:$0xff]
  %v32 = vld [vmem:[%s0 + $0x38] sm:$0xff]
  %v33 = vld [vmem:[%s0 + $0x40] sm:$0xff]
  %v34 = vld [vmem:[%s0 + $0x48] sm:$0xff]
  %v35 = vld [vmem:[%s0 + $0x50] sm:$0xff]
  %v36 = vld [vmem:[%s0 + $0x58] sm:$0xff]
  %v37 = vld [vmem:[%s0 + $0x60] sm:$0xff]
  %v38 = vld [vmem:[%s0 + $0x68] sm:$0xff]
  %v39 = vld [vmem:[%s0 + $0x70] sm:$0xff]
  %v40 = vld [vmem:[%s0 + $0x78] sm:$0xff]
  %v41 = vld [vmem:[%s0 + $0x80] sm:$0xff]
  %v42 = vld [vmem:[%s0 + $0x88] sm:$0xff]
  %v43 = vld [vmem:[%s0 + $0x90] sm:$0xff]
  %v44 = vld [vmem:[%s0 + $0x98] sm:$0xff]
  %v45 = vld [vmem:[%s0 + $0xa0] sm:$0xff]
  %v46 = vld [vmem:[%s0 + $0xa8] sm:$0xff]
  %v47 = vld [vmem:[%s0 + $0xb0] sm:$0xff]
  %v48 = vld [vmem:[%s0 + $0xb8] sm:$0xff]
  %v49 = vld [vmem:[%s0 + $0xc0] sm:$0xff]
  %v50 = vld [vmem:[%s0 + $0xc8] sm:$0xff]
  %v51 = vld [vmem:[%s0 + $0xd0] sm:$0xff]
  %v52 = vld [vmem:[%s0 + $0xd8] sm:$0xff]
  %v53 = vld [vmem:[%s0 + $0xe0] sm:$0xff]
  %v54 = vld [vmem:[%s0 + $0xe8] sm:$0xff]
  %v55 = vld [vmem:[%s0 + $0xf0] sm:$0xff]
  %v56 = vld [vmem:[%s0 + $0xf8] sm:$0xff]
  %v57 = vld [vmem:[%s0 + $0x100] sm:$0xff]
  %v58 = vld [vmem:[%s0 + $0x108] sm:$0xff]
  %v59 = vld [vmem:[%s0 + $0x110] sm:$0xff]
  %v60 = vld [vmem:[%s0 + $0x118] sm:$0xff]
  %v61 = vld [vmem:[%s0 + $0x120] sm:$0xff]
  %v62 = vld [vmem:[%s0 + $0x128] sm:$0xff]
  %v63 = vld [vmem:[%s0 + $0x130] sm:$0xff]
  %v64 = vld [vmem:[%s0 + $0x138] sm:$0xff]
  %vm65 = vcmask 261120
  %v67 = vsel %vm65, %v25, 0
  %v70 = vsel %vm65, %v26, 0
  %v73 = vsel %vm65, %v27, 0
  %v76 = vsel %vm65, %v28, 0
  %v79 = vsel %vm65, %v29, 0
  %v82 = vsel %vm65, %v30, 0
  %v85 = vsel %vm65, %v31, 0
  %v88 = vsel %vm65, %v32, 0
  %v91 = vsel %vm65, %v33, 0
  %v94 = vsel %vm65, %v34, 0
  %v97 = vsel %vm65, %v35, 0
  %v100 = vsel %vm65, %v36, 0
  %v103 = vsel %vm65, %v37, 0
  %v106 = vsel %vm65, %v38, 0
  %v109 = vsel %vm65, %v39, 0
  %v112 = vsel %vm65, %v40, 0
  %v115 = vsel %vm65, %v41, 0
  %v118 = vsel %vm65, %v42, 0
  %v121 = vsel %vm65, %v43, 0
  %v124 = vsel %vm65, %v44, 0
  %v127 = vsel %vm65, %v45, 0
  %v130 = vsel %vm65, %v46, 0
  %v133 = vsel %vm65, %v47, 0
  %v136 = vsel %vm65, %v48, 0
  %v139 = vsel %vm65, %v49, 0
  %v142 = vsel %vm65, %v50, 0
  %v145 = vsel %vm65, %v51, 0
  %v148 = vsel %vm65, %v52, 0
  %v151 = vsel %vm65, %v53, 0
  %v154 = vsel %vm65, %v54, 0
  %v157 = vsel %vm65, %v55, 0
  %v160 = vsel %vm65, %v56, 0
  %v163 = vsel %vm65, %v57, 0
  %v166 = vsel %vm65, %v58, 0
  %v169 = vsel %vm65, %v59, 0
  %v172 = vsel %vm65, %v60, 0
  %v175 = vsel %vm65, %v61, 0
  %v178 = vsel %vm65, %v62, 0
  %v181 = vsel %vm65, %v63, 0
  %v184 = vsel %vm65, %v64, 0
  %186 = vmatprep.subr.mxu0 0.0
  %187 = vmatpush1.msra.mxu0 0.0
  %188 = vmatprep.subr.mxu0 0.0
  %189 = vmatpush1.msra.mxu0 0.0
  %190 = vmatprep.subr.mxu0 0.0
  %191 = vmatpush1.msra.mxu0 0.0
  %192 = vmatprep.subr.mxu0 0.0
  %193 = vmatpush1.msra.mxu0 0.0
  %194 = vmatprep.subr.mxu0 0.0
  %195 = vmatpush1.msra.mxu0 0.0
  %196 = vmatprep.subr.mxu0 0.0
  %197 = vmatpush1.msra.mxu0 0.0
  %198 = vmatprep.subr.mxu0 0.0
  %199 = vmatpush1.msra.mxu0 0.0
  %200 = vmatprep.subr.mxu0 0.0
  %201 = vmatpush1.msra.mxu0 0.0
  %202 = vmatprep.subr.mxu0 0.0
  %203 = vmatpush1.msra.mxu0 0.0
  %204 = vmatprep.subr.mxu0 0.0
  %205 = vmatpush1.msra.mxu0 0.0
  %206 = vmatprep.subr.mxu0 0.0
  %207 = vmatpush1.msra.mxu0 0.0
  %208 = vmatprep.subr.mxu0 0.0
  %209 = vmatpush1.msra.mxu0 0.0
  %210 = vmatprep.subr.mxu0 0.0
  %211 = vmatpush1.msra.mxu0 %v20
  %212 = vmatprep.subr.mxu0 0.0
  %213 = vmatpush1.msra.mxu0 %v19
  %214 = vmatprep.subr.mxu0 0.0
  %215 = vmatpush1.msra.mxu0 %v18
  %216 = vmatprep.subr.mxu0 0.0
  %217 = vmatpush1.msra.mxu0 %v17
  %218 = vmatprep.subr.mxu0 0.0
  %219 = vmatpush2.msra.mxu0 0.0
  %220 = vmatprep.subr.mxu0 0.0
  %221 = vmatpush2.msra.mxu0 0.0
  %222 = vmatprep.subr.mxu0 0.0
  %223 = vmatpush2.msra.mxu0 0.0
  %224 = vmatprep.subr.mxu0 0.0
  %225 = vmatpush2.msra.mxu0 0.0
  %226 = vmatprep.subr.mxu0 0.0
  %227 = vmatpush2.msra.mxu0 0.0
  %228 = vmatprep.subr.mxu0 0.0
  %229 = vmatpush2.msra.mxu0 0.0
  %230 = vmatprep.subr.mxu0 0.0
  %231 = vmatpush2.msra.mxu0 0.0
  %232 = vmatprep.subr.mxu0 0.0
  %233 = vmatpush2.msra.mxu0 0.0
  %234 = vmatprep.subr.mxu0 0.0
  %235 = vmatpush2.msra.mxu0 0.0
  %236 = vmatprep.subr.mxu0 0.0
  %237 = vmatpush2.msra.mxu0 0.0
  %238 = vmatprep.subr.mxu0 0.0
  %239 = vmatpush2.msra.mxu0 0.0
  %240 = vmatprep.subr.mxu0 0.0
  %241 = vmatpush2.msra.mxu0 0.0
  %242 = vmatprep.subr.mxu0 0.0
  %243 = vmatpush2.msra.mxu0 0.0
  %244 = vmatprep.subr.mxu0 0.0
  %245 = vmatpush2.msra.mxu0 0.0
  %246 = vmatprep.subr.mxu0 0.0
  %247 = vmatpush2.msra.mxu0 0.0
  %248 = vmatprep.subr.mxu0 0.0
  %249 = vmatpush2.msra.mxu0 0.0
  %250 = vmatprep.mubr.f32.mxu0 0.0
  %251 = vmatmul.mubr.f32.gmra.mxu0 %v67
  %v252 = vpop.f32.mrf.mxu0
  %v253 = vadd.f32 0.0, %v252
  %v254 = vpop.f32.mrf.mxu0
  %255 = vmatprep.mubr.f32.mxu0 0.0
  %256 = vmatmul.mubr.f32.gmra.mxu0 %v70
  %v257 = vpop.f32.mrf.mxu0
  %v258 = vadd.f32 0.0, %v257
  %v259 = vpop.f32.mrf.mxu0
  %260 = vmatprep.mubr.f32.mxu0 0.0
  %261 = vmatmul.mubr.f32.gmra.mxu0 %v73
  %v262 = vpop.f32.mrf.mxu0
  %v263 = vadd.f32 0.0, %v262
  %v264 = vpop.f32.mrf.mxu0
  %265 = vmatprep.mubr.f32.mxu0 0.0
  %266 = vmatmul.mubr.f32.gmra.mxu0 %v76
  %v267 = vpop.f32.mrf.mxu0
  %v268 = vadd.f32 0.0, %v267
  %v269 = vpop.f32.mrf.mxu0
  %270 = vmatprep.mubr.f32.mxu0 0.0
  %271 = vmatmul.mubr.f32.gmra.mxu0 %v79
  %v272 = vpop.f32.mrf.mxu0
  %v273 = vadd.f32 0.0, %v272
  %v274 = vpop.f32.mrf.mxu0
  %275 = vmatprep.mubr.f32.mxu0 0.0
  %276 = vmatmul.mubr.f32.gmra.mxu0 %v82
  %v277 = vpop.f32.mrf.mxu0
  %v278 = vadd.f32 0.0, %v277
  %v279 = vpop.f32.mrf.mxu0
  %280 = vmatprep.mubr.f32.mxu0 0.0
  %281 = vmatmul.mubr.f32.gmra.mxu0 %v85
  %v282 = vpop.f32.mrf.mxu0
  %v283 = vadd.f32 0.0, %v282
  %v284 = vpop.f32.mrf.mxu0
  %285 = vmatprep.mubr.f32.mxu0 0.0
  %286 = vmatmul.mubr.f32.gmra.mxu0 %v88
  %v287 = vpop.f32.mrf.mxu0
  %v288 = vadd.f32 0.0, %v287
  %v289 = vpop.f32.mrf.mxu0
  %290 = vmatprep.mubr.f32.mxu0 0.0
  %291 = vmatmul.mubr.f32.gmra.mxu0 %v91
  %v292 = vpop.f32.mrf.mxu0
  %v293 = vadd.f32 0.0, %v292
  %v294 = vpop.f32.mrf.mxu0
  %295 = vmatprep.mubr.f32.mxu0 0.0
  %296 = vmatmul.mubr.f32.gmra.mxu0 %v94
  %v297 = vpop.f32.mrf.mxu0
  %v298 = vadd.f32 0.0, %v297
  %v299 = vpop.f32.mrf.mxu0
  %300 = vmatprep.mubr.f32.mxu0 0.0
  %301 = vmatmul.mubr.f32.gmra.mxu0 %v97
  %v302 = vpop.f32.mrf.mxu0
  %v303 = vadd.f32 0.0, %v302
  %v304 = vpop.f32.mrf.mxu0
  %305 = vmatprep.mubr.f32.mxu0 0.0
  %306 = vmatmul.mubr.f32.gmra.mxu0 %v100
  %v307 = vpop.f32.mrf.mxu0
  %v308 = vadd.f32 0.0, %v307
  %v309 = vpop.f32.mrf.mxu0
  %310 = vmatprep.mubr.f32.mxu0 0.0
  %311 = vmatmul.mubr.f32.gmra.mxu0 %v103
  %v312 = vpop.f32.mrf.mxu0
  %v313 = vadd.f32 0.0, %v312
  %v314 = vpop.f32.mrf.mxu0
  %315 = vmatprep.mubr.f32.mxu0 0.0
  %316 = vmatmul.mubr.f32.gmra.mxu0 %v106
  %v317 = vpop.f32.mrf.mxu0
  %v318 = vadd.f32 0.0, %v317
  %v319 = vpop.f32.mrf.mxu0
  %320 = vmatprep.mubr.f32.mxu0 0.0
  %321 = vmatmul.mubr.f32.gmra.mxu0 %v109
  %v322 = vpop.f32.mrf.mxu0
  %v323 = vadd.f32 0.0, %v322
  %v324 = vpop.f32.mrf.mxu0
  %325 = vmatprep.mubr.f32.mxu0 0.0
  %326 = vmatmul.mubr.f32.gmra.mxu0 %v112
  %v327 = vpop.f32.mrf.mxu0
  %v328 = vadd.f32 0.0, %v327
  %v329 = vpop.f32.mrf.mxu0
  %330 = vmatprep.mubr.f32.mxu0 0.0
  %331 = vmatmul.mubr.f32.gmra.mxu0 %v115
  %v332 = vpop.f32.mrf.mxu0
  %v333 = vadd.f32 0.0, %v332
  %v334 = vpop.f32.mrf.mxu0
  %335 = vmatprep.mubr.f32.mxu0 0.0
  %336 = vmatmul.mubr.f32.gmra.mxu0 %v118
  %v337 = vpop.f32.mrf.mxu0
  %v338 = vadd.f32 0.0, %v337
  %v339 = vpop.f32.mrf.mxu0
  %340 = vmatprep.mubr.f32.mxu0 0.0
  %341 = vmatmul.mubr.f32.gmra.mxu0 %v121
  %v342 = vpop.f32.mrf.mxu0
  %v343 = vadd.f32 0.0, %v342
  %v344 = vpop.f32.mrf.mxu0
  %345 = vmatprep.mubr.f32.mxu0 0.0
  %346 = vmatmul.mubr.f32.gmra.mxu0 %v124
  %v347 = vpop.f32.mrf.mxu0
  %v348 = vadd.f32 0.0, %v347
  %v349 = vpop.f32.mrf.mxu0
  %350 = vmatprep.mubr.f32.mxu0 0.0
  %351 = vmatmul.mubr.f32.gmra.mxu0 %v127
  %v352 = vpop.f32.mrf.mxu0
  %v353 = vadd.f32 0.0, %v352
  %v354 = vpop.f32.mrf.mxu0
  %355 = vmatprep.mubr.f32.mxu0 0.0
  %356 = vmatmul.mubr.f32.gmra.mxu0 %v130
  %v357 = vpop.f32.mrf.mxu0
  %v358 = vadd.f32 0.0, %v357
  %v359 = vpop.f32.mrf.mxu0
  %360 = vmatprep.mubr.f32.mxu0 0.0
  %361 = vmatmul.mubr.f32.gmra.mxu0 %v133
  %v362 = vpop.f32.mrf.mxu0
  %v363 = vadd.f32 0.0, %v362
  %v364 = vpop.f32.mrf.mxu0
  %365 = vmatprep.mubr.f32.mxu0 0.0
  %366 = vmatmul.mubr.f32.gmra.mxu0 %v136
  %v367 = vpop.f32.mrf.mxu0
  %v368 = vadd.f32 0.0, %v367
  %v369 = vpop.f32.mrf.mxu0
  %370 = vmatprep.mubr.f32.mxu0 0.0
  %371 = vmatmul.mubr.f32.gmra.mxu0 %v139
  %v372 = vpop.f32.mrf.mxu0
  %v373 = vadd.f32 0.0, %v372
  %v374 = vpop.f32.mrf.mxu0
  %375 = vmatprep.mubr.f32.mxu0 0.0
  %376 = vmatmul.mubr.f32.gmra.mxu0 %v142
  %v377 = vpop.f32.mrf.mxu0
  %v378 = vadd.f32 0.0, %v377
  %v379 = vpop.f32.mrf.mxu0
  %380 = vmatprep.mubr.f32.mxu0 0.0
  %381 = vmatmul.mubr.f32.gmra.mxu0 %v145
  %v382 = vpop.f32.mrf.mxu0
  %v383 = vadd.f32 0.0, %v382
  %v384 = vpop.f32.mrf.mxu0
  %385 = vmatprep.mubr.f32.mxu0 0.0
  %386 = vmatmul.mubr.f32.gmra.mxu0 %v148
  %v387 = vpop.f32.mrf.mxu0
  %v388 = vadd.f32 0.0, %v387
  %v389 = vpop.f32.mrf.mxu0
  %390 = vmatprep.mubr.f32.mxu0 0.0
  %391 = vmatmul.mubr.f32.gmra.mxu0 %v151
  %v392 = vpop.f32.mrf.mxu0
  %v393 = vadd.f32 0.0, %v392
  %v394 = vpop.f32.mrf.mxu0
  %395 = vmatprep.mubr.f32.mxu0 0.0
  %396 = vmatmul.mubr.f32.gmra.mxu0 %v154
  %v397 = vpop.f32.mrf.mxu0
  %v398 = vadd.f32 0.0, %v397
  %v399 = vpop.f32.mrf.mxu0
  %400 = vmatprep.mubr.f32.mxu0 0.0
  %401 = vmatmul.mubr.f32.gmra.mxu0 %v157
  %v402 = vpop.f32.mrf.mxu0
  %v403 = vadd.f32 0.0, %v402
  %v404 = vpop.f32.mrf.mxu0
  %405 = vmatprep.mubr.f32.mxu0 0.0
  %406 = vmatmul.mubr.f32.gmra.mxu0 %v160
  %v407 = vpop.f32.mrf.mxu0
  %v408 = vadd.f32 0.0, %v407
  %v409 = vpop.f32.mrf.mxu0
  %410 = vmatprep.mubr.f32.mxu0 0.0
  %411 = vmatmul.mubr.f32.gmra.mxu0 %v163
  %v412 = vpop.f32.mrf.mxu0
  %v413 = vadd.f32 0.0, %v412
  %v414 = vpop.f32.mrf.mxu0
  %415 = vmatprep.mubr.f32.mxu0 0.0
  %416 = vmatmul.mubr.f32.gmra.mxu0 %v166
  %v417 = vpop.f32.mrf.mxu0
  %v418 = vadd.f32 0.0, %v417
  %v419 = vpop.f32.mrf.mxu0
  %420 = vmatprep.mubr.f32.mxu0 0.0
  %421 = vmatmul.mubr.f32.gmra.mxu0 %v169
  %v422 = vpop.f32.mrf.mxu0
  %v423 = vadd.f32 0.0, %v422
  %v424 = vpop.f32.mrf.mxu0
  %425 = vmatprep.mubr.f32.mxu0 0.0
  %426 = vmatmul.mubr.f32.gmra.mxu0 %v172
  %v427 = vpop.f32.mrf.mxu0
  %v428 = vadd.f32 0.0, %v427
  %v429 = vpop.f32.mrf.mxu0
  %430 = vmatprep.mubr.f32.mxu0 0.0
  %431 = vmatmul.mubr.f32.gmra.mxu0 %v175
  %v432 = vpop.f32.mrf.mxu0
  %v433 = vadd.f32 0.0, %v432
  %v434 = vpop.f32.mrf.mxu0
  %435 = vmatprep.mubr.f32.mxu0 0.0
  %436 = vmatmul.mubr.f32.gmra.mxu0 %v178
  %v437 = vpop.f32.mrf.mxu0
  %v438 = vadd.f32 0.0, %v437
  %v439 = vpop.f32.mrf.mxu0
  %440 = vmatprep.mubr.f32.mxu0 0.0
  %441 = vmatmul.mubr.f32.gmra.mxu0 %v181
  %v442 = vpop.f32.mrf.mxu0
  %v443 = vadd.f32 0.0, %v442
  %v444 = vpop.f32.mrf.mxu0
  %445 = vmatprep.mubr.f32.mxu0 0.0
  %446 = vmatmul.mubr.f32.gmra.mxu0 %v184
  %v447 = vpop.f32.mrf.mxu0
  %v448 = vadd.f32 0.0, %v447
  %v449 = vpop.f32.mrf.mxu0
  %450 = vdwg.mxu0
  %451 = vxpose.xlu0.b32.start [1/16] %v253, 128
  %452 = vxpose.xlu0.b32.cont [2/16] %v258, 128
  %453 = vxpose.xlu0.b32.cont [3/16] %v263, 128
  %454 = vxpose.xlu0.b32.cont [4/16] %v268, 128
  %455 = vxpose.xlu0.b32.cont [5/16] 0.0, 128
  %456 = vxpose.xlu0.b32.cont [6/16] 0.0, 128
  %457 = vxpose.xlu0.b32.cont [7/16] 0.0, 128
  %458 = vxpose.xlu0.b32.cont [8/16] 0.0, 128
  %459 = vxpose.xlu0.b32.cont [9/16] 0.0, 128
  %460 = vxpose.xlu0.b32.cont [10/16] 0.0, 128
  %461 = vxpose.xlu0.b32.cont [11/16] 0.0, 128
  %462 = vxpose.xlu0.b32.cont [12/16] 0.0, 128
  %463 = vxpose.xlu0.b32.cont [13/16] 0.0, 128
  %464 = vxpose.xlu0.b32.cont [14/16] 0.0, 128
  %465 = vxpose.xlu0.b32.cont [15/16] 0.0, 128
  %466 = vxpose.xlu0.b32.end [16/16] 0.0, 128
  %v467 = vpop.trf.xlu0
  %v468 = vpop.trf.xlu0
  %v469 = vpop.trf.xlu0
  %v470 = vpop.trf.xlu0
  %v471 = vpop.trf.xlu0
  %v472 = vpop.trf.xlu0
  %v473 = vpop.trf.xlu0
  %v474 = vpop.trf.xlu0
  %v475 = vpop.trf.xlu0
  %v476 = vpop.trf.xlu0
  %v477 = vpop.trf.xlu0
  %v478 = vpop.trf.xlu0
  %v479 = vpop.trf.xlu0
  %v480 = vpop.trf.xlu0
  %v481 = vpop.trf.xlu0
  %v482 = vpop.trf.xlu0
  %483 = vxpose.xlu0.b32.start [1/16] %v273, 128
  %484 = vxpose.xlu0.b32.cont [2/16] %v278, 128
  %485 = vxpose.xlu0.b32.cont [3/16] %v283, 128
  %486 = vxpose.xlu0.b32.cont [4/16] %v288, 128
  %487 = vxpose.xlu0.b32.cont [5/16] 0.0, 128
  %488 = vxpose.xlu0.b32.cont [6/16] 0.0, 128
  %489 = vxpose.xlu0.b32.cont [7/16] 0.0, 128
  %490 = vxpose.xlu0.b32.cont [8/16] 0.0, 128
  %491 = vxpose.xlu0.b32.cont [9/16] 0.0, 128
  %492 = vxpose.xlu0.b32.cont [10/16] 0.0, 128
  %493 = vxpose.xlu0.b32.cont [11/16] 0.0, 128
  %494 = vxpose.xlu0.b32.cont [12/16] 0.0, 128
  %495 = vxpose.xlu0.b32.cont [13/16] 0.0, 128
  %496 = vxpose.xlu0.b32.cont [14/16] 0.0, 128
  %497 = vxpose.xlu0.b32.cont [15/16] 0.0, 128
  %498 = vxpose.xlu0.b32.end [16/16] 0.0, 128
  %v499 = vpop.trf.xlu0
  %v500 = vpop.trf.xlu0
  %v501 = vpop.trf.xlu0
  %v502 = vpop.trf.xlu0
  %v503 = vpop.trf.xlu0
  %v504 = vpop.trf.xlu0
  %v505 = vpop.trf.xlu0
  %v506 = vpop.trf.xlu0
  %v507 = vpop.trf.xlu0
  %v508 = vpop.trf.xlu0
  %v509 = vpop.trf.xlu0
  %v510 = vpop.trf.xlu0
  %v511 = vpop.trf.xlu0
  %v512 = vpop.trf.xlu0
  %v513 = vpop.trf.xlu0
  %v514 = vpop.trf.xlu0
  %515 = vxpose.xlu0.b32.start [1/16] %v293, 128
  %516 = vxpose.xlu0.b32.cont [2/16] %v298, 128
  %517 = vxpose.xlu0.b32.cont [3/16] %v303, 128
  %518 = vxpose.xlu0.b32.cont [4/16] %v308, 128
  %519 = vxpose.xlu0.b32.cont [5/16] 0.0, 128
  %520 = vxpose.xlu0.b32.cont [6/16] 0.0, 128
  %521 = vxpose.xlu0.b32.cont [7/16] 0.0, 128
  %522 = vxpose.xlu0.b32.cont [8/16] 0.0, 128
  %523 = vxpose.xlu0.b32.cont [9/16] 0.0, 128
  %524 = vxpose.xlu0.b32.cont [10/16] 0.0, 128
  %525 = vxpose.xlu0.b32.cont [11/16] 0.0, 128
  %526 = vxpose.xlu0.b32.cont [12/16] 0.0, 128
  %527 = vxpose.xlu0.b32.cont [13/16] 0.0, 128
  %528 = vxpose.xlu0.b32.cont [14/16] 0.0, 128
  %529 = vxpose.xlu0.b32.cont [15/16] 0.0, 128
  %530 = vxpose.xlu0.b32.end [16/16] 0.0, 128
  %v531 = vpop.trf.xlu0
  %v532 = vpop.trf.xlu0
  %v533 = vpop.trf.xlu0
  %v534 = vpop.trf.xlu0
  %v535 = vpop.trf.xlu0
  %v536 = vpop.trf.xlu0
  %v537 = vpop.trf.xlu0
  %v538 = vpop.trf.xlu0
  %v539 = vpop.trf.xlu0
  %v540 = vpop.trf.xlu0
  %v541 = vpop.trf.xlu0
  %v542 = vpop.trf.xlu0
  %v543 = vpop.trf.xlu0
  %v544 = vpop.trf.xlu0
  %v545 = vpop.trf.xlu0
  %v546 = vpop.trf.xlu0
  %547 = vxpose.xlu0.b32.start [1/16] %v313, 128
  %548 = vxpose.xlu0.b32.cont [2/16] %v318, 128
  %549 = vxpose.xlu0.b32.cont [3/16] %v323, 128
  %550 = vxpose.xlu0.b32.cont [4/16] %v328, 128
  %551 = vxpose.xlu0.b32.cont [5/16] 0.0, 128
  %552 = vxpose.xlu0.b32.cont [6/16] 0.0, 128
  %553 = vxpose.xlu0.b32.cont [7/16] 0.0, 128
  %554 = vxpose.xlu0.b32.cont [8/16] 0.0, 128
  %555 = vxpose.xlu0.b32.cont [9/16] 0.0, 128
  %556 = vxpose.xlu0.b32.cont [10/16] 0.0, 128
  %557 = vxpose.xlu0.b32.cont [11/16] 0.0, 128
  %558 = vxpose.xlu0.b32.cont [12/16] 0.0, 128
  %559 = vxpose.xlu0.b32.cont [13/16] 0.0, 128
  %560 = vxpose.xlu0.b32.cont [14/16] 0.0, 128
  %561 = vxpose.xlu0.b32.cont [15/16] 0.0, 128
  %562 = vxpose.xlu0.b32.end [16/16] 0.0, 128
  %v563 = vpop.trf.xlu0
  %v564 = vpop.trf.xlu0
  %v565 = vpop.trf.xlu0
  %v566 = vpop.trf.xlu0
  %v567 = vpop.trf.xlu0
  %v568 = vpop.trf.xlu0
  %v569 = vpop.trf.xlu0
  %v570 = vpop.trf.xlu0
  %v571 = vpop.trf.xlu0
  %v572 = vpop.trf.xlu0
  %v573 = vpop.trf.xlu0
  %v574 = vpop.trf.xlu0
  %v575 = vpop.trf.xlu0
  %v576 = vpop.trf.xlu0
  %v577 = vpop.trf.xlu0
  %v578 = vpop.trf.xlu0
  %579 = vxpose.xlu0.b32.start [1/16] %v333, 128
  %580 = vxpose.xlu0.b32.cont [2/16] %v338, 128
  %581 = vxpose.xlu0.b32.cont [3/16] %v343, 128
  %582 = vxpose.xlu0.b32.cont [4/16] %v348, 128
  %583 = vxpose.xlu0.b32.cont [5/16] 0.0, 128
  %584 = vxpose.xlu0.b32.cont [6/16] 0.0, 128
  %585 = vxpose.xlu0.b32.cont [7/16] 0.0, 128
  %586 = vxpose.xlu0.b32.cont [8/16] 0.0, 128
  %587 = vxpose.xlu0.b32.cont [9/16] 0.0, 128
  %588 = vxpose.xlu0.b32.cont [10/16] 0.0, 128
  %589 = vxpose.xlu0.b32.cont [11/16] 0.0, 128
  %590 = vxpose.xlu0.b32.cont [12/16] 0.0, 128
  %591 = vxpose.xlu0.b32.cont [13/16] 0.0, 128
  %592 = vxpose.xlu0.b32.cont [14/16] 0.0, 128
  %593 = vxpose.xlu0.b32.cont [15/16] 0.0, 128
  %594 = vxpose.xlu0.b32.end [16/16] 0.0, 128
  %v595 = vpop.trf.xlu0
  %v596 = vpop.trf.xlu0
  %v597 = vpop.trf.xlu0
  %v598 = vpop.trf.xlu0
  %v599 = vpop.trf.xlu0
  %v600 = vpop.trf.xlu0
  %v601 = vpop.trf.xlu0
  %v602 = vpop.trf.xlu0
  %v603 = vpop.trf.xlu0
  %v604 = vpop.trf.xlu0
  %v605 = vpop.trf.xlu0
  %v606 = vpop.trf.xlu0
  %v607 = vpop.trf.xlu0
  %v608 = vpop.trf.xlu0
  %v609 = vpop.trf.xlu0
  %v610 = vpop.trf.xlu0
  %611 = vxpose.xlu0.b32.start [1/16] %v353, 128
  %612 = vxpose.xlu0.b32.cont [2/16] %v358, 128
  %613 = vxpose.xlu0.b32.cont [3/16] %v363, 128
  %614 = vxpose.xlu0.b32.cont [4/16] %v368, 128
  %615 = vxpose.xlu0.b32.cont [5/16] 0.0, 128
  %616 = vxpose.xlu0.b32.cont [6/16] 0.0, 128
  %617 = vxpose.xlu0.b32.cont [7/16] 0.0, 128
  %618 = vxpose.xlu0.b32.cont [8/16] 0.0, 128
  %619 = vxpose.xlu0.b32.cont [9/16] 0.0, 128
  %620 = vxpose.xlu0.b32.cont [10/16] 0.0, 128
  %621 = vxpose.xlu0.b32.cont [11/16] 0.0, 128
  %622 = vxpose.xlu0.b32.cont [12/16] 0.0, 128
  %623 = vxpose.xlu0.b32.cont [13/16] 0.0, 128
  %624 = vxpose.xlu0.b32.cont [14/16] 0.0, 128
  %625 = vxpose.xlu0.b32.cont [15/16] 0.0, 128
  %626 = vxpose.xlu0.b32.end [16/16] 0.0, 128
  %v627 = vpop.trf.xlu0
  %v628 = vpop.trf.xlu0
  %v629 = vpop.trf.xlu0
  %v630 = vpop.trf.xlu0
  %v631 = vpop.trf.xlu0
  %v632 = vpop.trf.xlu0
  %v633 = vpop.trf.xlu0
  %v634 = vpop.trf.xlu0
  %v635 = vpop.trf.xlu0
  %v636 = vpop.trf.xlu0
  %v637 = vpop.trf.xlu0
  %v638 = vpop.trf.xlu0
  %v639 = vpop.trf.xlu0
  %v640 = vpop.trf.xlu0
  %v641 = vpop.trf.xlu0
  %v642 = vpop.trf.xlu0
  %643 = vxpose.xlu0.b32.start [1/16] %v373, 128
  %644 = vxpose.xlu0.b32.cont [2/16] %v378, 128
  %645 = vxpose.xlu0.b32.cont [3/16] %v383, 128
  %646 = vxpose.xlu0.b32.cont [4/16] %v388, 128
  %647 = vxpose.xlu0.b32.cont [5/16] 0.0, 128
  %648 = vxpose.xlu0.b32.cont [6/16] 0.0, 128
  %649 = vxpose.xlu0.b32.cont [7/16] 0.0, 128
  %650 = vxpose.xlu0.b32.cont [8/16] 0.0, 128
  %651 = vxpose.xlu0.b32.cont [9/16] 0.0, 128
  %652 = vxpose.xlu0.b32.cont [10/16] 0.0, 128
  %653 = vxpose.xlu0.b32.cont [11/16] 0.0, 128
  %654 = vxpose.xlu0.b32.cont [12/16] 0.0, 128
  %655 = vxpose.xlu0.b32.cont [13/16] 0.0, 128
  %656 = vxpose.xlu0.b32.cont [14/16] 0.0, 128
  %657 = vxpose.xlu0.b32.cont [15/16] 0.0, 128
  %658 = vxpose.xlu0.b32.end [16/16] 0.0, 128
  %v659 = vpop.trf.xlu0
  %v660 = vpop.trf.xlu0
  %v661 = vpop.trf.xlu0
  %v662 = vpop.trf.xlu0
  %v663 = vpop.trf.xlu0
  %v664 = vpop.trf.xlu0
  %v665 = vpop.trf.xlu0
  %v666 = vpop.trf.xlu0
  %v667 = vpop.trf.xlu0
  %v668 = vpop.trf.xlu0
  %v669 = vpop.trf.xlu0
  %v670 = vpop.trf.xlu0
  %v671 = vpop.trf.xlu0
  %v672 = vpop.trf.xlu0
  %v673 = vpop.trf.xlu0
  %v674 = vpop.trf.xlu0
  %675 = vxpose.xlu0.b32.start [1/16] %v393, 128
  %676 = vxpose.xlu0.b32.cont [2/16] %v398, 128
  %677 = vxpose.xlu0.b32.cont [3/16] %v403, 128
  %678 = vxpose.xlu0.b32.cont [4/16] %v408, 128
  %679 = vxpose.xlu0.b32.cont [5/16] 0.0, 128
  %680 = vxpose.xlu0.b32.cont [6/16] 0.0, 128
  %681 = vxpose.xlu0.b32.cont [7/16] 0.0, 128
  %682 = vxpose.xlu0.b32.cont [8/16] 0.0, 128
  %683 = vxpose.xlu0.b32.cont [9/16] 0.0, 128
  %684 = vxpose.xlu0.b32.cont [10/16] 0.0, 128
  %685 = vxpose.xlu0.b32.cont [11/16] 0.0, 128
  %686 = vxpose.xlu0.b32.cont [12/16] 0.0, 128
  %687 = vxpose.xlu0.b32.cont [13/16] 0.0, 128
  %688 = vxpose.xlu0.b32.cont [14/16] 0.0, 128
  %689 = vxpose.xlu0.b32.cont [15/16] 0.0, 128
  %690 = vxpose.xlu0.b32.end [16/16] 0.0, 128
  %v691 = vpop.trf.xlu0
  %v692 = vpop.trf.xlu0
  %v693 = vpop.trf.xlu0
  %v694 = vpop.trf.xlu0
  %v695 = vpop.trf.xlu0
  %v696 = vpop.trf.xlu0
  %v697 = vpop.trf.xlu0
  %v698 = vpop.trf.xlu0
  %v699 = vpop.trf.xlu0
  %v700 = vpop.trf.xlu0
  %v701 = vpop.trf.xlu0
  %v702 = vpop.trf.xlu0
  %v703 = vpop.trf.xlu0
  %v704 = vpop.trf.xlu0
  %v705 = vpop.trf.xlu0
  %v706 = vpop.trf.xlu0
  %707 = vxpose.xlu0.b32.start [1/16] %v413, 128
  %708 = vxpose.xlu0.b32.cont [2/16] %v418, 128
  %709 = vxpose.xlu0.b32.cont [3/16] %v423, 128
  %710 = vxpose.xlu0.b32.cont [4/16] %v428, 128
  %711 = vxpose.xlu0.b32.cont [5/16] 0.0, 128
  %712 = vxpose.xlu0.b32.cont [6/16] 0.0, 128
  %713 = vxpose.xlu0.b32.cont [7/16] 0.0, 128
  %714 = vxpose.xlu0.b32.cont [8/16] 0.0, 128
  %715 = vxpose.xlu0.b32.cont [9/16] 0.0, 128
  %716 = vxpose.xlu0.b32.cont [10/16] 0.0, 128
  %717 = vxpose.xlu0.b32.cont [11/16] 0.0, 128
  %718 = vxpose.xlu0.b32.cont [12/16] 0.0, 128
  %719 = vxpose.xlu0.b32.cont [13/16] 0.0, 128
  %720 = vxpose.xlu0.b32.cont [14/16] 0.0, 128
  %721 = vxpose.xlu0.b32.cont [15/16] 0.0, 128
  %722 = vxpose.xlu0.b32.end [16/16] 0.0, 128
  %v723 = vpop.trf.xlu0
  %v724 = vpop.trf.xlu0
  %v725 = vpop.trf.xlu0
  %v726 = vpop.trf.xlu0
  %v727 = vpop.trf.xlu0
  %v728 = vpop.trf.xlu0
  %v729 = vpop.trf.xlu0
  %v730 = vpop.trf.xlu0
  %v731 = vpop.trf.xlu0
  %v732 = vpop.trf.xlu0
  %v733 = vpop.trf.xlu0
  %v734 = vpop.trf.xlu0
  %v735 = vpop.trf.xlu0
  %v736 = vpop.trf.xlu0
  %v737 = vpop.trf.xlu0
  %v738 = vpop.trf.xlu0
  %739 = vxpose.xlu0.b32.start [1/16] %v433, 128
  %740 = vxpose.xlu0.b32.cont [2/16] %v438, 128
  %741 = vxpose.xlu0.b32.cont [3/16] %v443, 128
  %742 = vxpose.xlu0.b32.cont [4/16] %v448, 128
  %743 = vxpose.xlu0.b32.cont [5/16] 0.0, 128
  %744 = vxpose.xlu0.b32.cont [6/16] 0.0, 128
  %745 = vxpose.xlu0.b32.cont [7/16] 0.0, 128
  %746 = vxpose.xlu0.b32.cont [8/16] 0.0, 128
  %747 = vxpose.xlu0.b32.cont [9/16] 0.0, 128
  %748 = vxpose.xlu0.b32.cont [10/16] 0.0, 128
  %749 = vxpose.xlu0.b32.cont [11/16] 0.0, 128
  %750 = vxpose.xlu0.b32.cont [12/16] 0.0, 128
  %751 = vxpose.xlu0.b32.cont [13/16] 0.0, 128
  %752 = vxpose.xlu0.b32.cont [14/16] 0.0, 128
  %753 = vxpose.xlu0.b32.cont [15/16] 0.0, 128
  %754 = vxpose.xlu0.b32.end [16/16] 0.0, 128
  %v755 = vpop.trf.xlu0
  %v756 = vpop.trf.xlu0
  %v757 = vpop.trf.xlu0
  %v758 = vpop.trf.xlu0
  %v759 = vpop.trf.xlu0
  %v760 = vpop.trf.xlu0
  %v761 = vpop.trf.xlu0
  %v762 = vpop.trf.xlu0
  %v763 = vpop.trf.xlu0
  %v764 = vpop.trf.xlu0
  %v765 = vpop.trf.xlu0
  %v766 = vpop.trf.xlu0
  %v767 = vpop.trf.xlu0
  %v768 = vpop.trf.xlu0
  %v769 = vpop.trf.xlu0
  %v770 = vpop.trf.xlu0
  %v772 = vsel %vm65, %v467, 0
  %v775 = vsel %vm65, %v468, 0
  %v778 = vsel %vm65, %v469, 0
  %v781 = vsel %vm65, %v470, 0
  %v784 = vsel %vm65, %v471, 0
  %v787 = vsel %vm65, %v472, 0
  %v790 = vsel %vm65, %v473, 0
  %v793 = vsel %vm65, %v474, 0
  %v796 = vsel %vm65, %v499, 0
  %v799 = vsel %vm65, %v500, 0
  %v802 = vsel %vm65, %v501, 0
  %v805 = vsel %vm65, %v502, 0
  %v808 = vsel %vm65, %v503, 0
  %v811 = vsel %vm65, %v504, 0
  %v814 = vsel %vm65, %v505, 0
  %v817 = vsel %vm65, %v506, 0
  %v820 = vsel %vm65, %v531, 0
  %v823 = vsel %vm65, %v532, 0
  %v826 = vsel %vm65, %v533, 0
  %v829 = vsel %vm65, %v534, 0
  %v832 = vsel %vm65, %v535, 0
  %v835 = vsel %vm65, %v536, 0
  %v838 = vsel %vm65, %v537, 0
  %v841 = vsel %vm65, %v538, 0
  %v844 = vsel %vm65, %v563, 0
  %v847 = vsel %vm65, %v564, 0
  %v850 = vsel %vm65, %v565, 0
  %v853 = vsel %vm65, %v566, 0
  %v856 = vsel %vm65, %v567, 0
  %v859 = vsel %vm65, %v568, 0
  %v862 = vsel %vm65, %v569, 0
  %v865 = vsel %vm65, %v570, 0
  %v868 = vsel %vm65, %v595, 0
  %v871 = vsel %vm65, %v596, 0
  %v874 = vsel %vm65, %v597, 0
  %v877 = vsel %vm65, %v598, 0
  %v880 = vsel %vm65, %v599, 0
  %v883 = vsel %vm65, %v600, 0
  %v886 = vsel %vm65, %v601, 0
  %v889 = vsel %vm65, %v602, 0
  %v892 = vsel %vm65, %v627, 0
  %v895 = vsel %vm65, %v628, 0
  %v898 = vsel %vm65, %v629, 0
  %v901 = vsel %vm65, %v630, 0
  %v904 = vsel %vm65, %v631, 0
  %v907 = vsel %vm65, %v632, 0
  %v910 = vsel %vm65, %v633, 0
  %v913 = vsel %vm65, %v634, 0
  %v916 = vsel %vm65, %v659, 0
  %v919 = vsel %vm65, %v660, 0
  %v922 = vsel %vm65, %v661, 0
  %v925 = vsel %vm65, %v662, 0
  %v928 = vsel %vm65, %v663, 0
  %v931 = vsel %vm65, %v664, 0
  %v934 = vsel %vm65, %v665, 0
  %v937 = vsel %vm65, %v666, 0
  %v940 = vsel %vm65, %v691, 0
  %v943 = vsel %vm65, %v692, 0
  %v946 = vsel %vm65, %v693, 0
  %v949 = vsel %vm65, %v694, 0
  %v952 = vsel %vm65, %v695, 0
  %v955 = vsel %vm65, %v696, 0
  %v958 = vsel %vm65, %v697, 0
  %v961 = vsel %vm65, %v698, 0
  %v964 = vsel %vm65, %v723, 0
  %v967 = vsel %vm65, %v724, 0
  %v970 = vsel %vm65, %v725, 0
  %v973 = vsel %vm65, %v726, 0
  %v976 = vsel %vm65, %v727, 0
  %v979 = vsel %vm65, %v728, 0
  %v982 = vsel %vm65, %v729, 0
  %v985 = vsel %vm65, %v730, 0
  %v988 = vsel %vm65, %v755, 0
  %v991 = vsel %vm65, %v756, 0
  %v994 = vsel %vm65, %v757, 0
  %v997 = vsel %vm65, %v758, 0
  %v1000 = vsel %vm65, %v759, 0
  %v1003 = vsel %vm65, %v760, 0
  %v1006 = vsel %vm65, %v761, 0
  %v1009 = vsel %vm65, %v762, 0
  %1011 = vmatprep.subr.mxu0 0.0
  %1012 = vmatpush1.msra.mxu0 0.0
  %1013 = vmatprep.subr.mxu0 0.0
  %1014 = vmatpush1.msra.mxu0 0.0
  %1015 = vmatprep.subr.mxu0 0.0
  %1016 = vmatpush1.msra.mxu0 0.0
  %1017 = vmatprep.subr.mxu0 0.0
  %1018 = vmatpush1.msra.mxu0 0.0
  %1019 = vmatprep.subr.mxu0 0.0
  %1020 = vmatpush1.msra.mxu0 0.0
  %1021 = vmatprep.subr.mxu0 0.0
  %1022 = vmatpush1.msra.mxu0 0.0
  %1023 = vmatprep.subr.mxu0 0.0
  %1024 = vmatpush1.msra.mxu0 0.0
  %1025 = vmatprep.subr.mxu0 0.0
  %1026 = vmatpush1.msra.mxu0 0.0
  %1027 = vmatprep.subr.mxu0 0.0
  %1028 = vmatpush1.msra.mxu0 0.0
  %1029 = vmatprep.subr.mxu0 0.0
  %1030 = vmatpush1.msra.mxu0 0.0
  %1031 = vmatprep.subr.mxu0 0.0
  %1032 = vmatpush1.msra.mxu0 0.0
  %1033 = vmatprep.subr.mxu0 0.0
  %1034 = vmatpush1.msra.mxu0 0.0
  %1035 = vmatprep.subr.mxu0 0.0
  %1036 = vmatpush1.msra.mxu0 %v20
  %1037 = vmatprep.subr.mxu0 0.0
  %1038 = vmatpush1.msra.mxu0 %v19
  %1039 = vmatprep.subr.mxu0 0.0
  %1040 = vmatpush1.msra.mxu0 %v18
  %1041 = vmatprep.subr.mxu0 0.0
  %1042 = vmatpush1.msra.mxu0 %v17
  %1043 = vmatprep.subr.mxu0 0.0
  %1044 = vmatpush2.msra.mxu0 0.0
  %1045 = vmatprep.subr.mxu0 0.0
  %1046 = vmatpush2.msra.mxu0 0.0
  %1047 = vmatprep.subr.mxu0 0.0
  %1048 = vmatpush2.msra.mxu0 0.0
  %1049 = vmatprep.subr.mxu0 0.0
  %1050 = vmatpush2.msra.mxu0 0.0
  %1051 = vmatprep.subr.mxu0 0.0
  %1052 = vmatpush2.msra.mxu0 0.0
  %1053 = vmatprep.subr.mxu0 0.0
  %1054 = vmatpush2.msra.mxu0 0.0
  %1055 = vmatprep.subr.mxu0 0.0
  %1056 = vmatpush2.msra.mxu0 0.0
  %1057 = vmatprep.subr.mxu0 0.0
  %1058 = vmatpush2.msra.mxu0 0.0
  %1059 = vmatprep.subr.mxu0 0.0
  %1060 = vmatpush2.msra.mxu0 0.0
  %1061 = vmatprep.subr.mxu0 0.0
  %1062 = vmatpush2.msra.mxu0 0.0
  %1063 = vmatprep.subr.mxu0 0.0
  %1064 = vmatpush2.msra.mxu0 0.0
  %1065 = vmatprep.subr.mxu0 0.0
  %1066 = vmatpush2.msra.mxu0 0.0
  %1067 = vmatprep.subr.mxu0 0.0
  %1068 = vmatpush2.msra.mxu0 0.0
  %1069 = vmatprep.subr.mxu0 0.0
  %1070 = vmatpush2.msra.mxu0 0.0
  %1071 = vmatprep.subr.mxu0 0.0
  %1072 = vmatpush2.msra.mxu0 0.0
  %1073 = vmatprep.subr.mxu0 0.0
  %1074 = vmatpush2.msra.mxu0 0.0
  %1075 = vmatprep.mubr.f32.mxu0 0.0
  %1076 = vmatmul.mubr.f32.gmra.mxu0 %v772
  %v1077 = vpop.f32.mrf.mxu0
  %v1078 = vadd.f32 0.0, %v1077
  %v1079 = vpop.f32.mrf.mxu0
  %1080 = vmatprep.mubr.f32.mxu0 0.0
  %1081 = vmatmul.mubr.f32.gmra.mxu0 %v775
  %v1082 = vpop.f32.mrf.mxu0
  %v1083 = vadd.f32 0.0, %v1082
  %v1084 = vpop.f32.mrf.mxu0
  %1085 = vmatprep.mubr.f32.mxu0 0.0
  %1086 = vmatmul.mubr.f32.gmra.mxu0 %v778
  %v1087 = vpop.f32.mrf.mxu0
  %v1088 = vadd.f32 0.0, %v1087
  %v1089 = vpop.f32.mrf.mxu0
  %1090 = vmatprep.mubr.f32.mxu0 0.0
  %1091 = vmatmul.mubr.f32.gmra.mxu0 %v781
  %v1092 = vpop.f32.mrf.mxu0
  %v1093 = vadd.f32 0.0, %v1092
  %v1094 = vpop.f32.mrf.mxu0
  %1095 = vmatprep.mubr.f32.mxu0 0.0
  %1096 = vmatmul.mubr.f32.gmra.mxu0 %v784
  %v1097 = vpop.f32.mrf.mxu0
  %v1098 = vadd.f32 0.0, %v1097
  %v1099 = vpop.f32.mrf.mxu0
  %1100 = vmatprep.mubr.f32.mxu0 0.0
  %1101 = vmatmul.mubr.f32.gmra.mxu0 %v787
  %v1102 = vpop.f32.mrf.mxu0
  %v1103 = vadd.f32 0.0, %v1102
  %v1104 = vpop.f32.mrf.mxu0
  %1105 = vmatprep.mubr.f32.mxu0 0.0
  %1106 = vmatmul.mubr.f32.gmra.mxu0 %v790
  %v1107 = vpop.f32.mrf.mxu0
  %v1108 = vadd.f32 0.0, %v1107
  %v1109 = vpop.f32.mrf.mxu0
  %1110 = vmatprep.mubr.f32.mxu0 0.0
  %1111 = vmatmul.mubr.f32.gmra.mxu0 %v793
  %v1112 = vpop.f32.mrf.mxu0
  %v1113 = vadd.f32 0.0, %v1112
  %v1114 = vpop.f32.mrf.mxu0
  %1115 = vmatprep.mubr.f32.mxu0 0.0
  %1116 = vmatmul.mubr.f32.gmra.mxu0 %v796
  %v1117 = vpop.f32.mrf.mxu0
  %v1118 = vadd.f32 0.0, %v1117
  %v1119 = vpop.f32.mrf.mxu0
  %1120 = vmatprep.mubr.f32.mxu0 0.0
  %1121 = vmatmul.mubr.f32.gmra.mxu0 %v799
  %v1122 = vpop.f32.mrf.mxu0
  %v1123 = vadd.f32 0.0, %v1122
  %v1124 = vpop.f32.mrf.mxu0
  %1125 = vmatprep.mubr.f32.mxu0 0.0
  %1126 = vmatmul.mubr.f32.gmra.mxu0 %v802
  %v1127 = vpop.f32.mrf.mxu0
  %v1128 = vadd.f32 0.0, %v1127
  %v1129 = vpop.f32.mrf.mxu0
  %1130 = vmatprep.mubr.f32.mxu0 0.0
  %1131 = vmatmul.mubr.f32.gmra.mxu0 %v805
  %v1132 = vpop.f32.mrf.mxu0
  %v1133 = vadd.f32 0.0, %v1132
  %v1134 = vpop.f32.mrf.mxu0
  %1135 = vmatprep.mubr.f32.mxu0 0.0
  %1136 = vmatmul.mubr.f32.gmra.mxu0 %v808
  %v1137 = vpop.f32.mrf.mxu0
  %v1138 = vadd.f32 0.0, %v1137
  %v1139 = vpop.f32.mrf.mxu0
  %1140 = vmatprep.mubr.f32.mxu0 0.0
  %1141 = vmatmul.mubr.f32.gmra.mxu0 %v811
  %v1142 = vpop.f32.mrf.mxu0
  %v1143 = vadd.f32 0.0, %v1142
  %v1144 = vpop.f32.mrf.mxu0
  %1145 = vmatprep.mubr.f32.mxu0 0.0
  %1146 = vmatmul.mubr.f32.gmra.mxu0 %v814
  %v1147 = vpop.f32.mrf.mxu0
  %v1148 = vadd.f32 0.0, %v1147
  %v1149 = vpop.f32.mrf.mxu0
  %1150 = vmatprep.mubr.f32.mxu0 0.0
  %1151 = vmatmul.mubr.f32.gmra.mxu0 %v817
  %v1152 = vpop.f32.mrf.mxu0
  %v1153 = vadd.f32 0.0, %v1152
  %v1154 = vpop.f32.mrf.mxu0
  %1155 = vmatprep.mubr.f32.mxu0 0.0
  %1156 = vmatmul.mubr.f32.gmra.mxu0 %v820
  %v1157 = vpop.f32.mrf.mxu0
  %v1158 = vadd.f32 0.0, %v1157
  %v1159 = vpop.f32.mrf.mxu0
  %1160 = vmatprep.mubr.f32.mxu0 0.0
  %1161 = vmatmul.mubr.f32.gmra.mxu0 %v823
  %v1162 = vpop.f32.mrf.mxu0
  %v1163 = vadd.f32 0.0, %v1162
  %v1164 = vpop.f32.mrf.mxu0
  %1165 = vmatprep.mubr.f32.mxu0 0.0
  %1166 = vmatmul.mubr.f32.gmra.mxu0 %v826
  %v1167 = vpop.f32.mrf.mxu0
  %v1168 = vadd.f32 0.0, %v1167
  %v1169 = vpop.f32.mrf.mxu0
  %1170 = vmatprep.mubr.f32.mxu0 0.0
  %1171 = vmatmul.mubr.f32.gmra.mxu0 %v829
  %v1172 = vpop.f32.mrf.mxu0
  %v1173 = vadd.f32 0.0, %v1172
  %v1174 = vpop.f32.mrf.mxu0
  %1175 = vmatprep.mubr.f32.mxu0 0.0
  %1176 = vmatmul.mubr.f32.gmra.mxu0 %v832
  %v1177 = vpop.f32.mrf.mxu0
  %v1178 = vadd.f32 0.0, %v1177
  %v1179 = vpop.f32.mrf.mxu0
  %1180 = vmatprep.mubr.f32.mxu0 0.0
  %1181 = vmatmul.mubr.f32.gmra.mxu0 %v835
  %v1182 = vpop.f32.mrf.mxu0
  %v1183 = vadd.f32 0.0, %v1182
  %v1184 = vpop.f32.mrf.mxu0
  %1185 = vmatprep.mubr.f32.mxu0 0.0
  %1186 = vmatmul.mubr.f32.gmra.mxu0 %v838
  %v1187 = vpop.f32.mrf.mxu0
  %v1188 = vadd.f32 0.0, %v1187
  %v1189 = vpop.f32.mrf.mxu0
  %1190 = vmatprep.mubr.f32.mxu0 0.0
  %1191 = vmatmul.mubr.f32.gmra.mxu0 %v841
  %v1192 = vpop.f32.mrf.mxu0
  %v1193 = vadd.f32 0.0, %v1192
  %v1194 = vpop.f32.mrf.mxu0
  %1195 = vmatprep.mubr.f32.mxu0 0.0
  %1196 = vmatmul.mubr.f32.gmra.mxu0 %v844
  %v1197 = vpop.f32.mrf.mxu0
  %v1198 = vadd.f32 0.0, %v1197
  %v1199 = vpop.f32.mrf.mxu0
  %1200 = vmatprep.mubr.f32.mxu0 0.0
  %1201 = vmatmul.mubr.f32.gmra.mxu0 %v847
  %v1202 = vpop.f32.mrf.mxu0
  %v1203 = vadd.f32 0.0, %v1202
  %v1204 = vpop.f32.mrf.mxu0
  %1205 = vmatprep.mubr.f32.mxu0 0.0
  %1206 = vmatmul.mubr.f32.gmra.mxu0 %v850
  %v1207 = vpop.f32.mrf.mxu0
  %v1208 = vadd.f32 0.0, %v1207
  %v1209 = vpop.f32.mrf.mxu0
  %1210 = vmatprep.mubr.f32.mxu0 0.0
  %1211 = vmatmul.mubr.f32.gmra.mxu0 %v853
  %v1212 = vpop.f32.mrf.mxu0
  %v1213 = vadd.f32 0.0, %v1212
  %v1214 = vpop.f32.mrf.mxu0
  %1215 = vmatprep.mubr.f32.mxu0 0.0
  %1216 = vmatmul.mubr.f32.gmra.mxu0 %v856
  %v1217 = vpop.f32.mrf.mxu0
  %v1218 = vadd.f32 0.0, %v1217
  %v1219 = vpop.f32.mrf.mxu0
  %1220 = vmatprep.mubr.f32.mxu0 0.0
  %1221 = vmatmul.mubr.f32.gmra.mxu0 %v859
  %v1222 = vpop.f32.mrf.mxu0
  %v1223 = vadd.f32 0.0, %v1222
  %v1224 = vpop.f32.mrf.mxu0
  %1225 = vmatprep.mubr.f32.mxu0 0.0
  %1226 = vmatmul.mubr.f32.gmra.mxu0 %v862
  %v1227 = vpop.f32.mrf.mxu0
  %v1228 = vadd.f32 0.0, %v1227
  %v1229 = vpop.f32.mrf.mxu0
  %1230 = vmatprep.mubr.f32.mxu0 0.0
  %1231 = vmatmul.mubr.f32.gmra.mxu0 %v865
  %v1232 = vpop.f32.mrf.mxu0
  %v1233 = vadd.f32 0.0, %v1232
  %v1234 = vpop.f32.mrf.mxu0
  %1235 = vmatprep.mubr.f32.mxu0 0.0
  %1236 = vmatmul.mubr.f32.gmra.mxu0 %v868
  %v1237 = vpop.f32.mrf.mxu0
  %v1238 = vadd.f32 0.0, %v1237
  %v1239 = vpop.f32.mrf.mxu0
  %1240 = vmatprep.mubr.f32.mxu0 0.0
  %1241 = vmatmul.mubr.f32.gmra.mxu0 %v871
  %v1242 = vpop.f32.mrf.mxu0
  %v1243 = vadd.f32 0.0, %v1242
  %v1244 = vpop.f32.mrf.mxu0
  %1245 = vmatprep.mubr.f32.mxu0 0.0
  %1246 = vmatmul.mubr.f32.gmra.mxu0 %v874
  %v1247 = vpop.f32.mrf.mxu0
  %v1248 = vadd.f32 0.0, %v1247
  %v1249 = vpop.f32.mrf.mxu0
  %1250 = vmatprep.mubr.f32.mxu0 0.0
  %1251 = vmatmul.mubr.f32.gmra.mxu0 %v877
  %v1252 = vpop.f32.mrf.mxu0
  %v1253 = vadd.f32 0.0, %v1252
  %v1254 = vpop.f32.mrf.mxu0
  %1255 = vmatprep.mubr.f32.mxu0 0.0
  %1256 = vmatmul.mubr.f32.gmra.mxu0 %v880
  %v1257 = vpop.f32.mrf.mxu0
  %v1258 = vadd.f32 0.0, %v1257
  %v1259 = vpop.f32.mrf.mxu0
  %1260 = vmatprep.mubr.f32.mxu0 0.0
  %1261 = vmatmul.mubr.f32.gmra.mxu0 %v883
  %v1262 = vpop.f32.mrf.mxu0
  %v1263 = vadd.f32 0.0, %v1262
  %v1264 = vpop.f32.mrf.mxu0
  %1265 = vmatprep.mubr.f32.mxu0 0.0
  %1266 = vmatmul.mubr.f32.gmra.mxu0 %v886
  %v1267 = vpop.f32.mrf.mxu0
  %v1268 = vadd.f32 0.0, %v1267
  %v1269 = vpop.f32.mrf.mxu0
  %1270 = vmatprep.mubr.f32.mxu0 0.0
  %1271 = vmatmul.mubr.f32.gmra.mxu0 %v889
  %v1272 = vpop.f32.mrf.mxu0
  %v1273 = vadd.f32 0.0, %v1272
  %v1274 = vpop.f32.mrf.mxu0
  %1275 = vmatprep.mubr.f32.mxu0 0.0
  %1276 = vmatmul.mubr.f32.gmra.mxu0 %v892
  %v1277 = vpop.f32.mrf.mxu0
  %v1278 = vadd.f32 0.0, %v1277
  %v1279 = vpop.f32.mrf.mxu0
  %1280 = vmatprep.mubr.f32.mxu0 0.0
  %1281 = vmatmul.mubr.f32.gmra.mxu0 %v895
  %v1282 = vpop.f32.mrf.mxu0
  %v1283 = vadd.f32 0.0, %v1282
  %v1284 = vpop.f32.mrf.mxu0
  %1285 = vmatprep.mubr.f32.mxu0 0.0
  %1286 = vmatmul.mubr.f32.gmra.mxu0 %v898
  %v1287 = vpop.f32.mrf.mxu0
  %v1288 = vadd.f32 0.0, %v1287
  %v1289 = vpop.f32.mrf.mxu0
  %1290 = vmatprep.mubr.f32.mxu0 0.0
  %1291 = vmatmul.mubr.f32.gmra.mxu0 %v901
  %v1292 = vpop.f32.mrf.mxu0
  %v1293 = vadd.f32 0.0, %v1292
  %v1294 = vpop.f32.mrf.mxu0
  %1295 = vmatprep.mubr.f32.mxu0 0.0
  %1296 = vmatmul.mubr.f32.gmra.mxu0 %v904
  %v1297 = vpop.f32.mrf.mxu0
  %v1298 = vadd.f32 0.0, %v1297
  %v1299 = vpop.f32.mrf.mxu0
  %1300 = vmatprep.mubr.f32.mxu0 0.0
  %1301 = vmatmul.mubr.f32.gmra.mxu0 %v907
  %v1302 = vpop.f32.mrf.mxu0
  %v1303 = vadd.f32 0.0, %v1302
  %v1304 = vpop.f32.mrf.mxu0
  %1305 = vmatprep.mubr.f32.mxu0 0.0
  %1306 = vmatmul.mubr.f32.gmra.mxu0 %v910
  %v1307 = vpop.f32.mrf.mxu0
  %v1308 = vadd.f32 0.0, %v1307
  %v1309 = vpop.f32.mrf.mxu0
  %1310 = vmatprep.mubr.f32.mxu0 0.0
  %1311 = vmatmul.mubr.f32.gmra.mxu0 %v913
  %v1312 = vpop.f32.mrf.mxu0
  %v1313 = vadd.f32 0.0, %v1312
  %v1314 = vpop.f32.mrf.mxu0
  %1315 = vmatprep.mubr.f32.mxu0 0.0
  %1316 = vmatmul.mubr.f32.gmra.mxu0 %v916
  %v1317 = vpop.f32.mrf.mxu0
  %v1318 = vadd.f32 0.0, %v1317
  %v1319 = vpop.f32.mrf.mxu0
  %1320 = vmatprep.mubr.f32.mxu0 0.0
  %1321 = vmatmul.mubr.f32.gmra.mxu0 %v919
  %v1322 = vpop.f32.mrf.mxu0
  %v1323 = vadd.f32 0.0, %v1322
  %v1324 = vpop.f32.mrf.mxu0
  %1325 = vmatprep.mubr.f32.mxu0 0.0
  %1326 = vmatmul.mubr.f32.gmra.mxu0 %v922
  %v1327 = vpop.f32.mrf.mxu0
  %v1328 = vadd.f32 0.0, %v1327
  %v1329 = vpop.f32.mrf.mxu0
  %1330 = vmatprep.mubr.f32.mxu0 0.0
  %1331 = vmatmul.mubr.f32.gmra.mxu0 %v925
  %v1332 = vpop.f32.mrf.mxu0
  %v1333 = vadd.f32 0.0, %v1332
  %v1334 = vpop.f32.mrf.mxu0
  %1335 = vmatprep.mubr.f32.mxu0 0.0
  %1336 = vmatmul.mubr.f32.gmra.mxu0 %v928
  %v1337 = vpop.f32.mrf.mxu0
  %v1338 = vadd.f32 0.0, %v1337
  %v1339 = vpop.f32.mrf.mxu0
  %1340 = vmatprep.mubr.f32.mxu0 0.0
  %1341 = vmatmul.mubr.f32.gmra.mxu0 %v931
  %v1342 = vpop.f32.mrf.mxu0
  %v1343 = vadd.f32 0.0, %v1342
  %v1344 = vpop.f32.mrf.mxu0
  %1345 = vmatprep.mubr.f32.mxu0 0.0
  %1346 = vmatmul.mubr.f32.gmra.mxu0 %v934
  %v1347 = vpop.f32.mrf.mxu0
  %v1348 = vadd.f32 0.0, %v1347
  %v1349 = vpop.f32.mrf.mxu0
  %1350 = vmatprep.mubr.f32.mxu0 0.0
  %1351 = vmatmul.mubr.f32.gmra.mxu0 %v937
  %v1352 = vpop.f32.mrf.mxu0
  %v1353 = vadd.f32 0.0, %v1352
  %v1354 = vpop.f32.mrf.mxu0
  %1355 = vmatprep.mubr.f32.mxu0 0.0
  %1356 = vmatmul.mubr.f32.gmra.mxu0 %v940
  %v1357 = vpop.f32.mrf.mxu0
  %v1358 = vadd.f32 0.0, %v1357
  %v1359 = vpop.f32.mrf.mxu0
  %1360 = vmatprep.mubr.f32.mxu0 0.0
  %1361 = vmatmul.mubr.f32.gmra.mxu0 %v943
  %v1362 = vpop.f32.mrf.mxu0
  %v1363 = vadd.f32 0.0, %v1362
  %v1364 = vpop.f32.mrf.mxu0
  %1365 = vmatprep.mubr.f32.mxu0 0.0
  %1366 = vmatmul.mubr.f32.gmra.mxu0 %v946
  %v1367 = vpop.f32.mrf.mxu0
  %v1368 = vadd.f32 0.0, %v1367
  %v1369 = vpop.f32.mrf.mxu0
  %1370 = vmatprep.mubr.f32.mxu0 0.0
  %1371 = vmatmul.mubr.f32.gmra.mxu0 %v949
  %v1372 = vpop.f32.mrf.mxu0
  %v1373 = vadd.f32 0.0, %v1372
  %v1374 = vpop.f32.mrf.mxu0
  %1375 = vmatprep.mubr.f32.mxu0 0.0
  %1376 = vmatmul.mubr.f32.gmra.mxu0 %v952
  %v1377 = vpop.f32.mrf.mxu0
  %v1378 = vadd.f32 0.0, %v1377
  %v1379 = vpop.f32.mrf.mxu0
  %1380 = vmatprep.mubr.f32.mxu0 0.0
  %1381 = vmatmul.mubr.f32.gmra.mxu0 %v955
  %v1382 = vpop.f32.mrf.mxu0
  %v1383 = vadd.f32 0.0, %v1382
  %v1384 = vpop.f32.mrf.mxu0
  %1385 = vmatprep.mubr.f32.mxu0 0.0
  %1386 = vmatmul.mubr.f32.gmra.mxu0 %v958
  %v1387 = vpop.f32.mrf.mxu0
  %v1388 = vadd.f32 0.0, %v1387
  %v1389 = vpop.f32.mrf.mxu0
  %1390 = vmatprep.mubr.f32.mxu0 0.0
  %1391 = vmatmul.mubr.f32.gmra.mxu0 %v961
  %v1392 = vpop.f32.mrf.mxu0
  %v1393 = vadd.f32 0.0, %v1392
  %v1394 = vpop.f32.mrf.mxu0
  %1395 = vmatprep.mubr.f32.mxu0 0.0
  %1396 = vmatmul.mubr.f32.gmra.mxu0 %v964
  %v1397 = vpop.f32.mrf.mxu0
  %v1398 = vadd.f32 0.0, %v1397
  %v1399 = vpop.f32.mrf.mxu0
  %1400 = vmatprep.mubr.f32.mxu0 0.0
  %1401 = vmatmul.mubr.f32.gmra.mxu0 %v967
  %v1402 = vpop.f32.mrf.mxu0
  %v1403 = vadd.f32 0.0, %v1402
  %v1404 = vpop.f32.mrf.mxu0
  %1405 = vmatprep.mubr.f32.mxu0 0.0
  %1406 = vmatmul.mubr.f32.gmra.mxu0 %v970
  %v1407 = vpop.f32.mrf.mxu0
  %v1408 = vadd.f32 0.0, %v1407
  %v1409 = vpop.f32.mrf.mxu0
  %1410 = vmatprep.mubr.f32.mxu0 0.0
  %1411 = vmatmul.mubr.f32.gmra.mxu0 %v973
  %v1412 = vpop.f32.mrf.mxu0
  %v1413 = vadd.f32 0.0, %v1412
  %v1414 = vpop.f32.mrf.mxu0
  %1415 = vmatprep.mubr.f32.mxu0 0.0
  %1416 = vmatmul.mubr.f32.gmra.mxu0 %v976
  %v1417 = vpop.f32.mrf.mxu0
  %v1418 = vadd.f32 0.0, %v1417
  %v1419 = vpop.f32.mrf.mxu0
  %1420 = vmatprep.mubr.f32.mxu0 0.0
  %1421 = vmatmul.mubr.f32.gmra.mxu0 %v979
  %v1422 = vpop.f32.mrf.mxu0
  %v1423 = vadd.f32 0.0, %v1422
  %v1424 = vpop.f32.mrf.mxu0
  %1425 = vmatprep.mubr.f32.mxu0 0.0
  %1426 = vmatmul.mubr.f32.gmra.mxu0 %v982
  %v1427 = vpop.f32.mrf.mxu0
  %v1428 = vadd.f32 0.0, %v1427
  %v1429 = vpop.f32.mrf.mxu0
  %1430 = vmatprep.mubr.f32.mxu0 0.0
  %1431 = vmatmul.mubr.f32.gmra.mxu0 %v985
  %v1432 = vpop.f32.mrf.mxu0
  %v1433 = vadd.f32 0.0, %v1432
  %v1434 = vpop.f32.mrf.mxu0
  %1435 = vmatprep.mubr.f32.mxu0 0.0
  %1436 = vmatmul.mubr.f32.gmra.mxu0 %v988
  %v1437 = vpop.f32.mrf.mxu0
  %v1438 = vadd.f32 0.0, %v1437
  %v1439 = vpop.f32.mrf.mxu0
  %1440 = vmatprep.mubr.f32.mxu0 0.0
  %1441 = vmatmul.mubr.f32.gmra.mxu0 %v991
  %v1442 = vpop.f32.mrf.mxu0
  %v1443 = vadd.f32 0.0, %v1442
  %v1444 = vpop.f32.mrf.mxu0
  %1445 = vmatprep.mubr.f32.mxu0 0.0
  %1446 = vmatmul.mubr.f32.gmra.mxu0 %v994
  %v1447 = vpop.f32.mrf.mxu0
  %v1448 = vadd.f32 0.0, %v1447
  %v1449 = vpop.f32.mrf.mxu0
  %1450 = vmatprep.mubr.f32.mxu0 0.0
  %1451 = vmatmul.mubr.f32.gmra.mxu0 %v997
  %v1452 = vpop.f32.mrf.mxu0
  %v1453 = vadd.f32 0.0, %v1452
  %v1454 = vpop.f32.mrf.mxu0
  %1455 = vmatprep.mubr.f32.mxu0 0.0
  %1456 = vmatmul.mubr.f32.gmra.mxu0 %v1000
  %v1457 = vpop.f32.mrf.mxu0
  %v1458 = vadd.f32 0.0, %v1457
  %v1459 = vpop.f32.mrf.mxu0
  %1460 = vmatprep.mubr.f32.mxu0 0.0
  %1461 = vmatmul.mubr.f32.gmra.mxu0 %v1003
  %v1462 = vpop.f32.mrf.mxu0
  %v1463 = vadd.f32 0.0, %v1462
  %v1464 = vpop.f32.mrf.mxu0
  %1465 = vmatprep.mubr.f32.mxu0 0.0
  %1466 = vmatmul.mubr.f32.gmra.mxu0 %v1006
  %v1467 = vpop.f32.mrf.mxu0
  %v1468 = vadd.f32 0.0, %v1467
  %v1469 = vpop.f32.mrf.mxu0
  %1470 = vmatprep.mubr.f32.mxu0 0.0
  %1471 = vmatmul.mubr.f32.gmra.mxu0 %v1009
  %v1472 = vpop.f32.mrf.mxu0
  %v1473 = vadd.f32 0.0, %v1472
  %v1474 = vpop.f32.mrf.mxu0
  %1475 = vdwg.mxu0
  %1516 = vrot.lane.b32.xlu0 %v1098, 96
  %v1517 = vpop.permute.xlu0 %1516
  %1518 = vrot.lane.b32.xlu0 %v1103, 96
  %v1519 = vpop.permute.xlu0 %1518
  %1520 = vrot.lane.b32.xlu0 %v1108, 96
  %v1521 = vpop.permute.xlu0 %1520
  %1522 = vrot.lane.b32.xlu0 %v1113, 96
  %v1523 = vpop.permute.xlu0 %1522
  %1524 = vrot.lane.b32.xlu0 %v1138, 96
  %v1525 = vpop.permute.xlu0 %1524
  %1526 = vrot.lane.b32.xlu0 %v1143, 96
  %v1527 = vpop.permute.xlu0 %1526
  %1528 = vrot.lane.b32.xlu0 %v1148, 96
  %v1529 = vpop.permute.xlu0 %1528
  %1530 = vrot.lane.b32.xlu0 %v1153, 96
  %v1531 = vpop.permute.xlu0 %1530
  %1532 = vrot.lane.b32.xlu0 %v1178, 96
  %v1533 = vpop.permute.xlu0 %1532
  %1534 = vrot.lane.b32.xlu0 %v1183, 96
  %v1535 = vpop.permute.xlu0 %1534
  %1536 = vrot.lane.b32.xlu0 %v1188, 96
  %v1537 = vpop.permute.xlu0 %1536
  %1538 = vrot.lane.b32.xlu0 %v1193, 96
  %v1539 = vpop.permute.xlu0 %1538
  %1540 = vrot.lane.b32.xlu0 %v1218, 96
  %v1541 = vpop.permute.xlu0 %1540
  %1542 = vrot.lane.b32.xlu0 %v1223, 96
  %v1543 = vpop.permute.xlu0 %1542
  %1544 = vrot.lane.b32.xlu0 %v1228, 96
  %v1545 = vpop.permute.xlu0 %1544
  %1546 = vrot.lane.b32.xlu0 %v1233, 96
  %v1547 = vpop.permute.xlu0 %1546
  %1548 = vrot.lane.b32.xlu0 %v1258, 96
  %v1549 = vpop.permute.xlu0 %1548
  %1550 = vrot.lane.b32.xlu0 %v1263, 96
  %v1551 = vpop.permute.xlu0 %1550
  %1552 = vrot.lane.b32.xlu0 %v1268, 96
  %v1553 = vpop.permute.xlu0 %1552
  %1554 = vrot.lane.b32.xlu0 %v1273, 96
  %v1555 = vpop.permute.xlu0 %1554
  %1556 = vrot.lane.b32.xlu0 %v1298, 96
  %v1557 = vpop.permute.xlu0 %1556
  %1558 = vrot.lane.b32.xlu0 %v1303, 96
  %v1559 = vpop.permute.xlu0 %1558
  %1560 = vrot.lane.b32.xlu0 %v1308, 96
  %v1561 = vpop.permute.xlu0 %1560
  %1562 = vrot.lane.b32.xlu0 %v1313, 96
  %v1563 = vpop.permute.xlu0 %1562
  %1564 = vrot.lane.b32.xlu0 %v1338, 96
  %v1565 = vpop.permute.xlu0 %1564
  %1566 = vrot.lane.b32.xlu0 %v1343, 96
  %v1567 = vpop.permute.xlu0 %1566
  %1568 = vrot.lane.b32.xlu0 %v1348, 96
  %v1569 = vpop.permute.xlu0 %1568
  %1570 = vrot.lane.b32.xlu0 %v1353, 96
  %v1571 = vpop.permute.xlu0 %1570
  %1572 = vrot.lane.b32.xlu0 %v1378, 96
  %v1573 = vpop.permute.xlu0 %1572
  %1574 = vrot.lane.b32.xlu0 %v1383, 96
  %v1575 = vpop.permute.xlu0 %1574
  %1576 = vrot.lane.b32.xlu0 %v1388, 96
  %v1577 = vpop.permute.xlu0 %1576
  %1578 = vrot.lane.b32.xlu0 %v1393, 96
  %v1579 = vpop.permute.xlu0 %1578
  %1580 = vrot.lane.b32.xlu0 %v1418, 96
  %v1581 = vpop.permute.xlu0 %1580
  %1582 = vrot.lane.b32.xlu0 %v1423, 96
  %v1583 = vpop.permute.xlu0 %1582
  %1584 = vrot.lane.b32.xlu0 %v1428, 96
  %v1585 = vpop.permute.xlu0 %1584
  %1586 = vrot.lane.b32.xlu0 %v1433, 96
  %v1587 = vpop.permute.xlu0 %1586
  %1588 = vrot.lane.b32.xlu0 %v1458, 96
  %v1589 = vpop.permute.xlu0 %1588
  %1590 = vrot.lane.b32.xlu0 %v1463, 96
  %v1591 = vpop.permute.xlu0 %1590
  %1592 = vrot.lane.b32.xlu0 %v1468, 96
  %v1593 = vpop.permute.xlu0 %1592
  %1594 = vrot.lane.b32.xlu0 %v1473, 96
  %v1595 = vpop.permute.xlu0 %1594
  %v1636 = vsub.f32 %v1078, %v1517
  %v1637 = vsub.f32 %v1083, %v1519
  %v1638 = vsub.f32 %v1088, %v1521
  %v1639 = vsub.f32 %v1093, %v1523
  %v1640 = vsub.f32 %v1118, %v1525
  %v1641 = vsub.f32 %v1123, %v1527
  %v1642 = vsub.f32 %v1128, %v1529
  %v1643 = vsub.f32 %v1133, %v1531
  %v1644 = vsub.f32 %v1158, %v1533
  %v1645 = vsub.f32 %v1163, %v1535
  %v1646 = vsub.f32 %v1168, %v1537
  %v1647 = vsub.f32 %v1173, %v1539
  %v1648 = vsub.f32 %v1198, %v1541
  %v1649 = vsub.f32 %v1203, %v1543
  %v1650 = vsub.f32 %v1208, %v1545
  %v1651 = vsub.f32 %v1213, %v1547
  %v1652 = vsub.f32 %v1238, %v1549
  %v1653 = vsub.f32 %v1243, %v1551
  %v1654 = vsub.f32 %v1248, %v1553
  %v1655 = vsub.f32 %v1253, %v1555
  %v1656 = vsub.f32 %v1278, %v1557
  %v1657 = vsub.f32 %v1283, %v1559
  %v1658 = vsub.f32 %v1288, %v1561
  %v1659 = vsub.f32 %v1293, %v1563
  %v1660 = vsub.f32 %v1318, %v1565
  %v1661 = vsub.f32 %v1323, %v1567
  %v1662 = vsub.f32 %v1328, %v1569
  %v1663 = vsub.f32 %v1333, %v1571
  %v1664 = vsub.f32 %v1358, %v1573
  %v1665 = vsub.f32 %v1363, %v1575
  %v1666 = vsub.f32 %v1368, %v1577
  %v1667 = vsub.f32 %v1373, %v1579
  %v1668 = vsub.f32 %v1398, %v1581
  %v1669 = vsub.f32 %v1403, %v1583
  %v1670 = vsub.f32 %v1408, %v1585
  %v1671 = vsub.f32 %v1413, %v1587
  %v1672 = vsub.f32 %v1438, %v1589
  %v1673 = vsub.f32 %v1443, %v1591
  %v1674 = vsub.f32 %v1448, %v1593
  %v1675 = vsub.f32 %v1453, %v1595
  %1676 = vrot.lane.b32.xlu0 %v1098, 32
  %v1677 = vpop.permute.xlu0 %1676
  %1678 = vrot.lane.b32.xlu0 %v1103, 32
  %v1679 = vpop.permute.xlu0 %1678
  %1680 = vrot.lane.b32.xlu0 %v1108, 32
  %v1681 = vpop.permute.xlu0 %1680
  %1682 = vrot.lane.b32.xlu0 %v1113, 32
  %v1683 = vpop.permute.xlu0 %1682
  %1684 = vrot.lane.b32.xlu0 %v1138, 32
  %v1685 = vpop.permute.xlu0 %1684
  %1686 = vrot.lane.b32.xlu0 %v1143, 32
  %v1687 = vpop.permute.xlu0 %1686
  %1688 = vrot.lane.b32.xlu0 %v1148, 32
  %v1689 = vpop.permute.xlu0 %1688
  %1690 = vrot.lane.b32.xlu0 %v1153, 32
  %v1691 = vpop.permute.xlu0 %1690
  %1692 = vrot.lane.b32.xlu0 %v1178, 32
  %v1693 = vpop.permute.xlu0 %1692
  %1694 = vrot.lane.b32.xlu0 %v1183, 32
  %v1695 = vpop.permute.xlu0 %1694
  %1696 = vrot.lane.b32.xlu0 %v1188, 32
  %v1697 = vpop.permute.xlu0 %1696
  %1698 = vrot.lane.b32.xlu0 %v1193, 32
  %v1699 = vpop.permute.xlu0 %1698
  %1700 = vrot.lane.b32.xlu0 %v1218, 32
  %v1701 = vpop.permute.xlu0 %1700
  %1702 = vrot.lane.b32.xlu0 %v1223, 32
  %v1703 = vpop.permute.xlu0 %1702
  %1704 = vrot.lane.b32.xlu0 %v1228, 32
  %v1705 = vpop.permute.xlu0 %1704
  %1706 = vrot.lane.b32.xlu0 %v1233, 32
  %v1707 = vpop.permute.xlu0 %1706
  %1708 = vrot.lane.b32.xlu0 %v1258, 32
  %v1709 = vpop.permute.xlu0 %1708
  %1710 = vrot.lane.b32.xlu0 %v1263, 32
  %v1711 = vpop.permute.xlu0 %1710
  %1712 = vrot.lane.b32.xlu0 %v1268, 32
  %v1713 = vpop.permute.xlu0 %1712
  %1714 = vrot.lane.b32.xlu0 %v1273, 32
  %v1715 = vpop.permute.xlu0 %1714
  %1716 = vrot.lane.b32.xlu0 %v1298, 32
  %v1717 = vpop.permute.xlu0 %1716
  %1718 = vrot.lane.b32.xlu0 %v1303, 32
  %v1719 = vpop.permute.xlu0 %1718
  %1720 = vrot.lane.b32.xlu0 %v1308, 32
  %v1721 = vpop.permute.xlu0 %1720
  %1722 = vrot.lane.b32.xlu0 %v1313, 32
  %v1723 = vpop.permute.xlu0 %1722
  %1724 = vrot.lane.b32.xlu0 %v1338, 32
  %v1725 = vpop.permute.xlu0 %1724
  %1726 = vrot.lane.b32.xlu0 %v1343, 32
  %v1727 = vpop.permute.xlu0 %1726
  %1728 = vrot.lane.b32.xlu0 %v1348, 32
  %v1729 = vpop.permute.xlu0 %1728
  %1730 = vrot.lane.b32.xlu0 %v1353, 32
  %v1731 = vpop.permute.xlu0 %1730
  %1732 = vrot.lane.b32.xlu0 %v1378, 32
  %v1733 = vpop.permute.xlu0 %1732
  %1734 = vrot.lane.b32.xlu0 %v1383, 32
  %v1735 = vpop.permute.xlu0 %1734
  %1736 = vrot.lane.b32.xlu0 %v1388, 32
  %v1737 = vpop.permute.xlu0 %1736
  %1738 = vrot.lane.b32.xlu0 %v1393, 32
  %v1739 = vpop.permute.xlu0 %1738
  %1740 = vrot.lane.b32.xlu0 %v1418, 32
  %v1741 = vpop.permute.xlu0 %1740
  %1742 = vrot.lane.b32.xlu0 %v1423, 32
  %v1743 = vpop.permute.xlu0 %1742
  %1744 = vrot.lane.b32.xlu0 %v1428, 32
  %v1745 = vpop.permute.xlu0 %1744
  %1746 = vrot.lane.b32.xlu0 %v1433, 32
  %v1747 = vpop.permute.xlu0 %1746
  %1748 = vrot.lane.b32.xlu0 %v1458, 32
  %v1749 = vpop.permute.xlu0 %1748
  %1750 = vrot.lane.b32.xlu0 %v1463, 32
  %v1751 = vpop.permute.xlu0 %1750
  %1752 = vrot.lane.b32.xlu0 %v1468, 32
  %v1753 = vpop.permute.xlu0 %1752
  %1754 = vrot.lane.b32.xlu0 %v1473, 32
  %v1755 = vpop.permute.xlu0 %1754
  %v1796 = vadd.f32 %v1078, %v1677
  %v1797 = vadd.f32 %v1083, %v1679
  %v1798 = vadd.f32 %v1088, %v1681
  %v1799 = vadd.f32 %v1093, %v1683
  %v1800 = vadd.f32 %v1118, %v1685
  %v1801 = vadd.f32 %v1123, %v1687
  %v1802 = vadd.f32 %v1128, %v1689
  %v1803 = vadd.f32 %v1133, %v1691
  %v1804 = vadd.f32 %v1158, %v1693
  %v1805 = vadd.f32 %v1163, %v1695
  %v1806 = vadd.f32 %v1168, %v1697
  %v1807 = vadd.f32 %v1173, %v1699
  %v1808 = vadd.f32 %v1198, %v1701
  %v1809 = vadd.f32 %v1203, %v1703
  %v1810 = vadd.f32 %v1208, %v1705
  %v1811 = vadd.f32 %v1213, %v1707
  %v1812 = vadd.f32 %v1238, %v1709
  %v1813 = vadd.f32 %v1243, %v1711
  %v1814 = vadd.f32 %v1248, %v1713
  %v1815 = vadd.f32 %v1253, %v1715
  %v1816 = vadd.f32 %v1278, %v1717
  %v1817 = vadd.f32 %v1283, %v1719
  %v1818 = vadd.f32 %v1288, %v1721
  %v1819 = vadd.f32 %v1293, %v1723
  %v1820 = vadd.f32 %v1318, %v1725
  %v1821 = vadd.f32 %v1323, %v1727
  %v1822 = vadd.f32 %v1328, %v1729
  %v1823 = vadd.f32 %v1333, %v1731
  %v1824 = vadd.f32 %v1358, %v1733
  %v1825 = vadd.f32 %v1363, %v1735
  %v1826 = vadd.f32 %v1368, %v1737
  %v1827 = vadd.f32 %v1373, %v1739
  %v1828 = vadd.f32 %v1398, %v1741
  %v1829 = vadd.f32 %v1403, %v1743
  %v1830 = vadd.f32 %v1408, %v1745
  %v1831 = vadd.f32 %v1413, %v1747
  %v1832 = vadd.f32 %v1438, %v1749
  %v1833 = vadd.f32 %v1443, %v1751
  %v1834 = vadd.f32 %v1448, %v1753
  %v1835 = vadd.f32 %v1453, %v1755
  %v1836 = vmul.f32 %v1644, %v1636
  %v1837 = vmul.f32 %v1645, %v1637
  %v1838 = vmul.f32 %v1646, %v1638
  %v1839 = vmul.f32 %v1647, %v1639
  %v1840 = vmul.f32 %v1648, %v1636
  %v1841 = vmul.f32 %v1649, %v1637
  %v1842 = vmul.f32 %v1650, %v1638
  %v1843 = vmul.f32 %v1651, %v1639
  %v1844 = vmul.f32 %v1652, %v1636
  %v1845 = vmul.f32 %v1653, %v1637
  %v1846 = vmul.f32 %v1654, %v1638
  %v1847 = vmul.f32 %v1655, %v1639
  %v1848 = vmul.f32 %v1656, %v1636
  %v1849 = vmul.f32 %v1657, %v1637
  %v1850 = vmul.f32 %v1658, %v1638
  %v1851 = vmul.f32 %v1659, %v1639
  %v1852 = vmul.f32 %v1660, %v1640
  %v1853 = vmul.f32 %v1661, %v1641
  %v1854 = vmul.f32 %v1662, %v1642
  %v1855 = vmul.f32 %v1663, %v1643
  %v1856 = vmul.f32 %v1664, %v1640
  %v1857 = vmul.f32 %v1665, %v1641
  %v1858 = vmul.f32 %v1666, %v1642
  %v1859 = vmul.f32 %v1667, %v1643
  %v1860 = vmul.f32 %v1668, %v1640
  %v1861 = vmul.f32 %v1669, %v1641
  %v1862 = vmul.f32 %v1670, %v1642
  %v1863 = vmul.f32 %v1671, %v1643
  %v1864 = vmul.f32 %v1672, %v1640
  %v1865 = vmul.f32 %v1673, %v1641
  %v1866 = vmul.f32 %v1674, %v1642
  %v1867 = vmul.f32 %v1675, %v1643
  %v1868 = vmul.f32 %v1804, %v1796
  %v1869 = vmul.f32 %v1805, %v1797
  %v1870 = vmul.f32 %v1806, %v1798
  %v1871 = vmul.f32 %v1807, %v1799
  %v1872 = vmul.f32 %v1808, %v1796
  %v1873 = vmul.f32 %v1809, %v1797
  %v1874 = vmul.f32 %v1810, %v1798
  %v1875 = vmul.f32 %v1811, %v1799
  %v1876 = vmul.f32 %v1812, %v1796
  %v1877 = vmul.f32 %v1813, %v1797
  %v1878 = vmul.f32 %v1814, %v1798
  %v1879 = vmul.f32 %v1815, %v1799
  %v1880 = vmul.f32 %v1816, %v1796
  %v1881 = vmul.f32 %v1817, %v1797
  %v1882 = vmul.f32 %v1818, %v1798
  %v1883 = vmul.f32 %v1819, %v1799
  %v1884 = vmul.f32 %v1820, %v1800
  %v1885 = vmul.f32 %v1821, %v1801
  %v1886 = vmul.f32 %v1822, %v1802
  %v1887 = vmul.f32 %v1823, %v1803
  %v1888 = vmul.f32 %v1824, %v1800
  %v1889 = vmul.f32 %v1825, %v1801
  %v1890 = vmul.f32 %v1826, %v1802
  %v1891 = vmul.f32 %v1827, %v1803
  %v1892 = vmul.f32 %v1828, %v1800
  %v1893 = vmul.f32 %v1829, %v1801
  %v1894 = vmul.f32 %v1830, %v1802
  %v1895 = vmul.f32 %v1831, %v1803
  %v1896 = vmul.f32 %v1832, %v1800
  %v1897 = vmul.f32 %v1833, %v1801
  %v1898 = vmul.f32 %v1834, %v1802
  %v1899 = vmul.f32 %v1835, %v1803
  %1932 = vrot.lane.b32.xlu0 %v1868, 96
  %v1933 = vpop.permute.xlu0 %1932
  %1934 = vrot.lane.b32.xlu0 %v1869, 96
  %v1935 = vpop.permute.xlu0 %1934
  %1936 = vrot.lane.b32.xlu0 %v1870, 96
  %v1937 = vpop.permute.xlu0 %1936
  %1938 = vrot.lane.b32.xlu0 %v1871, 96
  %v1939 = vpop.permute.xlu0 %1938
  %1940 = vrot.lane.b32.xlu0 %v1872, 96
  %v1941 = vpop.permute.xlu0 %1940
  %1942 = vrot.lane.b32.xlu0 %v1873, 96
  %v1943 = vpop.permute.xlu0 %1942
  %1944 = vrot.lane.b32.xlu0 %v1874, 96
  %v1945 = vpop.permute.xlu0 %1944
  %1946 = vrot.lane.b32.xlu0 %v1875, 96
  %v1947 = vpop.permute.xlu0 %1946
  %1948 = vrot.lane.b32.xlu0 %v1876, 96
  %v1949 = vpop.permute.xlu0 %1948
  %1950 = vrot.lane.b32.xlu0 %v1877, 96
  %v1951 = vpop.permute.xlu0 %1950
  %1952 = vrot.lane.b32.xlu0 %v1878, 96
  %v1953 = vpop.permute.xlu0 %1952
  %1954 = vrot.lane.b32.xlu0 %v1879, 96
  %v1955 = vpop.permute.xlu0 %1954
  %1956 = vrot.lane.b32.xlu0 %v1880, 96
  %v1957 = vpop.permute.xlu0 %1956
  %1958 = vrot.lane.b32.xlu0 %v1881, 96
  %v1959 = vpop.permute.xlu0 %1958
  %1960 = vrot.lane.b32.xlu0 %v1882, 96
  %v1961 = vpop.permute.xlu0 %1960
  %1962 = vrot.lane.b32.xlu0 %v1883, 96
  %v1963 = vpop.permute.xlu0 %1962
  %1964 = vrot.lane.b32.xlu0 %v1884, 96
  %v1965 = vpop.permute.xlu0 %1964
  %1966 = vrot.lane.b32.xlu0 %v1885, 96
  %v1967 = vpop.permute.xlu0 %1966
  %1968 = vrot.lane.b32.xlu0 %v1886, 96
  %v1969 = vpop.permute.xlu0 %1968
  %1970 = vrot.lane.b32.xlu0 %v1887, 96
  %v1971 = vpop.permute.xlu0 %1970
  %1972 = vrot.lane.b32.xlu0 %v1888, 96
  %v1973 = vpop.permute.xlu0 %1972
  %1974 = vrot.lane.b32.xlu0 %v1889, 96
  %v1975 = vpop.permute.xlu0 %1974
  %1976 = vrot.lane.b32.xlu0 %v1890, 96
  %v1977 = vpop.permute.xlu0 %1976
  %1978 = vrot.lane.b32.xlu0 %v1891, 96
  %v1979 = vpop.permute.xlu0 %1978
  %1980 = vrot.lane.b32.xlu0 %v1892, 96
  %v1981 = vpop.permute.xlu0 %1980
  %1982 = vrot.lane.b32.xlu0 %v1893, 96
  %v1983 = vpop.permute.xlu0 %1982
  %1984 = vrot.lane.b32.xlu0 %v1894, 96
  %v1985 = vpop.permute.xlu0 %1984
  %1986 = vrot.lane.b32.xlu0 %v1895, 96
  %v1987 = vpop.permute.xlu0 %1986
  %1988 = vrot.lane.b32.xlu0 %v1896, 96
  %v1989 = vpop.permute.xlu0 %1988
  %1990 = vrot.lane.b32.xlu0 %v1897, 96
  %v1991 = vpop.permute.xlu0 %1990
  %1992 = vrot.lane.b32.xlu0 %v1898, 96
  %v1993 = vpop.permute.xlu0 %1992
  %1994 = vrot.lane.b32.xlu0 %v1899, 96
  %v1995 = vpop.permute.xlu0 %1994
  %v2028 = vsub.f32 %v1836, %v1933
  %v2029 = vsub.f32 %v1837, %v1935
  %v2030 = vsub.f32 %v1838, %v1937
  %v2031 = vsub.f32 %v1839, %v1939
  %v2032 = vsub.f32 %v1840, %v1941
  %v2033 = vsub.f32 %v1841, %v1943
  %v2034 = vsub.f32 %v1842, %v1945
  %v2035 = vsub.f32 %v1843, %v1947
  %v2036 = vsub.f32 %v1844, %v1949
  %v2037 = vsub.f32 %v1845, %v1951
  %v2038 = vsub.f32 %v1846, %v1953
  %v2039 = vsub.f32 %v1847, %v1955
  %v2040 = vsub.f32 %v1848, %v1957
  %v2041 = vsub.f32 %v1849, %v1959
  %v2042 = vsub.f32 %v1850, %v1961
  %v2043 = vsub.f32 %v1851, %v1963
  %v2044 = vsub.f32 %v1852, %v1965
  %v2045 = vsub.f32 %v1853, %v1967
  %v2046 = vsub.f32 %v1854, %v1969
  %v2047 = vsub.f32 %v1855, %v1971
  %v2048 = vsub.f32 %v1856, %v1973
  %v2049 = vsub.f32 %v1857, %v1975
  %v2050 = vsub.f32 %v1858, %v1977
  %v2051 = vsub.f32 %v1859, %v1979
  %v2052 = vsub.f32 %v1860, %v1981
  %v2053 = vsub.f32 %v1861, %v1983
  %v2054 = vsub.f32 %v1862, %v1985
  %v2055 = vsub.f32 %v1863, %v1987
  %v2056 = vsub.f32 %v1864, %v1989
  %v2057 = vsub.f32 %v1865, %v1991
  %v2058 = vsub.f32 %v1866, %v1993
  %v2059 = vsub.f32 %v1867, %v1995
  %2068 = vrot.lane.b32.xlu0 %v1796, 96
  %v2069 = vpop.permute.xlu0 %2068
  %2070 = vrot.lane.b32.xlu0 %v1797, 96
  %v2071 = vpop.permute.xlu0 %2070
  %2072 = vrot.lane.b32.xlu0 %v1798, 96
  %v2073 = vpop.permute.xlu0 %2072
  %2074 = vrot.lane.b32.xlu0 %v1799, 96
  %v2075 = vpop.permute.xlu0 %2074
  %2076 = vrot.lane.b32.xlu0 %v1800, 96
  %v2077 = vpop.permute.xlu0 %2076
  %2078 = vrot.lane.b32.xlu0 %v1801, 96
  %v2079 = vpop.permute.xlu0 %2078
  %2080 = vrot.lane.b32.xlu0 %v1802, 96
  %v2081 = vpop.permute.xlu0 %2080
  %2082 = vrot.lane.b32.xlu0 %v1803, 96
  %v2083 = vpop.permute.xlu0 %2082
  %v2092 = vmul.f32 %v1644, %v2069
  %v2093 = vmul.f32 %v1645, %v2071
  %v2094 = vmul.f32 %v1646, %v2073
  %v2095 = vmul.f32 %v1647, %v2075
  %v2096 = vmul.f32 %v1648, %v2069
  %v2097 = vmul.f32 %v1649, %v2071
  %v2098 = vmul.f32 %v1650, %v2073
  %v2099 = vmul.f32 %v1651, %v2075
  %v2100 = vmul.f32 %v1652, %v2069
  %v2101 = vmul.f32 %v1653, %v2071
  %v2102 = vmul.f32 %v1654, %v2073
  %v2103 = vmul.f32 %v1655, %v2075
  %v2104 = vmul.f32 %v1656, %v2069
  %v2105 = vmul.f32 %v1657, %v2071
  %v2106 = vmul.f32 %v1658, %v2073
  %v2107 = vmul.f32 %v1659, %v2075
  %v2108 = vmul.f32 %v1660, %v2077
  %v2109 = vmul.f32 %v1661, %v2079
  %v2110 = vmul.f32 %v1662, %v2081
  %v2111 = vmul.f32 %v1663, %v2083
  %v2112 = vmul.f32 %v1664, %v2077
  %v2113 = vmul.f32 %v1665, %v2079
  %v2114 = vmul.f32 %v1666, %v2081
  %v2115 = vmul.f32 %v1667, %v2083
  %v2116 = vmul.f32 %v1668, %v2077
  %v2117 = vmul.f32 %v1669, %v2079
  %v2118 = vmul.f32 %v1670, %v2081
  %v2119 = vmul.f32 %v1671, %v2083
  %v2120 = vmul.f32 %v1672, %v2077
  %v2121 = vmul.f32 %v1673, %v2079
  %v2122 = vmul.f32 %v1674, %v2081
  %v2123 = vmul.f32 %v1675, %v2083
  %2132 = vrot.lane.b32.xlu0 %v1636, 32
  %v2133 = vpop.permute.xlu0 %2132
  %2134 = vrot.lane.b32.xlu0 %v1637, 32
  %v2135 = vpop.permute.xlu0 %2134
  %2136 = vrot.lane.b32.xlu0 %v1638, 32
  %v2137 = vpop.permute.xlu0 %2136
  %2138 = vrot.lane.b32.xlu0 %v1639, 32
  %v2139 = vpop.permute.xlu0 %2138
  %2140 = vrot.lane.b32.xlu0 %v1640, 32
  %v2141 = vpop.permute.xlu0 %2140
  %2142 = vrot.lane.b32.xlu0 %v1641, 32
  %v2143 = vpop.permute.xlu0 %2142
  %2144 = vrot.lane.b32.xlu0 %v1642, 32
  %v2145 = vpop.permute.xlu0 %2144
  %2146 = vrot.lane.b32.xlu0 %v1643, 32
  %v2147 = vpop.permute.xlu0 %2146
  %v2156 = vmul.f32 %v1804, %v2133
  %v2157 = vmul.f32 %v1805, %v2135
  %v2158 = vmul.f32 %v1806, %v2137
  %v2159 = vmul.f32 %v1807, %v2139
  %v2160 = vmul.f32 %v1808, %v2133
  %v2161 = vmul.f32 %v1809, %v2135
  %v2162 = vmul.f32 %v1810, %v2137
  %v2163 = vmul.f32 %v1811, %v2139
  %v2164 = vmul.f32 %v1812, %v2133
  %v2165 = vmul.f32 %v1813, %v2135
  %v2166 = vmul.f32 %v1814, %v2137
  %v2167 = vmul.f32 %v1815, %v2139
  %v2168 = vmul.f32 %v1816, %v2133
  %v2169 = vmul.f32 %v1817, %v2135
  %v2170 = vmul.f32 %v1818, %v2137
  %v2171 = vmul.f32 %v1819, %v2139
  %v2172 = vmul.f32 %v1820, %v2141
  %v2173 = vmul.f32 %v1821, %v2143
  %v2174 = vmul.f32 %v1822, %v2145
  %v2175 = vmul.f32 %v1823, %v2147
  %v2176 = vmul.f32 %v1824, %v2141
  %v2177 = vmul.f32 %v1825, %v2143
  %v2178 = vmul.f32 %v1826, %v2145
  %v2179 = vmul.f32 %v1827, %v2147
  %v2180 = vmul.f32 %v1828, %v2141
  %v2181 = vmul.f32 %v1829, %v2143
  %v2182 = vmul.f32 %v1830, %v2145
  %v2183 = vmul.f32 %v1831, %v2147
  %v2184 = vmul.f32 %v1832, %v2141
  %v2185 = vmul.f32 %v1833, %v2143
  %v2186 = vmul.f32 %v1834, %v2145
  %v2187 = vmul.f32 %v1835, %v2147
  %2220 = vrot.lane.b32.xlu0 %v2156, 96
  %v2221 = vpop.permute.xlu0 %2220
  %2222 = vrot.lane.b32.xlu0 %v2157, 96
  %v2223 = vpop.permute.xlu0 %2222
  %2224 = vrot.lane.b32.xlu0 %v2158, 96
  %v2225 = vpop.permute.xlu0 %2224
  %2226 = vrot.lane.b32.xlu0 %v2159, 96
  %v2227 = vpop.permute.xlu0 %2226
  %2228 = vrot.lane.b32.xlu0 %v2160, 96
  %v2229 = vpop.permute.xlu0 %2228
  %2230 = vrot.lane.b32.xlu0 %v2161, 96
  %v2231 = vpop.permute.xlu0 %2230
  %2232 = vrot.lane.b32.xlu0 %v2162, 96
  %v2233 = vpop.permute.xlu0 %2232
  %2234 = vrot.lane.b32.xlu0 %v2163, 96
  %v2235 = vpop.permute.xlu0 %2234
  %2236 = vrot.lane.b32.xlu0 %v2164, 96
  %v2237 = vpop.permute.xlu0 %2236
  %2238 = vrot.lane.b32.xlu0 %v2165, 96
  %v2239 = vpop.permute.xlu0 %2238
  %2240 = vrot.lane.b32.xlu0 %v2166, 96
  %v2241 = vpop.permute.xlu0 %2240
  %2242 = vrot.lane.b32.xlu0 %v2167, 96
  %v2243 = vpop.permute.xlu0 %2242
  %2244 = vrot.lane.b32.xlu0 %v2168, 96
  %v2245 = vpop.permute.xlu0 %2244
  %2246 = vrot.lane.b32.xlu0 %v2169, 96
  %v2247 = vpop.permute.xlu0 %2246
  %2248 = vrot.lane.b32.xlu0 %v2170, 96
  %v2249 = vpop.permute.xlu0 %2248
  %2250 = vrot.lane.b32.xlu0 %v2171, 96
  %v2251 = vpop.permute.xlu0 %2250
  %2252 = vrot.lane.b32.xlu0 %v2172, 96
  %v2253 = vpop.permute.xlu0 %2252
  %2254 = vrot.lane.b32.xlu0 %v2173, 96
  %v2255 = vpop.permute.xlu0 %2254
  %2256 = vrot.lane.b32.xlu0 %v2174, 96
  %v2257 = vpop.permute.xlu0 %2256
  %2258 = vrot.lane.b32.xlu0 %v2175, 96
  %v2259 = vpop.permute.xlu0 %2258
  %2260 = vrot.lane.b32.xlu0 %v2176, 96
  %v2261 = vpop.permute.xlu0 %2260
  %2262 = vrot.lane.b32.xlu0 %v2177, 96
  %v2263 = vpop.permute.xlu0 %2262
  %2264 = vrot.lane.b32.xlu0 %v2178, 96
  %v2265 = vpop.permute.xlu0 %2264
  %2266 = vrot.lane.b32.xlu0 %v2179, 96
  %v2267 = vpop.permute.xlu0 %2266
  %2268 = vrot.lane.b32.xlu0 %v2180, 96
  %v2269 = vpop.permute.xlu0 %2268
  %2270 = vrot.lane.b32.xlu0 %v2181, 96
  %v2271 = vpop.permute.xlu0 %2270
  %2272 = vrot.lane.b32.xlu0 %v2182, 96
  %v2273 = vpop.permute.xlu0 %2272
  %2274 = vrot.lane.b32.xlu0 %v2183, 96
  %v2275 = vpop.permute.xlu0 %2274
  %2276 = vrot.lane.b32.xlu0 %v2184, 96
  %v2277 = vpop.permute.xlu0 %2276
  %2278 = vrot.lane.b32.xlu0 %v2185, 96
  %v2279 = vpop.permute.xlu0 %2278
  %2280 = vrot.lane.b32.xlu0 %v2186, 96
  %v2281 = vpop.permute.xlu0 %2280
  %2282 = vrot.lane.b32.xlu0 %v2187, 96
  %v2283 = vpop.permute.xlu0 %2282
  %v2316 = vadd.f32 %v2092, %v2221
  %v2317 = vadd.f32 %v2093, %v2223
  %v2318 = vadd.f32 %v2094, %v2225
  %v2319 = vadd.f32 %v2095, %v2227
  %v2320 = vadd.f32 %v2096, %v2229
  %v2321 = vadd.f32 %v2097, %v2231
  %v2322 = vadd.f32 %v2098, %v2233
  %v2323 = vadd.f32 %v2099, %v2235
  %v2324 = vadd.f32 %v2100, %v2237
  %v2325 = vadd.f32 %v2101, %v2239
  %v2326 = vadd.f32 %v2102, %v2241
  %v2327 = vadd.f32 %v2103, %v2243
  %v2328 = vadd.f32 %v2104, %v2245
  %v2329 = vadd.f32 %v2105, %v2247
  %v2330 = vadd.f32 %v2106, %v2249
  %v2331 = vadd.f32 %v2107, %v2251
  %v2332 = vadd.f32 %v2108, %v2253
  %v2333 = vadd.f32 %v2109, %v2255
  %v2334 = vadd.f32 %v2110, %v2257
  %v2335 = vadd.f32 %v2111, %v2259
  %v2336 = vadd.f32 %v2112, %v2261
  %v2337 = vadd.f32 %v2113, %v2263
  %v2338 = vadd.f32 %v2114, %v2265
  %v2339 = vadd.f32 %v2115, %v2267
  %v2340 = vadd.f32 %v2116, %v2269
  %v2341 = vadd.f32 %v2117, %v2271
  %v2342 = vadd.f32 %v2118, %v2273
  %v2343 = vadd.f32 %v2119, %v2275
  %v2344 = vadd.f32 %v2120, %v2277
  %v2345 = vadd.f32 %v2121, %v2279
  %v2346 = vadd.f32 %v2122, %v2281
  %v2347 = vadd.f32 %v2123, %v2283
  %v2349 = vsel %vm65, %v2028, 0
  %v2352 = vsel %vm65, %v2029, 0
  %v2355 = vsel %vm65, %v2030, 0
  %v2358 = vsel %vm65, %v2031, 0
  %v2361 = vsel %vm65, %v2032, 0
  %v2364 = vsel %vm65, %v2033, 0
  %v2367 = vsel %vm65, %v2034, 0
  %v2370 = vsel %vm65, %v2035, 0
  %v2373 = vsel %vm65, %v2036, 0
  %v2376 = vsel %vm65, %v2037, 0
  %v2379 = vsel %vm65, %v2038, 0
  %v2382 = vsel %vm65, %v2039, 0
  %v2385 = vsel %vm65, %v2040, 0
  %v2388 = vsel %vm65, %v2041, 0
  %v2391 = vsel %vm65, %v2042, 0
  %v2394 = vsel %vm65, %v2043, 0
  %v2397 = vsel %vm65, %v2044, 0
  %v2400 = vsel %vm65, %v2045, 0
  %v2403 = vsel %vm65, %v2046, 0
  %v2406 = vsel %vm65, %v2047, 0
  %v2409 = vsel %vm65, %v2048, 0
  %v2412 = vsel %vm65, %v2049, 0
  %v2415 = vsel %vm65, %v2050, 0
  %v2418 = vsel %vm65, %v2051, 0
  %v2421 = vsel %vm65, %v2052, 0
  %v2424 = vsel %vm65, %v2053, 0
  %v2427 = vsel %vm65, %v2054, 0
  %v2430 = vsel %vm65, %v2055, 0
  %v2433 = vsel %vm65, %v2056, 0
  %v2436 = vsel %vm65, %v2057, 0
  %v2439 = vsel %vm65, %v2058, 0
  %v2442 = vsel %vm65, %v2059, 0
  %v2445 = vsel %vm65, %v2316, 0
  %v2448 = vsel %vm65, %v2317, 0
  %v2451 = vsel %vm65, %v2318, 0
  %v2454 = vsel %vm65, %v2319, 0
  %v2457 = vsel %vm65, %v2320, 0
  %v2460 = vsel %vm65, %v2321, 0
  %v2463 = vsel %vm65, %v2322, 0
  %v2466 = vsel %vm65, %v2323, 0
  %v2469 = vsel %vm65, %v2324, 0
  %v2472 = vsel %vm65, %v2325, 0
  %v2475 = vsel %vm65, %v2326, 0
  %v2478 = vsel %vm65, %v2327, 0
  %v2481 = vsel %vm65, %v2328, 0
  %v2484 = vsel %vm65, %v2329, 0
  %v2487 = vsel %vm65, %v2330, 0
  %v2490 = vsel %vm65, %v2331, 0
  %v2493 = vsel %vm65, %v2332, 0
  %v2496 = vsel %vm65, %v2333, 0
  %v2499 = vsel %vm65, %v2334, 0
  %v2502 = vsel %vm65, %v2335, 0
  %v2505 = vsel %vm65, %v2336, 0
  %v2508 = vsel %vm65, %v2337, 0
  %v2511 = vsel %vm65, %v2338, 0
  %v2514 = vsel %vm65, %v2339, 0
  %v2517 = vsel %vm65, %v2340, 0
  %v2520 = vsel %vm65, %v2341, 0
  %v2523 = vsel %vm65, %v2342, 0
  %v2526 = vsel %vm65, %v2343, 0
  %v2529 = vsel %vm65, %v2344, 0
  %v2532 = vsel %vm65, %v2345, 0
  %v2535 = vsel %vm65, %v2346, 0
  %v2538 = vsel %vm65, %v2347, 0
  %2540 = vmatprep.subr.mxu0 0.0
  %2541 = vmatpush1.msra.mxu0 0.0
  %2542 = vmatprep.subr.mxu0 0.0
  %2543 = vmatpush1.msra.mxu0 0.0
  %2544 = vmatprep.subr.mxu0 0.0
  %2545 = vmatpush1.msra.mxu0 0.0
  %2546 = vmatprep.subr.mxu0 0.0
  %2547 = vmatpush1.msra.mxu0 0.0
  %2548 = vmatprep.subr.mxu0 0.0
  %2549 = vmatpush1.msra.mxu0 0.0
  %2550 = vmatprep.subr.mxu0 0.0
  %2551 = vmatpush1.msra.mxu0 0.0
  %2552 = vmatprep.subr.mxu0 0.0
  %2553 = vmatpush1.msra.mxu0 0.0
  %2554 = vmatprep.subr.mxu0 0.0
  %2555 = vmatpush1.msra.mxu0 0.0
  %2556 = vmatprep.subr.mxu0 0.0
  %2557 = vmatpush1.msra.mxu0 0.0
  %2558 = vmatprep.subr.mxu0 0.0
  %2559 = vmatpush1.msra.mxu0 0.0
  %2560 = vmatprep.subr.mxu0 0.0
  %2561 = vmatpush1.msra.mxu0 0.0
  %2562 = vmatprep.subr.mxu0 0.0
  %2563 = vmatpush1.msra.mxu0 0.0
  %2564 = vmatprep.subr.mxu0 0.0
  %2565 = vmatpush1.msra.mxu0 %v24
  %2566 = vmatprep.subr.mxu0 0.0
  %2567 = vmatpush1.msra.mxu0 %v23
  %2568 = vmatprep.subr.mxu0 0.0
  %2569 = vmatpush1.msra.mxu0 %v22
  %2570 = vmatprep.subr.mxu0 0.0
  %2571 = vmatpush1.msra.mxu0 %v21
  %2572 = vmatprep.subr.mxu0 0.0
  %2573 = vmatpush2.msra.mxu0 0.0
  %2574 = vmatprep.subr.mxu0 0.0
  %2575 = vmatpush2.msra.mxu0 0.0
  %2576 = vmatprep.subr.mxu0 0.0
  %2577 = vmatpush2.msra.mxu0 0.0
  %2578 = vmatprep.subr.mxu0 0.0
  %2579 = vmatpush2.msra.mxu0 0.0
  %2580 = vmatprep.subr.mxu0 0.0
  %2581 = vmatpush2.msra.mxu0 0.0
  %2582 = vmatprep.subr.mxu0 0.0
  %2583 = vmatpush2.msra.mxu0 0.0
  %2584 = vmatprep.subr.mxu0 0.0
  %2585 = vmatpush2.msra.mxu0 0.0
  %2586 = vmatprep.subr.mxu0 0.0
  %2587 = vmatpush2.msra.mxu0 0.0
  %2588 = vmatprep.subr.mxu0 0.0
  %2589 = vmatpush2.msra.mxu0 0.0
  %2590 = vmatprep.subr.mxu0 0.0
  %2591 = vmatpush2.msra.mxu0 0.0
  %2592 = vmatprep.subr.mxu0 0.0
  %2593 = vmatpush2.msra.mxu0 0.0
  %2594 = vmatprep.subr.mxu0 0.0
  %2595 = vmatpush2.msra.mxu0 0.0
  %2596 = vmatprep.subr.mxu0 0.0
  %2597 = vmatpush2.msra.mxu0 0.0
  %2598 = vmatprep.subr.mxu0 0.0
  %2599 = vmatpush2.msra.mxu0 0.0
  %2600 = vmatprep.subr.mxu0 0.0
  %2601 = vmatpush2.msra.mxu0 0.0
  %2602 = vmatprep.subr.mxu0 0.0
  %2603 = vmatpush2.msra.mxu0 0.0
  %2604 = vmatprep.mubr.f32.mxu0 0.0
  %2605 = vmatmul.mubr.f32.gmra.mxu0 %v2349
  %v2606 = vpop.f32.mrf.mxu0
  %v2607 = vadd.f32 0.0, %v2606
  %v2608 = vpop.f32.mrf.mxu0
  %2609 = vmatprep.mubr.f32.mxu0 0.0
  %2610 = vmatmul.mubr.f32.gmra.mxu0 %v2352
  %v2611 = vpop.f32.mrf.mxu0
  %v2612 = vadd.f32 0.0, %v2611
  %v2613 = vpop.f32.mrf.mxu0
  %2614 = vmatprep.mubr.f32.mxu0 0.0
  %2615 = vmatmul.mubr.f32.gmra.mxu0 %v2355
  %v2616 = vpop.f32.mrf.mxu0
  %v2617 = vadd.f32 0.0, %v2616
  %v2618 = vpop.f32.mrf.mxu0
  %2619 = vmatprep.mubr.f32.mxu0 0.0
  %2620 = vmatmul.mubr.f32.gmra.mxu0 %v2358
  %v2621 = vpop.f32.mrf.mxu0
  %v2622 = vadd.f32 0.0, %v2621
  %v2623 = vpop.f32.mrf.mxu0
  %2624 = vmatprep.mubr.f32.mxu0 0.0
  %2625 = vmatmul.mubr.f32.gmra.mxu0 %v2361
  %v2626 = vpop.f32.mrf.mxu0
  %v2627 = vadd.f32 0.0, %v2626
  %v2628 = vpop.f32.mrf.mxu0
  %2629 = vmatprep.mubr.f32.mxu0 0.0
  %2630 = vmatmul.mubr.f32.gmra.mxu0 %v2364
  %v2631 = vpop.f32.mrf.mxu0
  %v2632 = vadd.f32 0.0, %v2631
  %v2633 = vpop.f32.mrf.mxu0
  %2634 = vmatprep.mubr.f32.mxu0 0.0
  %2635 = vmatmul.mubr.f32.gmra.mxu0 %v2367
  %v2636 = vpop.f32.mrf.mxu0
  %v2637 = vadd.f32 0.0, %v2636
  %v2638 = vpop.f32.mrf.mxu0
  %2639 = vmatprep.mubr.f32.mxu0 0.0
  %2640 = vmatmul.mubr.f32.gmra.mxu0 %v2370
  %v2641 = vpop.f32.mrf.mxu0
  %v2642 = vadd.f32 0.0, %v2641
  %v2643 = vpop.f32.mrf.mxu0
  %2644 = vmatprep.mubr.f32.mxu0 0.0
  %2645 = vmatmul.mubr.f32.gmra.mxu0 %v2373
  %v2646 = vpop.f32.mrf.mxu0
  %v2647 = vadd.f32 0.0, %v2646
  %v2648 = vpop.f32.mrf.mxu0
  %2649 = vmatprep.mubr.f32.mxu0 0.0
  %2650 = vmatmul.mubr.f32.gmra.mxu0 %v2376
  %v2651 = vpop.f32.mrf.mxu0
  %v2652 = vadd.f32 0.0, %v2651
  %v2653 = vpop.f32.mrf.mxu0
  %2654 = vmatprep.mubr.f32.mxu0 0.0
  %2655 = vmatmul.mubr.f32.gmra.mxu0 %v2379
  %v2656 = vpop.f32.mrf.mxu0
  %v2657 = vadd.f32 0.0, %v2656
  %v2658 = vpop.f32.mrf.mxu0
  %2659 = vmatprep.mubr.f32.mxu0 0.0
  %2660 = vmatmul.mubr.f32.gmra.mxu0 %v2382
  %v2661 = vpop.f32.mrf.mxu0
  %v2662 = vadd.f32 0.0, %v2661
  %v2663 = vpop.f32.mrf.mxu0
  %2664 = vmatprep.mubr.f32.mxu0 0.0
  %2665 = vmatmul.mubr.f32.gmra.mxu0 %v2385
  %v2666 = vpop.f32.mrf.mxu0
  %v2667 = vadd.f32 0.0, %v2666
  %v2668 = vpop.f32.mrf.mxu0
  %2669 = vmatprep.mubr.f32.mxu0 0.0
  %2670 = vmatmul.mubr.f32.gmra.mxu0 %v2388
  %v2671 = vpop.f32.mrf.mxu0
  %v2672 = vadd.f32 0.0, %v2671
  %v2673 = vpop.f32.mrf.mxu0
  %2674 = vmatprep.mubr.f32.mxu0 0.0
  %2675 = vmatmul.mubr.f32.gmra.mxu0 %v2391
  %v2676 = vpop.f32.mrf.mxu0
  %v2677 = vadd.f32 0.0, %v2676
  %v2678 = vpop.f32.mrf.mxu0
  %2679 = vmatprep.mubr.f32.mxu0 0.0
  %2680 = vmatmul.mubr.f32.gmra.mxu0 %v2394
  %v2681 = vpop.f32.mrf.mxu0
  %v2682 = vadd.f32 0.0, %v2681
  %v2683 = vpop.f32.mrf.mxu0
  %2684 = vmatprep.mubr.f32.mxu0 0.0
  %2685 = vmatmul.mubr.f32.gmra.mxu0 %v2397
  %v2686 = vpop.f32.mrf.mxu0
  %v2687 = vadd.f32 0.0, %v2686
  %v2688 = vpop.f32.mrf.mxu0
  %2689 = vmatprep.mubr.f32.mxu0 0.0
  %2690 = vmatmul.mubr.f32.gmra.mxu0 %v2400
  %v2691 = vpop.f32.mrf.mxu0
  %v2692 = vadd.f32 0.0, %v2691
  %v2693 = vpop.f32.mrf.mxu0
  %2694 = vmatprep.mubr.f32.mxu0 0.0
  %2695 = vmatmul.mubr.f32.gmra.mxu0 %v2403
  %v2696 = vpop.f32.mrf.mxu0
  %v2697 = vadd.f32 0.0, %v2696
  %v2698 = vpop.f32.mrf.mxu0
  %2699 = vmatprep.mubr.f32.mxu0 0.0
  %2700 = vmatmul.mubr.f32.gmra.mxu0 %v2406
  %v2701 = vpop.f32.mrf.mxu0
  %v2702 = vadd.f32 0.0, %v2701
  %v2703 = vpop.f32.mrf.mxu0
  %2704 = vmatprep.mubr.f32.mxu0 0.0
  %2705 = vmatmul.mubr.f32.gmra.mxu0 %v2409
  %v2706 = vpop.f32.mrf.mxu0
  %v2707 = vadd.f32 0.0, %v2706
  %v2708 = vpop.f32.mrf.mxu0
  %2709 = vmatprep.mubr.f32.mxu0 0.0
  %2710 = vmatmul.mubr.f32.gmra.mxu0 %v2412
  %v2711 = vpop.f32.mrf.mxu0
  %v2712 = vadd.f32 0.0, %v2711
  %v2713 = vpop.f32.mrf.mxu0
  %2714 = vmatprep.mubr.f32.mxu0 0.0
  %2715 = vmatmul.mubr.f32.gmra.mxu0 %v2415
  %v2716 = vpop.f32.mrf.mxu0
  %v2717 = vadd.f32 0.0, %v2716
  %v2718 = vpop.f32.mrf.mxu0
  %2719 = vmatprep.mubr.f32.mxu0 0.0
  %2720 = vmatmul.mubr.f32.gmra.mxu0 %v2418
  %v2721 = vpop.f32.mrf.mxu0
  %v2722 = vadd.f32 0.0, %v2721
  %v2723 = vpop.f32.mrf.mxu0
  %2724 = vmatprep.mubr.f32.mxu0 0.0
  %2725 = vmatmul.mubr.f32.gmra.mxu0 %v2421
  %v2726 = vpop.f32.mrf.mxu0
  %v2727 = vadd.f32 0.0, %v2726
  %v2728 = vpop.f32.mrf.mxu0
  %2729 = vmatprep.mubr.f32.mxu0 0.0
  %2730 = vmatmul.mubr.f32.gmra.mxu0 %v2424
  %v2731 = vpop.f32.mrf.mxu0
  %v2732 = vadd.f32 0.0, %v2731
  %v2733 = vpop.f32.mrf.mxu0
  %2734 = vmatprep.mubr.f32.mxu0 0.0
  %2735 = vmatmul.mubr.f32.gmra.mxu0 %v2427
  %v2736 = vpop.f32.mrf.mxu0
  %v2737 = vadd.f32 0.0, %v2736
  %v2738 = vpop.f32.mrf.mxu0
  %2739 = vmatprep.mubr.f32.mxu0 0.0
  %2740 = vmatmul.mubr.f32.gmra.mxu0 %v2430
  %v2741 = vpop.f32.mrf.mxu0
  %v2742 = vadd.f32 0.0, %v2741
  %v2743 = vpop.f32.mrf.mxu0
  %2744 = vmatprep.mubr.f32.mxu0 0.0
  %2745 = vmatmul.mubr.f32.gmra.mxu0 %v2433
  %v2746 = vpop.f32.mrf.mxu0
  %v2747 = vadd.f32 0.0, %v2746
  %v2748 = vpop.f32.mrf.mxu0
  %2749 = vmatprep.mubr.f32.mxu0 0.0
  %2750 = vmatmul.mubr.f32.gmra.mxu0 %v2436
  %v2751 = vpop.f32.mrf.mxu0
  %v2752 = vadd.f32 0.0, %v2751
  %v2753 = vpop.f32.mrf.mxu0
  %2754 = vmatprep.mubr.f32.mxu0 0.0
  %2755 = vmatmul.mubr.f32.gmra.mxu0 %v2439
  %v2756 = vpop.f32.mrf.mxu0
  %v2757 = vadd.f32 0.0, %v2756
  %v2758 = vpop.f32.mrf.mxu0
  %2759 = vmatprep.mubr.f32.mxu0 0.0
  %2760 = vmatmul.mubr.f32.gmra.mxu0 %v2442
  %v2761 = vpop.f32.mrf.mxu0
  %v2762 = vadd.f32 0.0, %v2761
  %v2763 = vpop.f32.mrf.mxu0
  %2764 = vmatprep.mubr.f32.mxu0 0.0
  %2765 = vmatmul.mubr.f32.gmra.mxu0 %v2445
  %v2766 = vpop.f32.mrf.mxu0
  %v2767 = vadd.f32 0.0, %v2766
  %v2768 = vpop.f32.mrf.mxu0
  %2769 = vmatprep.mubr.f32.mxu0 0.0
  %2770 = vmatmul.mubr.f32.gmra.mxu0 %v2448
  %v2771 = vpop.f32.mrf.mxu0
  %v2772 = vadd.f32 0.0, %v2771
  %v2773 = vpop.f32.mrf.mxu0
  %2774 = vmatprep.mubr.f32.mxu0 0.0
  %2775 = vmatmul.mubr.f32.gmra.mxu0 %v2451
  %v2776 = vpop.f32.mrf.mxu0
  %v2777 = vadd.f32 0.0, %v2776
  %v2778 = vpop.f32.mrf.mxu0
  %2779 = vmatprep.mubr.f32.mxu0 0.0
  %2780 = vmatmul.mubr.f32.gmra.mxu0 %v2454
  %v2781 = vpop.f32.mrf.mxu0
  %v2782 = vadd.f32 0.0, %v2781
  %v2783 = vpop.f32.mrf.mxu0
  %2784 = vmatprep.mubr.f32.mxu0 0.0
  %2785 = vmatmul.mubr.f32.gmra.mxu0 %v2457
  %v2786 = vpop.f32.mrf.mxu0
  %v2787 = vadd.f32 0.0, %v2786
  %v2788 = vpop.f32.mrf.mxu0
  %2789 = vmatprep.mubr.f32.mxu0 0.0
  %2790 = vmatmul.mubr.f32.gmra.mxu0 %v2460
  %v2791 = vpop.f32.mrf.mxu0
  %v2792 = vadd.f32 0.0, %v2791
  %v2793 = vpop.f32.mrf.mxu0
  %2794 = vmatprep.mubr.f32.mxu0 0.0
  %2795 = vmatmul.mubr.f32.gmra.mxu0 %v2463
  %v2796 = vpop.f32.mrf.mxu0
  %v2797 = vadd.f32 0.0, %v2796
  %v2798 = vpop.f32.mrf.mxu0
  %2799 = vmatprep.mubr.f32.mxu0 0.0
  %2800 = vmatmul.mubr.f32.gmra.mxu0 %v2466
  %v2801 = vpop.f32.mrf.mxu0
  %v2802 = vadd.f32 0.0, %v2801
  %v2803 = vpop.f32.mrf.mxu0
  %2804 = vmatprep.mubr.f32.mxu0 0.0
  %2805 = vmatmul.mubr.f32.gmra.mxu0 %v2469
  %v2806 = vpop.f32.mrf.mxu0
  %v2807 = vadd.f32 0.0, %v2806
  %v2808 = vpop.f32.mrf.mxu0
  %2809 = vmatprep.mubr.f32.mxu0 0.0
  %2810 = vmatmul.mubr.f32.gmra.mxu0 %v2472
  %v2811 = vpop.f32.mrf.mxu0
  %v2812 = vadd.f32 0.0, %v2811
  %v2813 = vpop.f32.mrf.mxu0
  %2814 = vmatprep.mubr.f32.mxu0 0.0
  %2815 = vmatmul.mubr.f32.gmra.mxu0 %v2475
  %v2816 = vpop.f32.mrf.mxu0
  %v2817 = vadd.f32 0.0, %v2816
  %v2818 = vpop.f32.mrf.mxu0
  %2819 = vmatprep.mubr.f32.mxu0 0.0
  %2820 = vmatmul.mubr.f32.gmra.mxu0 %v2478
  %v2821 = vpop.f32.mrf.mxu0
  %v2822 = vadd.f32 0.0, %v2821
  %v2823 = vpop.f32.mrf.mxu0
  %2824 = vmatprep.mubr.f32.mxu0 0.0
  %2825 = vmatmul.mubr.f32.gmra.mxu0 %v2481
  %v2826 = vpop.f32.mrf.mxu0
  %v2827 = vadd.f32 0.0, %v2826
  %v2828 = vpop.f32.mrf.mxu0
  %2829 = vmatprep.mubr.f32.mxu0 0.0
  %2830 = vmatmul.mubr.f32.gmra.mxu0 %v2484
  %v2831 = vpop.f32.mrf.mxu0
  %v2832 = vadd.f32 0.0, %v2831
  %v2833 = vpop.f32.mrf.mxu0
  %2834 = vmatprep.mubr.f32.mxu0 0.0
  %2835 = vmatmul.mubr.f32.gmra.mxu0 %v2487
  %v2836 = vpop.f32.mrf.mxu0
  %v2837 = vadd.f32 0.0, %v2836
  %v2838 = vpop.f32.mrf.mxu0
  %2839 = vmatprep.mubr.f32.mxu0 0.0
  %2840 = vmatmul.mubr.f32.gmra.mxu0 %v2490
  %v2841 = vpop.f32.mrf.mxu0
  %v2842 = vadd.f32 0.0, %v2841
  %v2843 = vpop.f32.mrf.mxu0
  %2844 = vmatprep.mubr.f32.mxu0 0.0
  %2845 = vmatmul.mubr.f32.gmra.mxu0 %v2493
  %v2846 = vpop.f32.mrf.mxu0
  %v2847 = vadd.f32 0.0, %v2846
  %v2848 = vpop.f32.mrf.mxu0
  %2849 = vmatprep.mubr.f32.mxu0 0.0
  %2850 = vmatmul.mubr.f32.gmra.mxu0 %v2496
  %v2851 = vpop.f32.mrf.mxu0
  %v2852 = vadd.f32 0.0, %v2851
  %v2853 = vpop.f32.mrf.mxu0
  %2854 = vmatprep.mubr.f32.mxu0 0.0
  %2855 = vmatmul.mubr.f32.gmra.mxu0 %v2499
  %v2856 = vpop.f32.mrf.mxu0
  %v2857 = vadd.f32 0.0, %v2856
  %v2858 = vpop.f32.mrf.mxu0
  %2859 = vmatprep.mubr.f32.mxu0 0.0
  %2860 = vmatmul.mubr.f32.gmra.mxu0 %v2502
  %v2861 = vpop.f32.mrf.mxu0
  %v2862 = vadd.f32 0.0, %v2861
  %v2863 = vpop.f32.mrf.mxu0
  %2864 = vmatprep.mubr.f32.mxu0 0.0
  %2865 = vmatmul.mubr.f32.gmra.mxu0 %v2505
  %v2866 = vpop.f32.mrf.mxu0
  %v2867 = vadd.f32 0.0, %v2866
  %v2868 = vpop.f32.mrf.mxu0
  %2869 = vmatprep.mubr.f32.mxu0 0.0
  %2870 = vmatmul.mubr.f32.gmra.mxu0 %v2508
  %v2871 = vpop.f32.mrf.mxu0
  %v2872 = vadd.f32 0.0, %v2871
  %v2873 = vpop.f32.mrf.mxu0
  %2874 = vmatprep.mubr.f32.mxu0 0.0
  %2875 = vmatmul.mubr.f32.gmra.mxu0 %v2511
  %v2876 = vpop.f32.mrf.mxu0
  %v2877 = vadd.f32 0.0, %v2876
  %v2878 = vpop.f32.mrf.mxu0
  %2879 = vmatprep.mubr.f32.mxu0 0.0
  %2880 = vmatmul.mubr.f32.gmra.mxu0 %v2514
  %v2881 = vpop.f32.mrf.mxu0
  %v2882 = vadd.f32 0.0, %v2881
  %v2883 = vpop.f32.mrf.mxu0
  %2884 = vmatprep.mubr.f32.mxu0 0.0
  %2885 = vmatmul.mubr.f32.gmra.mxu0 %v2517
  %v2886 = vpop.f32.mrf.mxu0
  %v2887 = vadd.f32 0.0, %v2886
  %v2888 = vpop.f32.mrf.mxu0
  %2889 = vmatprep.mubr.f32.mxu0 0.0
  %2890 = vmatmul.mubr.f32.gmra.mxu0 %v2520
  %v2891 = vpop.f32.mrf.mxu0
  %v2892 = vadd.f32 0.0, %v2891
  %v2893 = vpop.f32.mrf.mxu0
  %2894 = vmatprep.mubr.f32.mxu0 0.0
  %2895 = vmatmul.mubr.f32.gmra.mxu0 %v2523
  %v2896 = vpop.f32.mrf.mxu0
  %v2897 = vadd.f32 0.0, %v2896
  %v2898 = vpop.f32.mrf.mxu0
  %2899 = vmatprep.mubr.f32.mxu0 0.0
  %2900 = vmatmul.mubr.f32.gmra.mxu0 %v2526
  %v2901 = vpop.f32.mrf.mxu0
  %v2902 = vadd.f32 0.0, %v2901
  %v2903 = vpop.f32.mrf.mxu0
  %2904 = vmatprep.mubr.f32.mxu0 0.0
  %2905 = vmatmul.mubr.f32.gmra.mxu0 %v2529
  %v2906 = vpop.f32.mrf.mxu0
  %v2907 = vadd.f32 0.0, %v2906
  %v2908 = vpop.f32.mrf.mxu0
  %2909 = vmatprep.mubr.f32.mxu0 0.0
  %2910 = vmatmul.mubr.f32.gmra.mxu0 %v2532
  %v2911 = vpop.f32.mrf.mxu0
  %v2912 = vadd.f32 0.0, %v2911
  %v2913 = vpop.f32.mrf.mxu0
  %2914 = vmatprep.mubr.f32.mxu0 0.0
  %2915 = vmatmul.mubr.f32.gmra.mxu0 %v2535
  %v2916 = vpop.f32.mrf.mxu0
  %v2917 = vadd.f32 0.0, %v2916
  %v2918 = vpop.f32.mrf.mxu0
  %2919 = vmatprep.mubr.f32.mxu0 0.0
  %2920 = vmatmul.mubr.f32.gmra.mxu0 %v2538
  %v2921 = vpop.f32.mrf.mxu0
  %v2922 = vadd.f32 0.0, %v2921
  %v2923 = vpop.f32.mrf.mxu0
  %2924 = vdwg.mxu0
  %2957 = vrot.lane.b32.xlu0 %v2767, 120
  %v2958 = vpop.permute.xlu0 %2957
  %2959 = vrot.lane.b32.xlu0 %v2772, 120
  %v2960 = vpop.permute.xlu0 %2959
  %2961 = vrot.lane.b32.xlu0 %v2777, 120
  %v2962 = vpop.permute.xlu0 %2961
  %2963 = vrot.lane.b32.xlu0 %v2782, 120
  %v2964 = vpop.permute.xlu0 %2963
  %2965 = vrot.lane.b32.xlu0 %v2787, 120
  %v2966 = vpop.permute.xlu0 %2965
  %2967 = vrot.lane.b32.xlu0 %v2792, 120
  %v2968 = vpop.permute.xlu0 %2967
  %2969 = vrot.lane.b32.xlu0 %v2797, 120
  %v2970 = vpop.permute.xlu0 %2969
  %2971 = vrot.lane.b32.xlu0 %v2802, 120
  %v2972 = vpop.permute.xlu0 %2971
  %2973 = vrot.lane.b32.xlu0 %v2807, 120
  %v2974 = vpop.permute.xlu0 %2973
  %2975 = vrot.lane.b32.xlu0 %v2812, 120
  %v2976 = vpop.permute.xlu0 %2975
  %2977 = vrot.lane.b32.xlu0 %v2817, 120
  %v2978 = vpop.permute.xlu0 %2977
  %2979 = vrot.lane.b32.xlu0 %v2822, 120
  %v2980 = vpop.permute.xlu0 %2979
  %2981 = vrot.lane.b32.xlu0 %v2827, 120
  %v2982 = vpop.permute.xlu0 %2981
  %2983 = vrot.lane.b32.xlu0 %v2832, 120
  %v2984 = vpop.permute.xlu0 %2983
  %2985 = vrot.lane.b32.xlu0 %v2837, 120
  %v2986 = vpop.permute.xlu0 %2985
  %2987 = vrot.lane.b32.xlu0 %v2842, 120
  %v2988 = vpop.permute.xlu0 %2987
  %2989 = vrot.lane.b32.xlu0 %v2847, 120
  %v2990 = vpop.permute.xlu0 %2989
  %2991 = vrot.lane.b32.xlu0 %v2852, 120
  %v2992 = vpop.permute.xlu0 %2991
  %2993 = vrot.lane.b32.xlu0 %v2857, 120
  %v2994 = vpop.permute.xlu0 %2993
  %2995 = vrot.lane.b32.xlu0 %v2862, 120
  %v2996 = vpop.permute.xlu0 %2995
  %2997 = vrot.lane.b32.xlu0 %v2867, 120
  %v2998 = vpop.permute.xlu0 %2997
  %2999 = vrot.lane.b32.xlu0 %v2872, 120
  %v3000 = vpop.permute.xlu0 %2999
  %3001 = vrot.lane.b32.xlu0 %v2877, 120
  %v3002 = vpop.permute.xlu0 %3001
  %3003 = vrot.lane.b32.xlu0 %v2882, 120
  %v3004 = vpop.permute.xlu0 %3003
  %3005 = vrot.lane.b32.xlu0 %v2887, 120
  %v3006 = vpop.permute.xlu0 %3005
  %3007 = vrot.lane.b32.xlu0 %v2892, 120
  %v3008 = vpop.permute.xlu0 %3007
  %3009 = vrot.lane.b32.xlu0 %v2897, 120
  %v3010 = vpop.permute.xlu0 %3009
  %3011 = vrot.lane.b32.xlu0 %v2902, 120
  %v3012 = vpop.permute.xlu0 %3011
  %3013 = vrot.lane.b32.xlu0 %v2907, 120
  %v3014 = vpop.permute.xlu0 %3013
  %3015 = vrot.lane.b32.xlu0 %v2912, 120
  %v3016 = vpop.permute.xlu0 %3015
  %3017 = vrot.lane.b32.xlu0 %v2917, 120
  %v3018 = vpop.permute.xlu0 %3017
  %3019 = vrot.lane.b32.xlu0 %v2922, 120
  %v3020 = vpop.permute.xlu0 %3019
  %v3053 = vsub.f32 %v2607, %v2958
  %v3054 = vsub.f32 %v2612, %v2960
  %v3055 = vsub.f32 %v2617, %v2962
  %v3056 = vsub.f32 %v2622, %v2964
  %v3057 = vsub.f32 %v2627, %v2966
  %v3058 = vsub.f32 %v2632, %v2968
  %v3059 = vsub.f32 %v2637, %v2970
  %v3060 = vsub.f32 %v2642, %v2972
  %v3061 = vsub.f32 %v2647, %v2974
  %v3062 = vsub.f32 %v2652, %v2976
  %v3063 = vsub.f32 %v2657, %v2978
  %v3064 = vsub.f32 %v2662, %v2980
  %v3065 = vsub.f32 %v2667, %v2982
  %v3066 = vsub.f32 %v2672, %v2984
  %v3067 = vsub.f32 %v2677, %v2986
  %v3068 = vsub.f32 %v2682, %v2988
  %v3069 = vsub.f32 %v2687, %v2990
  %v3070 = vsub.f32 %v2692, %v2992
  %v3071 = vsub.f32 %v2697, %v2994
  %v3072 = vsub.f32 %v2702, %v2996
  %v3073 = vsub.f32 %v2707, %v2998
  %v3074 = vsub.f32 %v2712, %v3000
  %v3075 = vsub.f32 %v2717, %v3002
  %v3076 = vsub.f32 %v2722, %v3004
  %v3077 = vsub.f32 %v2727, %v3006
  %v3078 = vsub.f32 %v2732, %v3008
  %v3079 = vsub.f32 %v2737, %v3010
  %v3080 = vsub.f32 %v2742, %v3012
  %v3081 = vsub.f32 %v2747, %v3014
  %v3082 = vsub.f32 %v2752, %v3016
  %v3083 = vsub.f32 %v2757, %v3018
  %v3084 = vsub.f32 %v2762, %v3020
  %3085 = vrot.lane.b32.xlu0 %v2767, 8
  %v3086 = vpop.permute.xlu0 %3085
  %3087 = vrot.lane.b32.xlu0 %v2772, 8
  %v3088 = vpop.permute.xlu0 %3087
  %3089 = vrot.lane.b32.xlu0 %v2777, 8
  %v3090 = vpop.permute.xlu0 %3089
  %3091 = vrot.lane.b32.xlu0 %v2782, 8
  %v3092 = vpop.permute.xlu0 %3091
  %3093 = vrot.lane.b32.xlu0 %v2787, 8
  %v3094 = vpop.permute.xlu0 %3093
  %3095 = vrot.lane.b32.xlu0 %v2792, 8
  %v3096 = vpop.permute.xlu0 %3095
  %3097 = vrot.lane.b32.xlu0 %v2797, 8
  %v3098 = vpop.permute.xlu0 %3097
  %3099 = vrot.lane.b32.xlu0 %v2802, 8
  %v3100 = vpop.permute.xlu0 %3099
  %3101 = vrot.lane.b32.xlu0 %v2807, 8
  %v3102 = vpop.permute.xlu0 %3101
  %3103 = vrot.lane.b32.xlu0 %v2812, 8
  %v3104 = vpop.permute.xlu0 %3103
  %3105 = vrot.lane.b32.xlu0 %v2817, 8
  %v3106 = vpop.permute.xlu0 %3105
  %3107 = vrot.lane.b32.xlu0 %v2822, 8
  %v3108 = vpop.permute.xlu0 %3107
  %3109 = vrot.lane.b32.xlu0 %v2827, 8
  %v3110 = vpop.permute.xlu0 %3109
  %3111 = vrot.lane.b32.xlu0 %v2832, 8
  %v3112 = vpop.permute.xlu0 %3111
  %3113 = vrot.lane.b32.xlu0 %v2837, 8
  %v3114 = vpop.permute.xlu0 %3113
  %3115 = vrot.lane.b32.xlu0 %v2842, 8
  %v3116 = vpop.permute.xlu0 %3115
  %3117 = vrot.lane.b32.xlu0 %v2847, 8
  %v3118 = vpop.permute.xlu0 %3117
  %3119 = vrot.lane.b32.xlu0 %v2852, 8
  %v3120 = vpop.permute.xlu0 %3119
  %3121 = vrot.lane.b32.xlu0 %v2857, 8
  %v3122 = vpop.permute.xlu0 %3121
  %3123 = vrot.lane.b32.xlu0 %v2862, 8
  %v3124 = vpop.permute.xlu0 %3123
  %3125 = vrot.lane.b32.xlu0 %v2867, 8
  %v3126 = vpop.permute.xlu0 %3125
  %3127 = vrot.lane.b32.xlu0 %v2872, 8
  %v3128 = vpop.permute.xlu0 %3127
  %3129 = vrot.lane.b32.xlu0 %v2877, 8
  %v3130 = vpop.permute.xlu0 %3129
  %3131 = vrot.lane.b32.xlu0 %v2882, 8
  %v3132 = vpop.permute.xlu0 %3131
  %3133 = vrot.lane.b32.xlu0 %v2887, 8
  %v3134 = vpop.permute.xlu0 %3133
  %3135 = vrot.lane.b32.xlu0 %v2892, 8
  %v3136 = vpop.permute.xlu0 %3135
  %3137 = vrot.lane.b32.xlu0 %v2897, 8
  %v3138 = vpop.permute.xlu0 %3137
  %3139 = vrot.lane.b32.xlu0 %v2902, 8
  %v3140 = vpop.permute.xlu0 %3139
  %3141 = vrot.lane.b32.xlu0 %v2907, 8
  %v3142 = vpop.permute.xlu0 %3141
  %3143 = vrot.lane.b32.xlu0 %v2912, 8
  %v3144 = vpop.permute.xlu0 %3143
  %3145 = vrot.lane.b32.xlu0 %v2917, 8
  %v3146 = vpop.permute.xlu0 %3145
  %3147 = vrot.lane.b32.xlu0 %v2922, 8
  %v3148 = vpop.permute.xlu0 %3147
  %v3181 = vadd.f32 %v2607, %v3086
  %v3182 = vadd.f32 %v2612, %v3088
  %v3183 = vadd.f32 %v2617, %v3090
  %v3184 = vadd.f32 %v2622, %v3092
  %v3185 = vadd.f32 %v2627, %v3094
  %v3186 = vadd.f32 %v2632, %v3096
  %v3187 = vadd.f32 %v2637, %v3098
  %v3188 = vadd.f32 %v2642, %v3100
  %v3189 = vadd.f32 %v2647, %v3102
  %v3190 = vadd.f32 %v2652, %v3104
  %v3191 = vadd.f32 %v2657, %v3106
  %v3192 = vadd.f32 %v2662, %v3108
  %v3193 = vadd.f32 %v2667, %v3110
  %v3194 = vadd.f32 %v2672, %v3112
  %v3195 = vadd.f32 %v2677, %v3114
  %v3196 = vadd.f32 %v2682, %v3116
  %v3197 = vadd.f32 %v2687, %v3118
  %v3198 = vadd.f32 %v2692, %v3120
  %v3199 = vadd.f32 %v2697, %v3122
  %v3200 = vadd.f32 %v2702, %v3124
  %v3201 = vadd.f32 %v2707, %v3126
  %v3202 = vadd.f32 %v2712, %v3128
  %v3203 = vadd.f32 %v2717, %v3130
  %v3204 = vadd.f32 %v2722, %v3132
  %v3205 = vadd.f32 %v2727, %v3134
  %v3206 = vadd.f32 %v2732, %v3136
  %v3207 = vadd.f32 %v2737, %v3138
  %v3208 = vadd.f32 %v2742, %v3140
  %v3209 = vadd.f32 %v2747, %v3142
  %v3210 = vadd.f32 %v2752, %v3144
  %v3211 = vadd.f32 %v2757, %v3146
  %v3212 = vadd.f32 %v2762, %v3148
  %vm3213 = vcmask 64512
  %v3214 = vsel %vm3213, %v3053, %v3181
  %v3215 = vsel %vm3213, %v3054, %v3182
  %v3216 = vsel %vm3213, %v3055, %v3183
  %v3217 = vsel %vm3213, %v3056, %v3184
  %v3218 = vsel %vm3213, %v3057, %v3185
  %v3219 = vsel %vm3213, %v3058, %v3186
  %v3220 = vsel %vm3213, %v3059, %v3187
  %v3221 = vsel %vm3213, %v3060, %v3188
  %v3222 = vsel %vm3213, %v3061, %v3189
  %v3223 = vsel %vm3213, %v3062, %v3190
  %v3224 = vsel %vm3213, %v3063, %v3191
  %v3225 = vsel %vm3213, %v3064, %v3192
  %v3226 = vsel %vm3213, %v3065, %v3193
  %v3227 = vsel %vm3213, %v3066, %v3194
  %v3228 = vsel %vm3213, %v3067, %v3195
  %v3229 = vsel %vm3213, %v3068, %v3196
  %v3230 = vsel %vm3213, %v3069, %v3197
  %v3231 = vsel %vm3213, %v3070, %v3198
  %v3232 = vsel %vm3213, %v3071, %v3199
  %v3233 = vsel %vm3213, %v3072, %v3200
  %v3234 = vsel %vm3213, %v3073, %v3201
  %v3235 = vsel %vm3213, %v3074, %v3202
  %v3236 = vsel %vm3213, %v3075, %v3203
  %v3237 = vsel %vm3213, %v3076, %v3204
  %v3238 = vsel %vm3213, %v3077, %v3205
  %v3239 = vsel %vm3213, %v3078, %v3206
  %v3240 = vsel %vm3213, %v3079, %v3207
  %v3241 = vsel %vm3213, %v3080, %v3208
  %v3242 = vsel %vm3213, %v3081, %v3209
  %v3243 = vsel %vm3213, %v3082, %v3210
  %v3244 = vsel %vm3213, %v3083, %v3211
  %v3245 = vsel %vm3213, %v3084, %v3212
  %3246 = vxpose.xlu0.b32.start [1/16] %v3214, 128
  %3247 = vxpose.xlu0.b32.cont [2/16] %v3215, 128
  %3248 = vxpose.xlu0.b32.cont [3/16] %v3216, 128
  %3249 = vxpose.xlu0.b32.cont [4/16] %v3217, 128
  %3250 = vxpose.xlu0.b32.cont [5/16] 0.0, 128
  %3251 = vxpose.xlu0.b32.cont [6/16] 0.0, 128
  %3252 = vxpose.xlu0.b32.cont [7/16] 0.0, 128
  %3253 = vxpose.xlu0.b32.cont [8/16] 0.0, 128
  %3254 = vxpose.xlu0.b32.cont [9/16] 0.0, 128
  %3255 = vxpose.xlu0.b32.cont [10/16] 0.0, 128
  %3256 = vxpose.xlu0.b32.cont [11/16] 0.0, 128
  %3257 = vxpose.xlu0.b32.cont [12/16] 0.0, 128
  %3258 = vxpose.xlu0.b32.cont [13/16] 0.0, 128
  %3259 = vxpose.xlu0.b32.cont [14/16] 0.0, 128
  %3260 = vxpose.xlu0.b32.cont [15/16] 0.0, 128
  %3261 = vxpose.xlu0.b32.end [16/16] 0.0, 128
  %v3262 = vpop.trf.xlu0
  %v3263 = vpop.trf.xlu0
  %v3264 = vpop.trf.xlu0
  %v3265 = vpop.trf.xlu0
  %v3266 = vpop.trf.xlu0
  %v3267 = vpop.trf.xlu0
  %v3268 = vpop.trf.xlu0
  %v3269 = vpop.trf.xlu0
  %v3270 = vpop.trf.xlu0
  %v3271 = vpop.trf.xlu0
  %v3272 = vpop.trf.xlu0
  %v3273 = vpop.trf.xlu0
  %v3274 = vpop.trf.xlu0
  %v3275 = vpop.trf.xlu0
  %v3276 = vpop.trf.xlu0
  %v3277 = vpop.trf.xlu0
  %3278 = vxpose.xlu0.b32.start [1/16] %v3218, 128
  %3279 = vxpose.xlu0.b32.cont [2/16] %v3219, 128
  %3280 = vxpose.xlu0.b32.cont [3/16] %v3220, 128
  %3281 = vxpose.xlu0.b32.cont [4/16] %v3221, 128
  %3282 = vxpose.xlu0.b32.cont [5/16] 0.0, 128
  %3283 = vxpose.xlu0.b32.cont [6/16] 0.0, 128
  %3284 = vxpose.xlu0.b32.cont [7/16] 0.0, 128
  %3285 = vxpose.xlu0.b32.cont [8/16] 0.0, 128
  %3286 = vxpose.xlu0.b32.cont [9/16] 0.0, 128
  %3287 = vxpose.xlu0.b32.cont [10/16] 0.0, 128
  %3288 = vxpose.xlu0.b32.cont [11/16] 0.0, 128
  %3289 = vxpose.xlu0.b32.cont [12/16] 0.0, 128
  %3290 = vxpose.xlu0.b32.cont [13/16] 0.0, 128
  %3291 = vxpose.xlu0.b32.cont [14/16] 0.0, 128
  %3292 = vxpose.xlu0.b32.cont [15/16] 0.0, 128
  %3293 = vxpose.xlu0.b32.end [16/16] 0.0, 128
  %v3294 = vpop.trf.xlu0
  %v3295 = vpop.trf.xlu0
  %v3296 = vpop.trf.xlu0
  %v3297 = vpop.trf.xlu0
  %v3298 = vpop.trf.xlu0
  %v3299 = vpop.trf.xlu0
  %v3300 = vpop.trf.xlu0
  %v3301 = vpop.trf.xlu0
  %v3302 = vpop.trf.xlu0
  %v3303 = vpop.trf.xlu0
  %v3304 = vpop.trf.xlu0
  %v3305 = vpop.trf.xlu0
  %v3306 = vpop.trf.xlu0
  %v3307 = vpop.trf.xlu0
  %v3308 = vpop.trf.xlu0
  %v3309 = vpop.trf.xlu0
  %3310 = vxpose.xlu0.b32.start [1/16] %v3222, 128
  %3311 = vxpose.xlu0.b32.cont [2/16] %v3223, 128
  %3312 = vxpose.xlu0.b32.cont [3/16] %v3224, 128
  %3313 = vxpose.xlu0.b32.cont [4/16] %v3225, 128
  %3314 = vxpose.xlu0.b32.cont [5/16] 0.0, 128
  %3315 = vxpose.xlu0.b32.cont [6/16] 0.0, 128
  %3316 = vxpose.xlu0.b32.cont [7/16] 0.0, 128
  %3317 = vxpose.xlu0.b32.cont [8/16] 0.0, 128
  %3318 = vxpose.xlu0.b32.cont [9/16] 0.0, 128
  %3319 = vxpose.xlu0.b32.cont [10/16] 0.0, 128
  %3320 = vxpose.xlu0.b32.cont [11/16] 0.0, 128
  %3321 = vxpose.xlu0.b32.cont [12/16] 0.0, 128
  %3322 = vxpose.xlu0.b32.cont [13/16] 0.0, 128
  %3323 = vxpose.xlu0.b32.cont [14/16] 0.0, 128
  %3324 = vxpose.xlu0.b32.cont [15/16] 0.0, 128
  %3325 = vxpose.xlu0.b32.end [16/16] 0.0, 128
  %v3326 = vpop.trf.xlu0
  %v3327 = vpop.trf.xlu0
  %v3328 = vpop.trf.xlu0
  %v3329 = vpop.trf.xlu0
  %v3330 = vpop.trf.xlu0
  %v3331 = vpop.trf.xlu0
  %v3332 = vpop.trf.xlu0
  %v3333 = vpop.trf.xlu0
  %v3334 = vpop.trf.xlu0
  %v3335 = vpop.trf.xlu0
  %v3336 = vpop.trf.xlu0
  %v3337 = vpop.trf.xlu0
  %v3338 = vpop.trf.xlu0
  %v3339 = vpop.trf.xlu0
  %v3340 = vpop.trf.xlu0
  %v3341 = vpop.trf.xlu0
  %3342 = vxpose.xlu0.b32.start [1/16] %v3226, 128
  %3343 = vxpose.xlu0.b32.cont [2/16] %v3227, 128
  %3344 = vxpose.xlu0.b32.cont [3/16] %v3228, 128
  %3345 = vxpose.xlu0.b32.cont [4/16] %v3229, 128
  %3346 = vxpose.xlu0.b32.cont [5/16] 0.0, 128
  %3347 = vxpose.xlu0.b32.cont [6/16] 0.0, 128
  %3348 = vxpose.xlu0.b32.cont [7/16] 0.0, 128
  %3349 = vxpose.xlu0.b32.cont [8/16] 0.0, 128
  %3350 = vxpose.xlu0.b32.cont [9/16] 0.0, 128
  %3351 = vxpose.xlu0.b32.cont [10/16] 0.0, 128
  %3352 = vxpose.xlu0.b32.cont [11/16] 0.0, 128
  %3353 = vxpose.xlu0.b32.cont [12/16] 0.0, 128
  %3354 = vxpose.xlu0.b32.cont [13/16] 0.0, 128
  %3355 = vxpose.xlu0.b32.cont [14/16] 0.0, 128
  %3356 = vxpose.xlu0.b32.cont [15/16] 0.0, 128
  %3357 = vxpose.xlu0.b32.end [16/16] 0.0, 128
  %v3358 = vpop.trf.xlu0
  %v3359 = vpop.trf.xlu0
  %v3360 = vpop.trf.xlu0
  %v3361 = vpop.trf.xlu0
  %v3362 = vpop.trf.xlu0
  %v3363 = vpop.trf.xlu0
  %v3364 = vpop.trf.xlu0
  %v3365 = vpop.trf.xlu0
  %v3366 = vpop.trf.xlu0
  %v3367 = vpop.trf.xlu0
  %v3368 = vpop.trf.xlu0
  %v3369 = vpop.trf.xlu0
  %v3370 = vpop.trf.xlu0
  %v3371 = vpop.trf.xlu0
  %v3372 = vpop.trf.xlu0
  %v3373 = vpop.trf.xlu0
  %3374 = vxpose.xlu0.b32.start [1/16] %v3230, 128
  %3375 = vxpose.xlu0.b32.cont [2/16] %v3231, 128
  %3376 = vxpose.xlu0.b32.cont [3/16] %v3232, 128
  %3377 = vxpose.xlu0.b32.cont [4/16] %v3233, 128
  %3378 = vxpose.xlu0.b32.cont [5/16] 0.0, 128
  %3379 = vxpose.xlu0.b32.cont [6/16] 0.0, 128
  %3380 = vxpose.xlu0.b32.cont [7/16] 0.0, 128
  %3381 = vxpose.xlu0.b32.cont [8/16] 0.0, 128
  %3382 = vxpose.xlu0.b32.cont [9/16] 0.0, 128
  %3383 = vxpose.xlu0.b32.cont [10/16] 0.0, 128
  %3384 = vxpose.xlu0.b32.cont [11/16] 0.0, 128
  %3385 = vxpose.xlu0.b32.cont [12/16] 0.0, 128
  %3386 = vxpose.xlu0.b32.cont [13/16] 0.0, 128
  %3387 = vxpose.xlu0.b32.cont [14/16] 0.0, 128
  %3388 = vxpose.xlu0.b32.cont [15/16] 0.0, 128
  %3389 = vxpose.xlu0.b32.end [16/16] 0.0, 128
  %v3390 = vpop.trf.xlu0
  %v3391 = vpop.trf.xlu0
  %v3392 = vpop.trf.xlu0
  %v3393 = vpop.trf.xlu0
  %v3394 = vpop.trf.xlu0
  %v3395 = vpop.trf.xlu0
  %v3396 = vpop.trf.xlu0
  %v3397 = vpop.trf.xlu0
  %v3398 = vpop.trf.xlu0
  %v3399 = vpop.trf.xlu0
  %v3400 = vpop.trf.xlu0
  %v3401 = vpop.trf.xlu0
  %v3402 = vpop.trf.xlu0
  %v3403 = vpop.trf.xlu0
  %v3404 = vpop.trf.xlu0
  %v3405 = vpop.trf.xlu0
  %3406 = vxpose.xlu0.b32.start [1/16] %v3234, 128
  %3407 = vxpose.xlu0.b32.cont [2/16] %v3235, 128
  %3408 = vxpose.xlu0.b32.cont [3/16] %v3236, 128
  %3409 = vxpose.xlu0.b32.cont [4/16] %v3237, 128
  %3410 = vxpose.xlu0.b32.cont [5/16] 0.0, 128
  %3411 = vxpose.xlu0.b32.cont [6/16] 0.0, 128
  %3412 = vxpose.xlu0.b32.cont [7/16] 0.0, 128
  %3413 = vxpose.xlu0.b32.cont [8/16] 0.0, 128
  %3414 = vxpose.xlu0.b32.cont [9/16] 0.0, 128
  %3415 = vxpose.xlu0.b32.cont [10/16] 0.0, 128
  %3416 = vxpose.xlu0.b32.cont [11/16] 0.0, 128
  %3417 = vxpose.xlu0.b32.cont [12/16] 0.0, 128
  %3418 = vxpose.xlu0.b32.cont [13/16] 0.0, 128
  %3419 = vxpose.xlu0.b32.cont [14/16] 0.0, 128
  %3420 = vxpose.xlu0.b32.cont [15/16] 0.0, 128
  %3421 = vxpose.xlu0.b32.end [16/16] 0.0, 128
  %v3422 = vpop.trf.xlu0
  %v3423 = vpop.trf.xlu0
  %v3424 = vpop.trf.xlu0
  %v3425 = vpop.trf.xlu0
  %v3426 = vpop.trf.xlu0
  %v3427 = vpop.trf.xlu0
  %v3428 = vpop.trf.xlu0
  %v3429 = vpop.trf.xlu0
  %v3430 = vpop.trf.xlu0
  %v3431 = vpop.trf.xlu0
  %v3432 = vpop.trf.xlu0
  %v3433 = vpop.trf.xlu0
  %v3434 = vpop.trf.xlu0
  %v3435 = vpop.trf.xlu0
  %v3436 = vpop.trf.xlu0
  %v3437 = vpop.trf.xlu0
  %3438 = vxpose.xlu0.b32.start [1/16] %v3238, 128
  %3439 = vxpose.xlu0.b32.cont [2/16] %v3239, 128
  %3440 = vxpose.xlu0.b32.cont [3/16] %v3240, 128
  %3441 = vxpose.xlu0.b32.cont [4/16] %v3241, 128
  %3442 = vxpose.xlu0.b32.cont [5/16] 0.0, 128
  %3443 = vxpose.xlu0.b32.cont [6/16] 0.0, 128
  %3444 = vxpose.xlu0.b32.cont [7/16] 0.0, 128
  %3445 = vxpose.xlu0.b32.cont [8/16] 0.0, 128
  %3446 = vxpose.xlu0.b32.cont [9/16] 0.0, 128
  %3447 = vxpose.xlu0.b32.cont [10/16] 0.0, 128
  %3448 = vxpose.xlu0.b32.cont [11/16] 0.0, 128
  %3449 = vxpose.xlu0.b32.cont [12/16] 0.0, 128
  %3450 = vxpose.xlu0.b32.cont [13/16] 0.0, 128
  %3451 = vxpose.xlu0.b32.cont [14/16] 0.0, 128
  %3452 = vxpose.xlu0.b32.cont [15/16] 0.0, 128
  %3453 = vxpose.xlu0.b32.end [16/16] 0.0, 128
  %v3454 = vpop.trf.xlu0
  %v3455 = vpop.trf.xlu0
  %v3456 = vpop.trf.xlu0
  %v3457 = vpop.trf.xlu0
  %v3458 = vpop.trf.xlu0
  %v3459 = vpop.trf.xlu0
  %v3460 = vpop.trf.xlu0
  %v3461 = vpop.trf.xlu0
  %v3462 = vpop.trf.xlu0
  %v3463 = vpop.trf.xlu0
  %v3464 = vpop.trf.xlu0
  %v3465 = vpop.trf.xlu0
  %v3466 = vpop.trf.xlu0
  %v3467 = vpop.trf.xlu0
  %v3468 = vpop.trf.xlu0
  %v3469 = vpop.trf.xlu0
  %3470 = vxpose.xlu0.b32.start [1/16] %v3242, 128
  %3471 = vxpose.xlu0.b32.cont [2/16] %v3243, 128
  %3472 = vxpose.xlu0.b32.cont [3/16] %v3244, 128
  %3473 = vxpose.xlu0.b32.cont [4/16] %v3245, 128
  %3474 = vxpose.xlu0.b32.cont [5/16] 0.0, 128
  %3475 = vxpose.xlu0.b32.cont [6/16] 0.0, 128
  %3476 = vxpose.xlu0.b32.cont [7/16] 0.0, 128
  %3477 = vxpose.xlu0.b32.cont [8/16] 0.0, 128
  %3478 = vxpose.xlu0.b32.cont [9/16] 0.0, 128
  %3479 = vxpose.xlu0.b32.cont [10/16] 0.0, 128
  %3480 = vxpose.xlu0.b32.cont [11/16] 0.0, 128
  %3481 = vxpose.xlu0.b32.cont [12/16] 0.0, 128
  %3482 = vxpose.xlu0.b32.cont [13/16] 0.0, 128
  %3483 = vxpose.xlu0.b32.cont [14/16] 0.0, 128
  %3484 = vxpose.xlu0.b32.cont [15/16] 0.0, 128
  %3485 = vxpose.xlu0.b32.end [16/16] 0.0, 128
  %v3486 = vpop.trf.xlu0
  %v3487 = vpop.trf.xlu0
  %v3488 = vpop.trf.xlu0
  %v3489 = vpop.trf.xlu0
  %v3490 = vpop.trf.xlu0
  %v3491 = vpop.trf.xlu0
  %v3492 = vpop.trf.xlu0
  %v3493 = vpop.trf.xlu0
  %v3494 = vpop.trf.xlu0
  %v3495 = vpop.trf.xlu0
  %v3496 = vpop.trf.xlu0
  %v3497 = vpop.trf.xlu0
  %v3498 = vpop.trf.xlu0
  %v3499 = vpop.trf.xlu0
  %v3500 = vpop.trf.xlu0
  %v3501 = vpop.trf.xlu0
  %v3503 = vsel %vm65, %v3262, 0
  %v3506 = vsel %vm65, %v3263, 0
  %v3509 = vsel %vm65, %v3294, 0
  %v3512 = vsel %vm65, %v3295, 0
  %v3515 = vsel %vm65, %v3326, 0
  %v3518 = vsel %vm65, %v3327, 0
  %v3521 = vsel %vm65, %v3358, 0
  %v3524 = vsel %vm65, %v3359, 0
  %v3527 = vsel %vm65, %v3390, 0
  %v3530 = vsel %vm65, %v3391, 0
  %v3533 = vsel %vm65, %v3422, 0
  %v3536 = vsel %vm65, %v3423, 0
  %v3539 = vsel %vm65, %v3454, 0
  %v3542 = vsel %vm65, %v3455, 0
  %v3545 = vsel %vm65, %v3486, 0
  %v3548 = vsel %vm65, %v3487, 0
  %3550 = vmatprep.subr.mxu0 0.0
  %3551 = vmatpush1.msra.mxu0 0.0
  %3552 = vmatprep.subr.mxu0 0.0
  %3553 = vmatpush1.msra.mxu0 0.0
  %3554 = vmatprep.subr.mxu0 0.0
  %3555 = vmatpush1.msra.mxu0 0.0
  %3556 = vmatprep.subr.mxu0 0.0
  %3557 = vmatpush1.msra.mxu0 0.0
  %3558 = vmatprep.subr.mxu0 0.0
  %3559 = vmatpush1.msra.mxu0 0.0
  %3560 = vmatprep.subr.mxu0 0.0
  %3561 = vmatpush1.msra.mxu0 0.0
  %3562 = vmatprep.subr.mxu0 0.0
  %3563 = vmatpush1.msra.mxu0 0.0
  %3564 = vmatprep.subr.mxu0 0.0
  %3565 = vmatpush1.msra.mxu0 0.0
  %3566 = vmatprep.subr.mxu0 0.0
  %3567 = vmatpush1.msra.mxu0 0.0
  %3568 = vmatprep.subr.mxu0 0.0
  %3569 = vmatpush1.msra.mxu0 0.0
  %3570 = vmatprep.subr.mxu0 0.0
  %3571 = vmatpush1.msra.mxu0 0.0
  %3572 = vmatprep.subr.mxu0 0.0
  %3573 = vmatpush1.msra.mxu0 0.0
  %3574 = vmatprep.subr.mxu0 0.0
  %3575 = vmatpush1.msra.mxu0 %v24
  %3576 = vmatprep.subr.mxu0 0.0
  %3577 = vmatpush1.msra.mxu0 %v23
  %3578 = vmatprep.subr.mxu0 0.0
  %3579 = vmatpush1.msra.mxu0 %v22
  %3580 = vmatprep.subr.mxu0 0.0
  %3581 = vmatpush1.msra.mxu0 %v21
  %3582 = vmatprep.subr.mxu0 0.0
  %3583 = vmatpush2.msra.mxu0 0.0
  %3584 = vmatprep.subr.mxu0 0.0
  %3585 = vmatpush2.msra.mxu0 0.0
  %3586 = vmatprep.subr.mxu0 0.0
  %3587 = vmatpush2.msra.mxu0 0.0
  %3588 = vmatprep.subr.mxu0 0.0
  %3589 = vmatpush2.msra.mxu0 0.0
  %3590 = vmatprep.subr.mxu0 0.0
  %3591 = vmatpush2.msra.mxu0 0.0
  %3592 = vmatprep.subr.mxu0 0.0
  %3593 = vmatpush2.msra.mxu0 0.0
  %3594 = vmatprep.subr.mxu0 0.0
  %3595 = vmatpush2.msra.mxu0 0.0
  %3596 = vmatprep.subr.mxu0 0.0
  %3597 = vmatpush2.msra.mxu0 0.0
  %3598 = vmatprep.subr.mxu0 0.0
  %3599 = vmatpush2.msra.mxu0 0.0
  %3600 = vmatprep.subr.mxu0 0.0
  %3601 = vmatpush2.msra.mxu0 0.0
  %3602 = vmatprep.subr.mxu0 0.0
  %3603 = vmatpush2.msra.mxu0 0.0
  %3604 = vmatprep.subr.mxu0 0.0
  %3605 = vmatpush2.msra.mxu0 0.0
  %3606 = vmatprep.subr.mxu0 0.0
  %3607 = vmatpush2.msra.mxu0 0.0
  %3608 = vmatprep.subr.mxu0 0.0
  %3609 = vmatpush2.msra.mxu0 0.0
  %3610 = vmatprep.subr.mxu0 0.0
  %3611 = vmatpush2.msra.mxu0 0.0
  %3612 = vmatprep.subr.mxu0 0.0
  %3613 = vmatpush2.msra.mxu0 0.0
  %3614 = vmatprep.mubr.f32.mxu0 0.0
  %3615 = vmatmul.mubr.f32.gmra.mxu0 %v3503
  %v3616 = vpop.f32.mrf.mxu0
  %v3617 = vadd.f32 0.0, %v3616
  %v3618 = vpop.f32.mrf.mxu0
  %3619 = vmatprep.mubr.f32.mxu0 0.0
  %3620 = vmatmul.mubr.f32.gmra.mxu0 %v3506
  %v3621 = vpop.f32.mrf.mxu0
  %v3622 = vadd.f32 0.0, %v3621
  %v3623 = vpop.f32.mrf.mxu0
  %3624 = vmatprep.mubr.f32.mxu0 0.0
  %3625 = vmatmul.mubr.f32.gmra.mxu0 %v3509
  %v3626 = vpop.f32.mrf.mxu0
  %v3627 = vadd.f32 0.0, %v3626
  %v3628 = vpop.f32.mrf.mxu0
  %3629 = vmatprep.mubr.f32.mxu0 0.0
  %3630 = vmatmul.mubr.f32.gmra.mxu0 %v3512
  %v3631 = vpop.f32.mrf.mxu0
  %v3632 = vadd.f32 0.0, %v3631
  %v3633 = vpop.f32.mrf.mxu0
  %3634 = vmatprep.mubr.f32.mxu0 0.0
  %3635 = vmatmul.mubr.f32.gmra.mxu0 %v3515
  %v3636 = vpop.f32.mrf.mxu0
  %v3637 = vadd.f32 0.0, %v3636
  %v3638 = vpop.f32.mrf.mxu0
  %3639 = vmatprep.mubr.f32.mxu0 0.0
  %3640 = vmatmul.mubr.f32.gmra.mxu0 %v3518
  %v3641 = vpop.f32.mrf.mxu0
  %v3642 = vadd.f32 0.0, %v3641
  %v3643 = vpop.f32.mrf.mxu0
  %3644 = vmatprep.mubr.f32.mxu0 0.0
  %3645 = vmatmul.mubr.f32.gmra.mxu0 %v3521
  %v3646 = vpop.f32.mrf.mxu0
  %v3647 = vadd.f32 0.0, %v3646
  %v3648 = vpop.f32.mrf.mxu0
  %3649 = vmatprep.mubr.f32.mxu0 0.0
  %3650 = vmatmul.mubr.f32.gmra.mxu0 %v3524
  %v3651 = vpop.f32.mrf.mxu0
  %v3652 = vadd.f32 0.0, %v3651
  %v3653 = vpop.f32.mrf.mxu0
  %3654 = vmatprep.mubr.f32.mxu0 0.0
  %3655 = vmatmul.mubr.f32.gmra.mxu0 %v3527
  %v3656 = vpop.f32.mrf.mxu0
  %v3657 = vadd.f32 0.0, %v3656
  %v3658 = vpop.f32.mrf.mxu0
  %3659 = vmatprep.mubr.f32.mxu0 0.0
  %3660 = vmatmul.mubr.f32.gmra.mxu0 %v3530
  %v3661 = vpop.f32.mrf.mxu0
  %v3662 = vadd.f32 0.0, %v3661
  %v3663 = vpop.f32.mrf.mxu0
  %3664 = vmatprep.mubr.f32.mxu0 0.0
  %3665 = vmatmul.mubr.f32.gmra.mxu0 %v3533
  %v3666 = vpop.f32.mrf.mxu0
  %v3667 = vadd.f32 0.0, %v3666
  %v3668 = vpop.f32.mrf.mxu0
  %3669 = vmatprep.mubr.f32.mxu0 0.0
  %3670 = vmatmul.mubr.f32.gmra.mxu0 %v3536
  %v3671 = vpop.f32.mrf.mxu0
  %v3672 = vadd.f32 0.0, %v3671
  %v3673 = vpop.f32.mrf.mxu0
  %3674 = vmatprep.mubr.f32.mxu0 0.0
  %3675 = vmatmul.mubr.f32.gmra.mxu0 %v3539
  %v3676 = vpop.f32.mrf.mxu0
  %v3677 = vadd.f32 0.0, %v3676
  %v3678 = vpop.f32.mrf.mxu0
  %3679 = vmatprep.mubr.f32.mxu0 0.0
  %3680 = vmatmul.mubr.f32.gmra.mxu0 %v3542
  %v3681 = vpop.f32.mrf.mxu0
  %v3682 = vadd.f32 0.0, %v3681
  %v3683 = vpop.f32.mrf.mxu0
  %3684 = vmatprep.mubr.f32.mxu0 0.0
  %3685 = vmatmul.mubr.f32.gmra.mxu0 %v3545
  %v3686 = vpop.f32.mrf.mxu0
  %v3687 = vadd.f32 0.0, %v3686
  %v3688 = vpop.f32.mrf.mxu0
  %3689 = vmatprep.mubr.f32.mxu0 0.0
  %3690 = vmatmul.mubr.f32.gmra.mxu0 %v3548
  %v3691 = vpop.f32.mrf.mxu0
  %v3692 = vadd.f32 0.0, %v3691
  %v3693 = vpop.f32.mrf.mxu0
  %3694 = vdwg.mxu0
  %3703 = vrot.lane.b32.xlu0 %v3622, 120
  %v3704 = vpop.permute.xlu0 %3703
  %3705 = vrot.lane.b32.xlu0 %v3632, 120
  %v3706 = vpop.permute.xlu0 %3705
  %3707 = vrot.lane.b32.xlu0 %v3642, 120
  %v3708 = vpop.permute.xlu0 %3707
  %3709 = vrot.lane.b32.xlu0 %v3652, 120
  %v3710 = vpop.permute.xlu0 %3709
  %3711 = vrot.lane.b32.xlu0 %v3662, 120
  %v3712 = vpop.permute.xlu0 %3711
  %3713 = vrot.lane.b32.xlu0 %v3672, 120
  %v3714 = vpop.permute.xlu0 %3713
  %3715 = vrot.lane.b32.xlu0 %v3682, 120
  %v3716 = vpop.permute.xlu0 %3715
  %3717 = vrot.lane.b32.xlu0 %v3692, 120
  %v3718 = vpop.permute.xlu0 %3717
  %v3727 = vsub.f32 %v3617, %v3704
  %v3728 = vsub.f32 %v3627, %v3706
  %v3729 = vsub.f32 %v3637, %v3708
  %v3730 = vsub.f32 %v3647, %v3710
  %v3731 = vsub.f32 %v3657, %v3712
  %v3732 = vsub.f32 %v3667, %v3714
  %v3733 = vsub.f32 %v3677, %v3716
  %v3734 = vsub.f32 %v3687, %v3718
  %v3735 = vmul.f32 %v3727, 0.0009765625
  %v3736 = vmul.f32 %v3728, 0.0009765625
  %v3737 = vmul.f32 %v3729, 0.0009765625
  %v3738 = vmul.f32 %v3730, 0.0009765625
  %v3739 = vmul.f32 %v3731, 0.0009765625
  %v3740 = vmul.f32 %v3732, 0.0009765625
  %v3741 = vmul.f32 %v3733, 0.0009765625
  %v3742 = vmul.f32 %v3734, 0.0009765625
  %3743 = vrot.lane.b32.xlu0 %v3622, 8
  %v3744 = vpop.permute.xlu0 %3743
  %3745 = vrot.lane.b32.xlu0 %v3632, 8
  %v3746 = vpop.permute.xlu0 %3745
  %3747 = vrot.lane.b32.xlu0 %v3642, 8
  %v3748 = vpop.permute.xlu0 %3747
  %3749 = vrot.lane.b32.xlu0 %v3652, 8
  %v3750 = vpop.permute.xlu0 %3749
  %3751 = vrot.lane.b32.xlu0 %v3662, 8
  %v3752 = vpop.permute.xlu0 %3751
  %3753 = vrot.lane.b32.xlu0 %v3672, 8
  %v3754 = vpop.permute.xlu0 %3753
  %3755 = vrot.lane.b32.xlu0 %v3682, 8
  %v3756 = vpop.permute.xlu0 %3755
  %3757 = vrot.lane.b32.xlu0 %v3692, 8
  %v3758 = vpop.permute.xlu0 %3757
  %v3767 = vadd.f32 %v3617, %v3744
  %v3768 = vadd.f32 %v3627, %v3746
  %v3769 = vadd.f32 %v3637, %v3748
  %v3770 = vadd.f32 %v3647, %v3750
  %v3771 = vadd.f32 %v3657, %v3752
  %v3772 = vadd.f32 %v3667, %v3754
  %v3773 = vadd.f32 %v3677, %v3756
  %v3774 = vadd.f32 %v3687, %v3758
  %v3775 = vmul.f32 %v3767, 0.0009765625
  %v3776 = vmul.f32 %v3768, 0.0009765625
  %v3777 = vmul.f32 %v3769, 0.0009765625
  %v3778 = vmul.f32 %v3770, 0.0009765625
  %v3779 = vmul.f32 %v3771, 0.0009765625
  %v3780 = vmul.f32 %v3772, 0.0009765625
  %v3781 = vmul.f32 %v3773, 0.0009765625
  %v3782 = vmul.f32 %v3774, 0.0009765625
  %v3783 = vld [vmem:[%s3] sm:$0xff]
  %v3784 = vld [vmem:[%s3 + $0x8] sm:$0xff]
  %v3785 = vld [vmem:[%s3 + $0x10] sm:$0xff]
  %v3786 = vld [vmem:[%s3 + $0x18] sm:$0xff]
  %v3787 = vld [vmem:[%s3 + $0x20] sm:$0xff]
  %v3788 = vld [vmem:[%s3 + $0x28] sm:$0xff]
  %v3789 = vld [vmem:[%s3 + $0x30] sm:$0xff]
  %v3790 = vld [vmem:[%s3 + $0x38] sm:$0xff]
  %v3791 = vsub.f32 %v3783, %v3735
  %v3792 = vsub.f32 %v3784, %v3736
  %v3793 = vsub.f32 %v3785, %v3737
  %v3794 = vsub.f32 %v3786, %v3738
  %v3795 = vsub.f32 %v3787, %v3739
  %v3796 = vsub.f32 %v3788, %v3740
  %v3797 = vsub.f32 %v3789, %v3741
  %v3798 = vsub.f32 %v3790, %v3742
  %s3799 = scalar_lea.vmem %s3, 64
  %v3800 = vld [vmem:[%s3799] sm:$0xff]
  %v3801 = vld [vmem:[%s3799 + $0x8] sm:$0xff]
  %v3802 = vld [vmem:[%s3799 + $0x10] sm:$0xff]
  %v3803 = vld [vmem:[%s3799 + $0x18] sm:$0xff]
  %v3804 = vld [vmem:[%s3799 + $0x20] sm:$0xff]
  %v3805 = vld [vmem:[%s3799 + $0x28] sm:$0xff]
  %v3806 = vld [vmem:[%s3799 + $0x30] sm:$0xff]
  %v3807 = vld [vmem:[%s3799 + $0x38] sm:$0xff]
  %3816 = vrot.lane.b32.xlu0 %v3775, 120
  %v3817 = vpop.permute.xlu0 %3816
  %3818 = vrot.lane.b32.xlu0 %v3776, 120
  %v3819 = vpop.permute.xlu0 %3818
  %3820 = vrot.lane.b32.xlu0 %v3777, 120
  %v3821 = vpop.permute.xlu0 %3820
  %3822 = vrot.lane.b32.xlu0 %v3778, 120
  %v3823 = vpop.permute.xlu0 %3822
  %3824 = vrot.lane.b32.xlu0 %v3779, 120
  %v3825 = vpop.permute.xlu0 %3824
  %3826 = vrot.lane.b32.xlu0 %v3780, 120
  %v3827 = vpop.permute.xlu0 %3826
  %3828 = vrot.lane.b32.xlu0 %v3781, 120
  %v3829 = vpop.permute.xlu0 %3828
  %3830 = vrot.lane.b32.xlu0 %v3782, 120
  %v3831 = vpop.permute.xlu0 %3830
  %v3840 = vsub.f32 %v3800, %v3817
  %v3841 = vsub.f32 %v3801, %v3819
  %v3842 = vsub.f32 %v3802, %v3821
  %v3843 = vsub.f32 %v3803, %v3823
  %v3844 = vsub.f32 %v3804, %v3825
  %v3845 = vsub.f32 %v3805, %v3827
  %v3846 = vsub.f32 %v3806, %v3829
  %v3847 = vsub.f32 %v3807, %v3831
  %v3848 = vmul.f32 %v3791, %v3791
  %v3849 = vmul.f32 %v3792, %v3792
  %v3850 = vmul.f32 %v3793, %v3793
  %v3851 = vmul.f32 %v3794, %v3794
  %v3852 = vmul.f32 %v3795, %v3795
  %v3853 = vmul.f32 %v3796, %v3796
  %v3854 = vmul.f32 %v3797, %v3797
  %v3855 = vmul.f32 %v3798, %v3798
  %v3856 = vmul.f32 %v3840, %v3840
  %v3857 = vmul.f32 %v3841, %v3841
  %v3858 = vmul.f32 %v3842, %v3842
  %v3859 = vmul.f32 %v3843, %v3843
  %v3860 = vmul.f32 %v3844, %v3844
  %v3861 = vmul.f32 %v3845, %v3845
  %v3862 = vmul.f32 %v3846, %v3846
  %v3863 = vmul.f32 %v3847, %v3847
  %v3864 = vadd.f32 %v3848, %v3856
  %v3865 = vadd.f32 %v3849, %v3857
  %v3866 = vadd.f32 %v3850, %v3858
  %v3867 = vadd.f32 %v3851, %v3859
  %v3868 = vadd.f32 %v3852, %v3860
  %v3869 = vadd.f32 %v3853, %v3861
  %v3870 = vadd.f32 %v3854, %v3862
  %v3871 = vadd.f32 %v3855, %v3863
  %v3872 = vrsqrt.pop %v3864
  %v3873 = vmul.f32 %v3864, %v3872
  %vm3874 = vcmp.eq.f32.partialorder %v3864, inf
  %v3875 = vsel %vm3874, %v3864, %v3873
  %vm3876 = vcmp.eq.f32.partialorder %v3864, 0.0
  %v3877 = vand.u32 %v3864, 2147483648
  %v3878 = vsel %vm3876, %v3877, %v3875
  %v3879 = vrsqrt.pop %v3865
  %v3880 = vmul.f32 %v3865, %v3879
  %vm3881 = vcmp.eq.f32.partialorder %v3865, inf
  %v3882 = vsel %vm3881, %v3865, %v3880
  %vm3883 = vcmp.eq.f32.partialorder %v3865, 0.0
  %v3884 = vand.u32 %v3865, 2147483648
  %v3885 = vsel %vm3883, %v3884, %v3882
  %v3886 = vrsqrt.pop %v3866
  %v3887 = vmul.f32 %v3866, %v3886
  %vm3888 = vcmp.eq.f32.partialorder %v3866, inf
  %v3889 = vsel %vm3888, %v3866, %v3887
  %vm3890 = vcmp.eq.f32.partialorder %v3866, 0.0
  %v3891 = vand.u32 %v3866, 2147483648
  %v3892 = vsel %vm3890, %v3891, %v3889
  %v3893 = vrsqrt.pop %v3867
  %v3894 = vmul.f32 %v3867, %v3893
  %vm3895 = vcmp.eq.f32.partialorder %v3867, inf
  %v3896 = vsel %vm3895, %v3867, %v3894
  %vm3897 = vcmp.eq.f32.partialorder %v3867, 0.0
  %v3898 = vand.u32 %v3867, 2147483648
  %v3899 = vsel %vm3897, %v3898, %v3896
  %v3900 = vrsqrt.pop %v3868
  %v3901 = vmul.f32 %v3868, %v3900
  %vm3902 = vcmp.eq.f32.partialorder %v3868, inf
  %v3903 = vsel %vm3902, %v3868, %v3901
  %vm3904 = vcmp.eq.f32.partialorder %v3868, 0.0
  %v3905 = vand.u32 %v3868, 2147483648
  %v3906 = vsel %vm3904, %v3905, %v3903
  %v3907 = vrsqrt.pop %v3869
  %v3908 = vmul.f32 %v3869, %v3907
  %vm3909 = vcmp.eq.f32.partialorder %v3869, inf
  %v3910 = vsel %vm3909, %v3869, %v3908
  %vm3911 = vcmp.eq.f32.partialorder %v3869, 0.0
  %v3912 = vand.u32 %v3869, 2147483648
  %v3913 = vsel %vm3911, %v3912, %v3910
  %v3914 = vrsqrt.pop %v3870
  %v3915 = vmul.f32 %v3870, %v3914
  %vm3916 = vcmp.eq.f32.partialorder %v3870, inf
  %v3917 = vsel %vm3916, %v3870, %v3915
  %vm3918 = vcmp.eq.f32.partialorder %v3870, 0.0
  %v3919 = vand.u32 %v3870, 2147483648
  %v3920 = vsel %vm3918, %v3919, %v3917
  %v3921 = vrsqrt.pop %v3871
  %v3922 = vmul.f32 %v3871, %v3921
  %vm3923 = vcmp.eq.f32.partialorder %v3871, inf
  %v3924 = vsel %vm3923, %v3871, %v3922
  %vm3925 = vcmp.eq.f32.partialorder %v3871, 0.0
  %v3926 = vand.u32 %v3871, 2147483648
  %v3927 = vsel %vm3925, %v3926, %v3924
  %v3928 = vsel %vm3213, %v3878, 0.0
  %v3929 = vsel %vm3213, %v3885, 0.0
  %v3930 = vadd.f32 %v3928, %v3929
  %v3931 = vsel %vm3213, %v3892, 0.0
  %v3932 = vadd.f32 %v3930, %v3931
  %v3933 = vsel %vm3213, %v3899, 0.0
  %v3934 = vadd.f32 %v3932, %v3933
  %v3935 = vsel %vm3213, %v3906, 0.0
  %v3936 = vadd.f32 %v3934, %v3935
  %v3937 = vsel %vm3213, %v3913, 0.0
  %v3938 = vadd.f32 %v3936, %v3937
  %v3939 = vsel %vm3213, %v3920, 0.0
  %v3940 = vadd.f32 %v3938, %v3939
  %v3941 = vsel %vm3213, %v3927, 0.0
  %v3942 = vadd.f32 %v3940, %v3941
  %3943 = vadd.xlane.f32.xlu0 %v3942
  %v3944 = vpop.xlane.xlu0 %3943
  %v3945 = vrot.slane %v3944, 4
  %v3946 = vadd.f32 %v3944, %v3945
  %v3947 = vrot.slane %v3946, 2
  %v3948 = vadd.f32 %v3946, %v3947
  %v3949 = vrot.slane %v3948, 1
  %v3950 = vadd.f32 %v3948, %v3949
  %s3951 = vtos %v3950
  %v3952 = vstv %s3951
  %v3953 = vadd.f32 %v3952, 0.0
  %3954 = vst [vmem:[%s4] sm:$0xff] %v3953
  // Predicated region
  $region18: #{get_loss_pallas.1} parent=0 // pred_check
    _
  $region19: #{get_loss_pallas.1} parent=0 // pred_check_branch
    %3956 = sbr.rel (0) target = $region21
  $region20: #{get_loss_pallas.1} parent=0 // pred_region
    _
  $region21: #{get_loss_pallas.1} parent=0 // pred_fallthru
    _
  // Predicated region
  $region22: #{get_loss_pallas.1} parent=0 // pred_check
    _
  $region23: #{get_loss_pallas.1} parent=0 // pred_check_branch
    %3958 = sbr.rel (0) target = $region25
  $region24: #{get_loss_pallas.1} parent=0 // pred_region
    _
  $region25: #{get_loss_pallas.1} parent=0 // pred_fallthru
    _

</llo_original>
